<compile_context>
chip_gen: v5e
topology: v5e:2x2
jax: 0.10.0
libtpu: 0.0.40
codegen_flags: <defaults>
</compile_context>

<pallas_src>
import functools

import numpy as np
import jax
import jax.numpy as jnp
from jax import lax
from jax.experimental import pallas as pl
from jax.experimental.pallas import tpu as pltpu


# ----------------------------------------------------------------------------
# Tiling heuristics
# ----------------------------------------------------------------------------
def _choose_tiles(P, X, YZ):
    """Pick detector-tile width TP (lanes) and steps-per-matmul S."""
    if P % 256 == 0:
        TP = 256          # conservative: fits v7x 64 MiB VMEM; raise on v5e/v6e
    elif P % 128 == 0:
        TP = 128
    else:
        TP = P            # fallback: no detector tiling
    # keep the per-group (Y*Z, S*TP) bf16 one-hot under ~4 MiB
    budget = 4 * 1024 * 1024
    S = int(max(1, min(8, budget // max(1, YZ * TP * 2))))
    return TP, S


def _vmem_limit_bytes(X, YZ, TP, S):
    est = (
        2 * X * YZ * 2        # double-buffered bf16 volume slab
        + 2 * 8 * TP * 4      # double-buffered ray table
        + 2 * TP * 4          # output block
        + YZ * S * TP * 2     # per-group yz one-hot (bf16)
        + 3 * X * S * TP * 4  # rows / x-mask / product (f32)
        + (4 << 20)           # headroom for compiler scratch
    )
    # 48 MiB is safe on every generation (v7x has 64 MiB physical per TC).
    return int(min(48 * 1024 * 1024, max(32 * 1024 * 1024, est)))


# ----------------------------------------------------------------------------
# Pallas kernel: per (batch, channel, detector-tile) ray-march over the volume.
# ----------------------------------------------------------------------------
def _drr_kernel(ngroups_ref, vol_ref, rays_ref, out_ref,
                *, X, Y, Z, S, TP, scale):
    YZ = Y * Z
    M = S * TP

    # dynamic loop bound for this (batch, detector-tile)
    n_groups = ngroups_ref[pl.program_id(0), pl.program_id(2)]

    vol2d = vol_ref[0, 0]                    # (X, Y*Z)  bf16, resident slab
    rays = rays_ref[0]                       # (8, TP)   f32
    sx = rays[0:1, :]; sy = rays[1:2, :]; sz = rays[2:3, :]
    dx = rays[3:4, :]; dy = rays[4:5, :]; dz = rays[5:6, :]
    nv = rays[6:7, :]                        # valid step count per ray

    def group_body(g, acc):
        base = (g * S).astype(jnp.float32)
        iyz_parts, ix_parts = [], []
        for s in range(S):                   # static unroll: S steps per matmul
            t = base + float(s)
            px = sx + t * dx
            py = sy + t * dy
            pz = sz + t * dz
            ix = jnp.floor(px + 0.5).astype(jnp.int32)
            iy = jnp.floor(py + 0.5).astype(jnp.int32)
            iz = jnp.floor(pz + 0.5).astype(jnp.int32)
            # y/z bounds + step-count validity folded into the x index: an
            # invalid step gets ix = -1 which can never match the x iota.
            # (out-of-range x itself also never matches.)
            ok = ((iy >= 0) & (iy < Y) & (iz >= 0) & (iz < Z) & (t < nv))
            ix_parts.append(jnp.where(ok, ix, -1))       # (1, TP)
            iyz_parts.append(iy * Z + iz)                # (1, TP)

        if S > 1:
            iyz_g = jnp.concatenate(iyz_parts, axis=1)   # (1, M)
            ix_g = jnp.concatenate(ix_parts, axis=1)     # (1, M)
        else:
            iyz_g, ix_g = iyz_parts[0], ix_parts[0]

        # (y, z) one-hot rides the MXU with contraction K = Y*Z (bf16 in,
        # f32 accumulate).  One matmul covers S steps x TP rays.
        oh_yz = (lax.broadcasted_iota(jnp.int32, (YZ, M), 0) == iyz_g
                 ).astype(jnp.bfloat16)                              # (YZ, M)
        rows = jnp.dot(vol2d, oh_yz,
                       preferred_element_type=jnp.float32)           # (X, M)
        selx = (lax.broadcasted_iota(jnp.int32, (X, M), 0) == ix_g
                ).astype(jnp.float32)                                # (X, M)
        col = jnp.sum(rows * selx, axis=0, keepdims=True)            # (1, M)

        contrib = col[:, 0:TP]
        for s in range(1, S):
            contrib = contrib + col[:, s * TP:(s + 1) * TP]          # (1, TP)
        return acc + contrib

    acc = lax.fori_loop(0, n_groups, group_body,
                        jnp.zeros((1, TP), jnp.float32))
    out_ref[0, 0] = (acc * scale).astype(out_ref.dtype)              # lane-dense


def _drr_project_pallas(vol2d, rays, ngroups, *, det_shape, X, Y, Z, TP, S,
                        scale, out_dtype):
    B, C, _, YZ = vol2d.shape
    P = rays.shape[-1]
    NT = P // TP
    kernel = functools.partial(_drr_kernel, X=X, Y=Y, Z=Z, S=S, TP=TP,
                               scale=scale)
    out = pl.pallas_call(
        kernel,
        out_shape=jax.ShapeDtypeStruct((B, C, 1, P), out_dtype),
        grid_spec=pltpu.PrefetchScalarGridSpec(
            num_scalar_prefetch=1,
            grid=(B, C, NT),
            in_specs=[
                # volume slab: index_map ignores the detector-tile axis (which
                # is innermost) so it stays resident across detector tiles.
                pl.BlockSpec((1, 1, X, YZ), lambda b, c, pt, ng: (b, c, 0, 0)),
                pl.BlockSpec((1, 8, TP), lambda b, c, pt, ng: (b, 0, pt)),
            ],
            out_specs=pl.BlockSpec((1, 1, 1, TP),
                                   lambda b, c, pt, ng: (b, c, 0, pt)),
        ),
        compiler_params=pltpu.CompilerParams(
            dimension_semantics=("parallel", "parallel", "parallel"),
            vmem_limit_bytes=_vmem_limit_bytes(X, YZ, TP, S)),
    )(ngroups, vol2d, rays)
    return out.reshape(B, C, det_shape[0], det_shape[1])


# ----------------------------------------------------------------------------
# DRRProjector re-implemented in JAX (geometry glue) + Pallas kernel (hot path)
# ----------------------------------------------------------------------------
class DRRProjectorPallas:
    def __init__(self, mode='forward', volume_shape=(128, 128, 128),
                 detector_shape=(128, 128), voxel_size=(1.0, 1.0, 1.0),
                 pixel_size=(1.5, 1.5), step_size=0.1,
                 source_to_detector_distance=1500.0, isocenter_distance=1000.0,
                 source_offset=(0.0, 0.0, 0.0), detector_offset=(0.0, 0.0),
                 interp='nearest'):
        if np.isscalar(volume_shape):
            volume_shape = (volume_shape,) * 3
        if np.isscalar(detector_shape):
            detector_shape = (detector_shape,) * 2
        if np.isscalar(voxel_size):
            voxel_size = (voxel_size,) * 3
        if np.isscalar(pixel_size):
            pixel_size = (pixel_size,) * 2
        if np.isscalar(source_offset):
            source_offset = (source_offset,) * 3
        if np.isscalar(detector_offset):
            detector_offset = (detector_offset,) * 2

        K = np.zeros((3, 3), np.float32)
        K[0, 0] = source_to_detector_distance / pixel_size[0]
        K[1, 1] = source_to_detector_distance / pixel_size[1]
        K[0, 2] = detector_shape[0] / 2.0 - detector_offset[0] / pixel_size[0]
        K[1, 2] = detector_shape[1] / 2.0 - detector_offset[1] / pixel_size[1]
        K[2, 2] = 1.0
        self.K_inv = jnp.asarray(np.linalg.inv(K).astype(np.float32))

        vsi = np.diag(1.0 / np.asarray(voxel_size, np.float32)).astype(np.float32)
        self.voxel_size_inv = jnp.asarray(vsi)
        self.isocenter_distance = float(isocenter_distance)
        self.volume_offset = jnp.asarray(
            np.asarray(volume_shape, np.float32) * 0.5
            - vsi @ np.asarray(source_offset, np.float32))
        self.volume_shape = tuple(int(s) for s in volume_shape)
        self.detector_shape = tuple(int(s) for s in detector_shape)
        self.voxel_size = jnp.asarray(np.asarray(voxel_size, np.float32))
        self.step_size = float(step_size)
        self.mode = mode
        self.interp = interp

        if mode != 'forward':
            # TODO(synk): backward (back-projection) mode not implemented in Pallas.
            raise NotImplementedError("only mode='forward' implemented")
        if interp != 'nearest':
            # TODO(synk): trilinear interpolation not implemented in Pallas.
            raise NotImplementedError("only interp='nearest' implemented")

        diag_mm = float(np.linalg.norm(np.asarray(volume_shape, np.float64)
                                       * np.asarray(voxel_size, np.float64)))
        self.n_steps = int(np.ceil(diag_mm / self.step_size)) + 2

    @staticmethod
    def create_rotation(theta):
        tx, ty, tz = theta[:, 0], theta[:, 1], theta[:, 2]
        c, s = jnp.cos, jnp.sin
        z = jnp.zeros_like(tx)
        o = jnp.ones_like(tx)
        Rx = jnp.stack([jnp.stack([o, z, z], -1),
                        jnp.stack([z, c(tx), -s(tx)], -1),
                        jnp.stack([z, s(tx), c(tx)], -1)], -2)
        Ry = jnp.stack([jnp.stack([c(ty), z, s(ty)], -1),
                        jnp.stack([z, o, z], -1),
                        jnp.stack([-s(ty), z, c(ty)], -1)], -2)
        Rz = jnp.stack([jnp.stack([c(tz), -s(tz), z], -1),
                        jnp.stack([s(tz), c(tz), z], -1),
                        jnp.stack([z, z, o], -1)], -2)
        return jnp.matmul(jnp.matmul(Rx, Ry), Rz)

    def _ray_setup(self, batch, transform_param):
        """Per-ray start point / step / valid-step-count, all in voxel coordinates."""
        if transform_param is None:
            transform_param = jnp.zeros((batch, 6), jnp.float32)
        transform_param = transform_param.astype(jnp.float32)
        if transform_param.ndim == 2:
            R = self.create_rotation(transform_param[:, :3])
            t = -transform_param[:, 3:][..., None]              # (B,3,1)
        else:
            R = transform_param[:, :3, :3]
            t = -transform_param[:, :3, 3][..., None]
        t = t.at[:, 2].add(self.isocenter_distance)
        Rt = jnp.swapaxes(R, 1, 2)

        ray_mat = jnp.matmul(self.voxel_size_inv, jnp.matmul(Rt, self.K_inv))   # (B,3,3)
        source = self.volume_offset[None] - jnp.matmul(
            self.voxel_size_inv, jnp.matmul(Rt, t))[..., 0]                     # (B,3)

        d0, d1 = self.detector_shape
        u0, u1 = jnp.meshgrid(jnp.arange(d0, dtype=jnp.float32),
                              jnp.arange(d1, dtype=jnp.float32), indexing='ij')
        pix = jnp.stack([u0.ravel(), u1.ravel(),
                         jnp.ones(d0 * d1, jnp.float32)], 0)                    # (3,P)

        dirs = jnp.matmul(ray_mat, pix)                                         # (B,3,P)
        dirs_mm = dirs * self.voxel_size[None, :, None]
        norm = jnp.sqrt(jnp.sum(dirs_mm * dirs_mm, axis=1, keepdims=True))
        dirs_unit = dirs / norm            # voxel-coord displacement per mm of ray length

        # ray / volume-box intersection (box covers every voxel's nearest cell)
        eps = 1e-9
        d_safe = jnp.where(jnp.abs(dirs_unit) < eps,
                           jnp.where(dirs_unit >= 0, eps, -eps), dirs_unit)
        lo = jnp.full((3,), -0.5, jnp.float32)
        hi = jnp.asarray(self.volume_shape, jnp.float32) - 0.5
        src = source[..., None]                                                 # (B,3,1)
        t1 = (lo[None, :, None] - src) / d_safe
        t2 = (hi[None, :, None] - src) / d_safe
        t_near = jnp.maximum(jnp.max(jnp.minimum(t1, t2), axis=1), 0.0)         # (B,P)
        t_far = jnp.min(jnp.maximum(t1, t2), axis=1)                            # (B,P)
        hit = t_far >= t_near
        nvalid = jnp.where(hit,
                           jnp.floor((t_far - t_near) / self.step_size) + 1.0,
                           0.0)                                                 # (B,P)

        start = src + t_near[:, None, :] * dirs_unit                            # (B,3,P)
        dstep = dirs_unit * self.step_size                                      # (B,3,P)
        return start, dstep, nvalid

    def __call__(self, input_data, transform_param=None):
        B, C = input_data.shape[:2]
        X, Y, Z = self.volume_shape
        assert tuple(input_data.shape[2:]) == self.volume_shape, \
            'Input data shape does not match volume shape.'
        d0, d1 = self.detector_shape
        P = d0 * d1

        start, dstep, nvalid = self._ray_setup(B, transform_param)

        # ray table: rows = [start(3), dstep(3), nvalid, pad] with rays on lanes
        rays = jnp.concatenate(
            [start, dstep, nvalid[:, None, :],
             jnp.zeros_like(nvalid)[:, None, :]], axis=1).astype(jnp.float32)   # (B,8,P)

        # volume as (X, Y*Z) slab, bf16 for the MXU (one-hots are exact in bf16)
        vol2d = input_data.reshape(B, C, X, Y * Z).astype(jnp.bfloat16)

        TP, S = _choose_tiles(P, X, Y * Z)
        NT = P // TP
        # per (batch, detector-tile) loop bound: ceil(max valid steps / S)
        nv_cap = jnp.minimum(nvalid, float(self.n_steps))
        steps_tile = nv_cap.reshape(B, NT, TP).max(axis=-1)                     # (B,NT)
        ngroups = jnp.ceil(steps_tile / float(S)).astype(jnp.int32)             # (B,NT)

        scale = self.step_size / 10.0   # line-integral step weight + module's final /10
        return _drr_project_pallas(vol2d, rays, ngroups,
                                   det_shape=self.detector_shape,
                                   X=X, Y=Y, Z=Z, TP=TP, S=S, scale=scale,
                                   out_dtype=input_data.dtype)


# ----------------------------------------------------------------------------
# Pure-numpy reference with identical marching semantics (sanity check only)
# ----------------------------------------------------------------------------
def _reference_drr(proj, volume_np, transform_param):
    start, dstep, nvalid = proj._ray_setup(volume_np.shape[0], transform_param)
    start = np.asarray(start); dstep = np.asarray(dstep); nvalid = np.asarray(nvalid)
    vol = np.asarray(volume_np, np.float32)
    B, C = vol.shape[:2]
    X, Y, Z = proj.volume_shape
    d0, d1 = proj.detector_shape
    P = d0 * d1
    T = proj.n_steps
    i = np.arange(T, dtype=np.float32)
    out = np.zeros((B, C, P), np.float32)
    for b in range(B):
        pos = start[b][None] + i[:, None, None] * dstep[b][None]   # (T,3,P)
        idx = np.floor(pos + 0.5).astype(np.int32)
        ix, iy, iz = idx[:, 0], idx[:, 1], idx[:, 2]
        inb = (ix >= 0) & (ix < X) & (iy >= 0) & (iy < Y) & (iz >= 0) & (iz < Z)
        ok = inb & (i[:, None] < nvalid[b][None])
        ixc = np.clip(ix, 0, X - 1)
        iyc = np.clip(iy, 0, Y - 1)
        izc = np.clip(iz, 0, Z - 1)
        for c in range(C):
            vals = vol[b, c][ixc, iyc, izc]
            out[b, c] = (vals * ok).sum(0)
    return (out * (proj.step_size / 10.0)).reshape(B, C, d0, d1)


if __name__ == "__main__":
    key = jax.random.PRNGKey(0)
    k1, k2 = jax.random.split(key)

    B, C = 2, 2
    vol_shape = (16, 16, 16)      # (X, Y, Z)
    det_shape = (16, 16)          # d0*d1 = 256 -> one full 256-lane detector tile

    volume = jax.random.uniform(k1, (B, C) + vol_shape, dtype=jnp.float32)
    transform = 0.1 * jax.random.normal(k2, (B, 6), dtype=jnp.float32)

    projector = DRRProjectorPallas(
        mode='forward', volume_shape=vol_shape, detector_shape=det_shape,
        voxel_size=(1.0, 1.0, 1.0), pixel_size=(1.5, 1.5), step_size=0.5,
        source_to_detector_distance=1500.0, isocenter_distance=1000.0,
        interp='nearest')

    out = jax.block_until_ready(projector(volume, transform))

    assert out.shape == (B, C) + det_shape
    assert bool(jnp.all(jnp.isfinite(out)))

    # The kernel samples a bf16 copy of the volume on the MXU (one-hots are
    # exact in bf16), so compare against a reference built from the same
    # bf16-quantized volume; accumulation is f32 on both sides.
    vol_q = np.asarray(volume.astype(jnp.bfloat16).astype(jnp.float32))
    ref = _reference_drr(projector, vol_q, transform)
    np.testing.assert_allclose(np.asarray(out), ref, rtol=5e-3, atol=1e-4)

    print("KERNEL_OK")
</pallas_src>

<mosaic_0001>
module attributes {stable_mosaic.version = 11 : i64} {
  func.func @_drr_kernel(%arg0: i32, %arg1: i32, %arg2: i32, %arg3: memref<2x1xi32, #tpu.memory_space<smem>>, %arg4: memref<1x1x16x256xbf16, #tpu.memory_space<vmem>>, %arg5: memref<1x8x256xf32, #tpu.memory_space<vmem>>, %arg6: memref<1x1x1x256xf32, #tpu.memory_space<vmem>>) attributes {dimension_semantics = [#tpu.dimension_semantics<parallel>, #tpu.dimension_semantics<parallel>, #tpu.dimension_semantics<parallel>], iteration_bounds = array<i64: 2, 2, 1>, scalar_prefetch = 1 : i64, scratch_operands = 0 : i64, tpu.core_type = #tpu.core_type<tc>, window_params = [{transform_indices = @transform_0, window_bounds = array<i64: 1, 1, 16, 256>}, {transform_indices = @transform_1, window_bounds = array<i64: 1, 8, 256>}, {transform_indices = @transform_2, window_bounds = array<i64: 1, 1, 1, 256>}]} {
    %0 = arith.index_cast %arg0 : i32 to index
    %1 = arith.index_cast %arg2 : i32 to index
    %2 = memref.load %arg3[%0, %1] : memref<2x1xi32, #tpu.memory_space<smem>>
    %c0 = arith.constant 0 : index
    %c0_0 = arith.constant 0 : index
    %c0_1 = arith.constant 0 : index
    %c0_2 = arith.constant 0 : index
    %3 = vector.load %arg4[%c0, %c0_0, %c0_1, %c0_2] : memref<1x1x16x256xbf16, #tpu.memory_space<vmem>>, vector<1x1x16x256xbf16>
    %4 = vector.shape_cast %3 : vector<1x1x16x256xbf16> to vector<16x256xbf16>
    %c0_3 = arith.constant 0 : index
    %c0_4 = arith.constant 0 : index
    %c0_5 = arith.constant 0 : index
    %5 = vector.load %arg5[%c0_3, %c0_4, %c0_5] : memref<1x8x256xf32, #tpu.memory_space<vmem>>, vector<1x8x256xf32>
    %6 = vector.shape_cast %5 : vector<1x8x256xf32> to vector<8x256xf32>
    %7 = vector.extract_strided_slice %6 {offsets = [0, 0], sizes = [1, 256], strides = [1, 1]} : vector<8x256xf32> to vector<1x256xf32>
    %8 = vector.extract_strided_slice %6 {offsets = [1, 0], sizes = [1, 256], strides = [1, 1]} : vector<8x256xf32> to vector<1x256xf32>
    %9 = vector.extract_strided_slice %6 {offsets = [2, 0], sizes = [1, 256], strides = [1, 1]} : vector<8x256xf32> to vector<1x256xf32>
    %10 = vector.extract_strided_slice %6 {offsets = [3, 0], sizes = [1, 256], strides = [1, 1]} : vector<8x256xf32> to vector<1x256xf32>
    %11 = vector.extract_strided_slice %6 {offsets = [4, 0], sizes = [1, 256], strides = [1, 1]} : vector<8x256xf32> to vector<1x256xf32>
    %12 = vector.extract_strided_slice %6 {offsets = [5, 0], sizes = [1, 256], strides = [1, 1]} : vector<8x256xf32> to vector<1x256xf32>
    %13 = vector.extract_strided_slice %6 {offsets = [6, 0], sizes = [1, 256], strides = [1, 1]} : vector<8x256xf32> to vector<1x256xf32>
    %cst = arith.constant 0.000000e+00 : f32
    %14 = vector.broadcast %cst : f32 to vector<1x256xf32>
    %c0_i32 = arith.constant 0 : i32
    %15 = arith.subi %2, %c0_i32 : i32
    %16 = arith.addi %c0_i32, %15 : i32
    %c1_i32 = arith.constant 1 : i32
    %17 = scf.for %arg7 = %c0_i32 to %16 step %c1_i32 iter_args(%arg8 = %14) -> (vector<1x256xf32>)  : i32 {
      %c8_i32 = arith.constant 8 : i32
      %23 = arith.muli %arg7, %c8_i32 : i32
      %24 = arith.sitofp %23 : i32 to f32
      %cst_11 = arith.constant 0.000000e+00 : f32
      %25 = arith.addf %24, %cst_11 : f32
      %26 = vector.broadcast %25 : f32 to vector<1x256xf32>
      %27 = arith.mulf %26, %10 : vector<1x256xf32>
      %28 = arith.addf %7, %27 : vector<1x256xf32>
      %29 = vector.broadcast %25 : f32 to vector<1x256xf32>
      %30 = arith.mulf %29, %11 : vector<1x256xf32>
      %31 = arith.addf %8, %30 : vector<1x256xf32>
      %32 = vector.broadcast %25 : f32 to vector<1x256xf32>
      %33 = arith.mulf %32, %12 : vector<1x256xf32>
      %34 = arith.addf %9, %33 : vector<1x256xf32>
      %cst_12 = arith.constant 5.000000e-01 : f32
      %35 = vector.broadcast %cst_12 : f32 to vector<1x256xf32>
      %36 = arith.addf %28, %35 : vector<1x256xf32>
      %37 = math.floor %36 : vector<1x256xf32>
      %38 = arith.fptosi %37 : vector<1x256xf32> to vector<1x256xi32>
      %cst_13 = arith.constant 5.000000e-01 : f32
      %39 = vector.broadcast %cst_13 : f32 to vector<1x256xf32>
      %40 = arith.addf %31, %39 : vector<1x256xf32>
      %41 = math.floor %40 : vector<1x256xf32>
      %42 = arith.fptosi %41 : vector<1x256xf32> to vector<1x256xi32>
      %cst_14 = arith.constant 5.000000e-01 : f32
      %43 = vector.broadcast %cst_14 : f32 to vector<1x256xf32>
      %44 = arith.addf %34, %43 : vector<1x256xf32>
      %45 = math.floor %44 : vector<1x256xf32>
      %46 = arith.fptosi %45 : vector<1x256xf32> to vector<1x256xi32>
      %c0_i32_15 = arith.constant 0 : i32
      %47 = vector.broadcast %c0_i32_15 : i32 to vector<1x256xi32>
      %48 = arith.cmpi sge, %42, %47 : vector<1x256xi32>
      %c16_i32 = arith.constant 16 : i32
      %49 = vector.broadcast %c16_i32 : i32 to vector<1x256xi32>
      %50 = arith.cmpi slt, %42, %49 : vector<1x256xi32>
      %51 = arith.andi %48, %50 : vector<1x256xi1>
      %c0_i32_16 = arith.constant 0 : i32
      %52 = vector.broadcast %c0_i32_16 : i32 to vector<1x256xi32>
      %53 = arith.cmpi sge, %46, %52 : vector<1x256xi32>
      %54 = arith.andi %51, %53 : vector<1x256xi1>
      %c16_i32_17 = arith.constant 16 : i32
      %55 = vector.broadcast %c16_i32_17 : i32 to vector<1x256xi32>
      %56 = arith.cmpi slt, %46, %55 : vector<1x256xi32>
      %57 = arith.andi %54, %56 : vector<1x256xi1>
      %58 = vector.broadcast %25 : f32 to vector<1x256xf32>
      %59 = arith.cmpf olt, %58, %13 : vector<1x256xf32>
      %60 = arith.andi %57, %59 : vector<1x256xi1>
      %c-1_i32 = arith.constant -1 : i32
      %61 = vector.broadcast %c-1_i32 : i32 to vector<1x256xi32>
      %62 = arith.select %60, %38, %61 : vector<1x256xi1>, vector<1x256xi32>
      %c16_i32_18 = arith.constant 16 : i32
      %63 = vector.broadcast %c16_i32_18 : i32 to vector<1x256xi32>
      %64 = arith.muli %42, %63 : vector<1x256xi32>
      %65 = arith.addi %64, %46 : vector<1x256xi32>
      %cst_19 = arith.constant 1.000000e+00 : f32
      %66 = arith.addf %24, %cst_19 : f32
      %67 = vector.broadcast %66 : f32 to vector<1x256xf32>
      %68 = arith.mulf %67, %10 : vector<1x256xf32>
      %69 = arith.addf %7, %68 : vector<1x256xf32>
      %70 = vector.broadcast %66 : f32 to vector<1x256xf32>
      %71 = arith.mulf %70, %11 : vector<1x256xf32>
      %72 = arith.addf %8, %71 : vector<1x256xf32>
      %73 = vector.broadcast %66 : f32 to vector<1x256xf32>
      %74 = arith.mulf %73, %12 : vector<1x256xf32>
      %75 = arith.addf %9, %74 : vector<1x256xf32>
      %cst_20 = arith.constant 5.000000e-01 : f32
      %76 = vector.broadcast %cst_20 : f32 to vector<1x256xf32>
      %77 = arith.addf %69, %76 : vector<1x256xf32>
      %78 = math.floor %77 : vector<1x256xf32>
      %79 = arith.fptosi %78 : vector<1x256xf32> to vector<1x256xi32>
      %cst_21 = arith.constant 5.000000e-01 : f32
      %80 = vector.broadcast %cst_21 : f32 to vector<1x256xf32>
      %81 = arith.addf %72, %80 : vector<1x256xf32>
      %82 = math.floor %81 : vector<1x256xf32>
      %83 = arith.fptosi %82 : vector<1x256xf32> to vector<1x256xi32>
      %cst_22 = arith.constant 5.000000e-01 : f32
      %84 = vector.broadcast %cst_22 : f32 to vector<1x256xf32>
      %85 = arith.addf %75, %84 : vector<1x256xf32>
      %86 = math.floor %85 : vector<1x256xf32>
      %87 = arith.fptosi %86 : vector<1x256xf32> to vector<1x256xi32>
      %c0_i32_23 = arith.constant 0 : i32
      %88 = vector.broadcast %c0_i32_23 : i32 to vector<1x256xi32>
      %89 = arith.cmpi sge, %83, %88 : vector<1x256xi32>
      %c16_i32_24 = arith.constant 16 : i32
      %90 = vector.broadcast %c16_i32_24 : i32 to vector<1x256xi32>
      %91 = arith.cmpi slt, %83, %90 : vector<1x256xi32>
      %92 = arith.andi %89, %91 : vector<1x256xi1>
      %c0_i32_25 = arith.constant 0 : i32
      %93 = vector.broadcast %c0_i32_25 : i32 to vector<1x256xi32>
      %94 = arith.cmpi sge, %87, %93 : vector<1x256xi32>
      %95 = arith.andi %92, %94 : vector<1x256xi1>
      %c16_i32_26 = arith.constant 16 : i32
      %96 = vector.broadcast %c16_i32_26 : i32 to vector<1x256xi32>
      %97 = arith.cmpi slt, %87, %96 : vector<1x256xi32>
      %98 = arith.andi %95, %97 : vector<1x256xi1>
      %99 = vector.broadcast %66 : f32 to vector<1x256xf32>
      %100 = arith.cmpf olt, %99, %13 : vector<1x256xf32>
      %101 = arith.andi %98, %100 : vector<1x256xi1>
      %c-1_i32_27 = arith.constant -1 : i32
      %102 = vector.broadcast %c-1_i32_27 : i32 to vector<1x256xi32>
      %103 = arith.select %101, %79, %102 : vector<1x256xi1>, vector<1x256xi32>
      %c16_i32_28 = arith.constant 16 : i32
      %104 = vector.broadcast %c16_i32_28 : i32 to vector<1x256xi32>
      %105 = arith.muli %83, %104 : vector<1x256xi32>
      %106 = arith.addi %105, %87 : vector<1x256xi32>
      %cst_29 = arith.constant 2.000000e+00 : f32
      %107 = arith.addf %24, %cst_29 : f32
      %108 = vector.broadcast %107 : f32 to vector<1x256xf32>
      %109 = arith.mulf %108, %10 : vector<1x256xf32>
      %110 = arith.addf %7, %109 : vector<1x256xf32>
      %111 = vector.broadcast %107 : f32 to vector<1x256xf32>
      %112 = arith.mulf %111, %11 : vector<1x256xf32>
      %113 = arith.addf %8, %112 : vector<1x256xf32>
      %114 = vector.broadcast %107 : f32 to vector<1x256xf32>
      %115 = arith.mulf %114, %12 : vector<1x256xf32>
      %116 = arith.addf %9, %115 : vector<1x256xf32>
      %cst_30 = arith.constant 5.000000e-01 : f32
      %117 = vector.broadcast %cst_30 : f32 to vector<1x256xf32>
      %118 = arith.addf %110, %117 : vector<1x256xf32>
      %119 = math.floor %118 : vector<1x256xf32>
      %120 = arith.fptosi %119 : vector<1x256xf32> to vector<1x256xi32>
      %cst_31 = arith.constant 5.000000e-01 : f32
      %121 = vector.broadcast %cst_31 : f32 to vector<1x256xf32>
      %122 = arith.addf %113, %121 : vector<1x256xf32>
      %123 = math.floor %122 : vector<1x256xf32>
      %124 = arith.fptosi %123 : vector<1x256xf32> to vector<1x256xi32>
      %cst_32 = arith.constant 5.000000e-01 : f32
      %125 = vector.broadcast %cst_32 : f32 to vector<1x256xf32>
      %126 = arith.addf %116, %125 : vector<1x256xf32>
      %127 = math.floor %126 : vector<1x256xf32>
      %128 = arith.fptosi %127 : vector<1x256xf32> to vector<1x256xi32>
      %c0_i32_33 = arith.constant 0 : i32
      %129 = vector.broadcast %c0_i32_33 : i32 to vector<1x256xi32>
      %130 = arith.cmpi sge, %124, %129 : vector<1x256xi32>
      %c16_i32_34 = arith.constant 16 : i32
      %131 = vector.broadcast %c16_i32_34 : i32 to vector<1x256xi32>
      %132 = arith.cmpi slt, %124, %131 : vector<1x256xi32>
      %133 = arith.andi %130, %132 : vector<1x256xi1>
      %c0_i32_35 = arith.constant 0 : i32
      %134 = vector.broadcast %c0_i32_35 : i32 to vector<1x256xi32>
      %135 = arith.cmpi sge, %128, %134 : vector<1x256xi32>
      %136 = arith.andi %133, %135 : vector<1x256xi1>
      %c16_i32_36 = arith.constant 16 : i32
      %137 = vector.broadcast %c16_i32_36 : i32 to vector<1x256xi32>
      %138 = arith.cmpi slt, %128, %137 : vector<1x256xi32>
      %139 = arith.andi %136, %138 : vector<1x256xi1>
      %140 = vector.broadcast %107 : f32 to vector<1x256xf32>
      %141 = arith.cmpf olt, %140, %13 : vector<1x256xf32>
      %142 = arith.andi %139, %141 : vector<1x256xi1>
      %c-1_i32_37 = arith.constant -1 : i32
      %143 = vector.broadcast %c-1_i32_37 : i32 to vector<1x256xi32>
      %144 = arith.select %142, %120, %143 : vector<1x256xi1>, vector<1x256xi32>
      %c16_i32_38 = arith.constant 16 : i32
      %145 = vector.broadcast %c16_i32_38 : i32 to vector<1x256xi32>
      %146 = arith.muli %124, %145 : vector<1x256xi32>
      %147 = arith.addi %146, %128 : vector<1x256xi32>
      %cst_39 = arith.constant 3.000000e+00 : f32
      %148 = arith.addf %24, %cst_39 : f32
      %149 = vector.broadcast %148 : f32 to vector<1x256xf32>
      %150 = arith.mulf %149, %10 : vector<1x256xf32>
      %151 = arith.addf %7, %150 : vector<1x256xf32>
      %152 = vector.broadcast %148 : f32 to vector<1x256xf32>
      %153 = arith.mulf %152, %11 : vector<1x256xf32>
      %154 = arith.addf %8, %153 : vector<1x256xf32>
      %155 = vector.broadcast %148 : f32 to vector<1x256xf32>
      %156 = arith.mulf %155, %12 : vector<1x256xf32>
      %157 = arith.addf %9, %156 : vector<1x256xf32>
      %cst_40 = arith.constant 5.000000e-01 : f32
      %158 = vector.broadcast %cst_40 : f32 to vector<1x256xf32>
      %159 = arith.addf %151, %158 : vector<1x256xf32>
      %160 = math.floor %159 : vector<1x256xf32>
      %161 = arith.fptosi %160 : vector<1x256xf32> to vector<1x256xi32>
      %cst_41 = arith.constant 5.000000e-01 : f32
      %162 = vector.broadcast %cst_41 : f32 to vector<1x256xf32>
      %163 = arith.addf %154, %162 : vector<1x256xf32>
      %164 = math.floor %163 : vector<1x256xf32>
      %165 = arith.fptosi %164 : vector<1x256xf32> to vector<1x256xi32>
      %cst_42 = arith.constant 5.000000e-01 : f32
      %166 = vector.broadcast %cst_42 : f32 to vector<1x256xf32>
      %167 = arith.addf %157, %166 : vector<1x256xf32>
      %168 = math.floor %167 : vector<1x256xf32>
      %169 = arith.fptosi %168 : vector<1x256xf32> to vector<1x256xi32>
      %c0_i32_43 = arith.constant 0 : i32
      %170 = vector.broadcast %c0_i32_43 : i32 to vector<1x256xi32>
      %171 = arith.cmpi sge, %165, %170 : vector<1x256xi32>
      %c16_i32_44 = arith.constant 16 : i32
      %172 = vector.broadcast %c16_i32_44 : i32 to vector<1x256xi32>
      %173 = arith.cmpi slt, %165, %172 : vector<1x256xi32>
      %174 = arith.andi %171, %173 : vector<1x256xi1>
      %c0_i32_45 = arith.constant 0 : i32
      %175 = vector.broadcast %c0_i32_45 : i32 to vector<1x256xi32>
      %176 = arith.cmpi sge, %169, %175 : vector<1x256xi32>
      %177 = arith.andi %174, %176 : vector<1x256xi1>
      %c16_i32_46 = arith.constant 16 : i32
      %178 = vector.broadcast %c16_i32_46 : i32 to vector<1x256xi32>
      %179 = arith.cmpi slt, %169, %178 : vector<1x256xi32>
      %180 = arith.andi %177, %179 : vector<1x256xi1>
      %181 = vector.broadcast %148 : f32 to vector<1x256xf32>
      %182 = arith.cmpf olt, %181, %13 : vector<1x256xf32>
      %183 = arith.andi %180, %182 : vector<1x256xi1>
      %c-1_i32_47 = arith.constant -1 : i32
      %184 = vector.broadcast %c-1_i32_47 : i32 to vector<1x256xi32>
      %185 = arith.select %183, %161, %184 : vector<1x256xi1>, vector<1x256xi32>
      %c16_i32_48 = arith.constant 16 : i32
      %186 = vector.broadcast %c16_i32_48 : i32 to vector<1x256xi32>
      %187 = arith.muli %165, %186 : vector<1x256xi32>
      %188 = arith.addi %187, %169 : vector<1x256xi32>
      %cst_49 = arith.constant 4.000000e+00 : f32
      %189 = arith.addf %24, %cst_49 : f32
      %190 = vector.broadcast %189 : f32 to vector<1x256xf32>
      %191 = arith.mulf %190, %10 : vector<1x256xf32>
      %192 = arith.addf %7, %191 : vector<1x256xf32>
      %193 = vector.broadcast %189 : f32 to vector<1x256xf32>
      %194 = arith.mulf %193, %11 : vector<1x256xf32>
      %195 = arith.addf %8, %194 : vector<1x256xf32>
      %196 = vector.broadcast %189 : f32 to vector<1x256xf32>
      %197 = arith.mulf %196, %12 : vector<1x256xf32>
      %198 = arith.addf %9, %197 : vector<1x256xf32>
      %cst_50 = arith.constant 5.000000e-01 : f32
      %199 = vector.broadcast %cst_50 : f32 to vector<1x256xf32>
      %200 = arith.addf %192, %199 : vector<1x256xf32>
      %201 = math.floor %200 : vector<1x256xf32>
      %202 = arith.fptosi %201 : vector<1x256xf32> to vector<1x256xi32>
      %cst_51 = arith.constant 5.000000e-01 : f32
      %203 = vector.broadcast %cst_51 : f32 to vector<1x256xf32>
      %204 = arith.addf %195, %203 : vector<1x256xf32>
      %205 = math.floor %204 : vector<1x256xf32>
      %206 = arith.fptosi %205 : vector<1x256xf32> to vector<1x256xi32>
      %cst_52 = arith.constant 5.000000e-01 : f32
      %207 = vector.broadcast %cst_52 : f32 to vector<1x256xf32>
      %208 = arith.addf %198, %207 : vector<1x256xf32>
      %209 = math.floor %208 : vector<1x256xf32>
      %210 = arith.fptosi %209 : vector<1x256xf32> to vector<1x256xi32>
      %c0_i32_53 = arith.constant 0 : i32
      %211 = vector.broadcast %c0_i32_53 : i32 to vector<1x256xi32>
      %212 = arith.cmpi sge, %206, %211 : vector<1x256xi32>
      %c16_i32_54 = arith.constant 16 : i32
      %213 = vector.broadcast %c16_i32_54 : i32 to vector<1x256xi32>
      %214 = arith.cmpi slt, %206, %213 : vector<1x256xi32>
      %215 = arith.andi %212, %214 : vector<1x256xi1>
      %c0_i32_55 = arith.constant 0 : i32
      %216 = vector.broadcast %c0_i32_55 : i32 to vector<1x256xi32>
      %217 = arith.cmpi sge, %210, %216 : vector<1x256xi32>
      %218 = arith.andi %215, %217 : vector<1x256xi1>
      %c16_i32_56 = arith.constant 16 : i32
      %219 = vector.broadcast %c16_i32_56 : i32 to vector<1x256xi32>
      %220 = arith.cmpi slt, %210, %219 : vector<1x256xi32>
      %221 = arith.andi %218, %220 : vector<1x256xi1>
      %222 = vector.broadcast %189 : f32 to vector<1x256xf32>
      %223 = arith.cmpf olt, %222, %13 : vector<1x256xf32>
      %224 = arith.andi %221, %223 : vector<1x256xi1>
      %c-1_i32_57 = arith.constant -1 : i32
      %225 = vector.broadcast %c-1_i32_57 : i32 to vector<1x256xi32>
      %226 = arith.select %224, %202, %225 : vector<1x256xi1>, vector<1x256xi32>
      %c16_i32_58 = arith.constant 16 : i32
      %227 = vector.broadcast %c16_i32_58 : i32 to vector<1x256xi32>
      %228 = arith.muli %206, %227 : vector<1x256xi32>
      %229 = arith.addi %228, %210 : vector<1x256xi32>
      %cst_59 = arith.constant 5.000000e+00 : f32
      %230 = arith.addf %24, %cst_59 : f32
      %231 = vector.broadcast %230 : f32 to vector<1x256xf32>
      %232 = arith.mulf %231, %10 : vector<1x256xf32>
      %233 = arith.addf %7, %232 : vector<1x256xf32>
      %234 = vector.broadcast %230 : f32 to vector<1x256xf32>
      %235 = arith.mulf %234, %11 : vector<1x256xf32>
      %236 = arith.addf %8, %235 : vector<1x256xf32>
      %237 = vector.broadcast %230 : f32 to vector<1x256xf32>
      %238 = arith.mulf %237, %12 : vector<1x256xf32>
      %239 = arith.addf %9, %238 : vector<1x256xf32>
      %cst_60 = arith.constant 5.000000e-01 : f32
      %240 = vector.broadcast %cst_60 : f32 to vector<1x256xf32>
      %241 = arith.addf %233, %240 : vector<1x256xf32>
      %242 = math.floor %241 : vector<1x256xf32>
      %243 = arith.fptosi %242 : vector<1x256xf32> to vector<1x256xi32>
      %cst_61 = arith.constant 5.000000e-01 : f32
      %244 = vector.broadcast %cst_61 : f32 to vector<1x256xf32>
      %245 = arith.addf %236, %244 : vector<1x256xf32>
      %246 = math.floor %245 : vector<1x256xf32>
      %247 = arith.fptosi %246 : vector<1x256xf32> to vector<1x256xi32>
      %cst_62 = arith.constant 5.000000e-01 : f32
      %248 = vector.broadcast %cst_62 : f32 to vector<1x256xf32>
      %249 = arith.addf %239, %248 : vector<1x256xf32>
      %250 = math.floor %249 : vector<1x256xf32>
      %251 = arith.fptosi %250 : vector<1x256xf32> to vector<1x256xi32>
      %c0_i32_63 = arith.constant 0 : i32
      %252 = vector.broadcast %c0_i32_63 : i32 to vector<1x256xi32>
      %253 = arith.cmpi sge, %247, %252 : vector<1x256xi32>
      %c16_i32_64 = arith.constant 16 : i32
      %254 = vector.broadcast %c16_i32_64 : i32 to vector<1x256xi32>
      %255 = arith.cmpi slt, %247, %254 : vector<1x256xi32>
      %256 = arith.andi %253, %255 : vector<1x256xi1>
      %c0_i32_65 = arith.constant 0 : i32
      %257 = vector.broadcast %c0_i32_65 : i32 to vector<1x256xi32>
      %258 = arith.cmpi sge, %251, %257 : vector<1x256xi32>
      %259 = arith.andi %256, %258 : vector<1x256xi1>
      %c16_i32_66 = arith.constant 16 : i32
      %260 = vector.broadcast %c16_i32_66 : i32 to vector<1x256xi32>
      %261 = arith.cmpi slt, %251, %260 : vector<1x256xi32>
      %262 = arith.andi %259, %261 : vector<1x256xi1>
      %263 = vector.broadcast %230 : f32 to vector<1x256xf32>
      %264 = arith.cmpf olt, %263, %13 : vector<1x256xf32>
      %265 = arith.andi %262, %264 : vector<1x256xi1>
      %c-1_i32_67 = arith.constant -1 : i32
      %266 = vector.broadcast %c-1_i32_67 : i32 to vector<1x256xi32>
      %267 = arith.select %265, %243, %266 : vector<1x256xi1>, vector<1x256xi32>
      %c16_i32_68 = arith.constant 16 : i32
      %268 = vector.broadcast %c16_i32_68 : i32 to vector<1x256xi32>
      %269 = arith.muli %247, %268 : vector<1x256xi32>
      %270 = arith.addi %269, %251 : vector<1x256xi32>
      %cst_69 = arith.constant 6.000000e+00 : f32
      %271 = arith.addf %24, %cst_69 : f32
      %272 = vector.broadcast %271 : f32 to vector<1x256xf32>
      %273 = arith.mulf %272, %10 : vector<1x256xf32>
      %274 = arith.addf %7, %273 : vector<1x256xf32>
      %275 = vector.broadcast %271 : f32 to vector<1x256xf32>
      %276 = arith.mulf %275, %11 : vector<1x256xf32>
      %277 = arith.addf %8, %276 : vector<1x256xf32>
      %278 = vector.broadcast %271 : f32 to vector<1x256xf32>
      %279 = arith.mulf %278, %12 : vector<1x256xf32>
      %280 = arith.addf %9, %279 : vector<1x256xf32>
      %cst_70 = arith.constant 5.000000e-01 : f32
      %281 = vector.broadcast %cst_70 : f32 to vector<1x256xf32>
      %282 = arith.addf %274, %281 : vector<1x256xf32>
      %283 = math.floor %282 : vector<1x256xf32>
      %284 = arith.fptosi %283 : vector<1x256xf32> to vector<1x256xi32>
      %cst_71 = arith.constant 5.000000e-01 : f32
      %285 = vector.broadcast %cst_71 : f32 to vector<1x256xf32>
      %286 = arith.addf %277, %285 : vector<1x256xf32>
      %287 = math.floor %286 : vector<1x256xf32>
      %288 = arith.fptosi %287 : vector<1x256xf32> to vector<1x256xi32>
      %cst_72 = arith.constant 5.000000e-01 : f32
      %289 = vector.broadcast %cst_72 : f32 to vector<1x256xf32>
      %290 = arith.addf %280, %289 : vector<1x256xf32>
      %291 = math.floor %290 : vector<1x256xf32>
      %292 = arith.fptosi %291 : vector<1x256xf32> to vector<1x256xi32>
      %c0_i32_73 = arith.constant 0 : i32
      %293 = vector.broadcast %c0_i32_73 : i32 to vector<1x256xi32>
      %294 = arith.cmpi sge, %288, %293 : vector<1x256xi32>
      %c16_i32_74 = arith.constant 16 : i32
      %295 = vector.broadcast %c16_i32_74 : i32 to vector<1x256xi32>
      %296 = arith.cmpi slt, %288, %295 : vector<1x256xi32>
      %297 = arith.andi %294, %296 : vector<1x256xi1>
      %c0_i32_75 = arith.constant 0 : i32
      %298 = vector.broadcast %c0_i32_75 : i32 to vector<1x256xi32>
      %299 = arith.cmpi sge, %292, %298 : vector<1x256xi32>
      %300 = arith.andi %297, %299 : vector<1x256xi1>
      %c16_i32_76 = arith.constant 16 : i32
      %301 = vector.broadcast %c16_i32_76 : i32 to vector<1x256xi32>
      %302 = arith.cmpi slt, %292, %301 : vector<1x256xi32>
      %303 = arith.andi %300, %302 : vector<1x256xi1>
      %304 = vector.broadcast %271 : f32 to vector<1x256xf32>
      %305 = arith.cmpf olt, %304, %13 : vector<1x256xf32>
      %306 = arith.andi %303, %305 : vector<1x256xi1>
      %c-1_i32_77 = arith.constant -1 : i32
      %307 = vector.broadcast %c-1_i32_77 : i32 to vector<1x256xi32>
      %308 = arith.select %306, %284, %307 : vector<1x256xi1>, vector<1x256xi32>
      %c16_i32_78 = arith.constant 16 : i32
      %309 = vector.broadcast %c16_i32_78 : i32 to vector<1x256xi32>
      %310 = arith.muli %288, %309 : vector<1x256xi32>
      %311 = arith.addi %310, %292 : vector<1x256xi32>
      %cst_79 = arith.constant 7.000000e+00 : f32
      %312 = arith.addf %24, %cst_79 : f32
      %313 = vector.broadcast %312 : f32 to vector<1x256xf32>
      %314 = arith.mulf %313, %10 : vector<1x256xf32>
      %315 = arith.addf %7, %314 : vector<1x256xf32>
      %316 = vector.broadcast %312 : f32 to vector<1x256xf32>
      %317 = arith.mulf %316, %11 : vector<1x256xf32>
      %318 = arith.addf %8, %317 : vector<1x256xf32>
      %319 = vector.broadcast %312 : f32 to vector<1x256xf32>
      %320 = arith.mulf %319, %12 : vector<1x256xf32>
      %321 = arith.addf %9, %320 : vector<1x256xf32>
      %cst_80 = arith.constant 5.000000e-01 : f32
      %322 = vector.broadcast %cst_80 : f32 to vector<1x256xf32>
      %323 = arith.addf %315, %322 : vector<1x256xf32>
      %324 = math.floor %323 : vector<1x256xf32>
      %325 = arith.fptosi %324 : vector<1x256xf32> to vector<1x256xi32>
      %cst_81 = arith.constant 5.000000e-01 : f32
      %326 = vector.broadcast %cst_81 : f32 to vector<1x256xf32>
      %327 = arith.addf %318, %326 : vector<1x256xf32>
      %328 = math.floor %327 : vector<1x256xf32>
      %329 = arith.fptosi %328 : vector<1x256xf32> to vector<1x256xi32>
      %cst_82 = arith.constant 5.000000e-01 : f32
      %330 = vector.broadcast %cst_82 : f32 to vector<1x256xf32>
      %331 = arith.addf %321, %330 : vector<1x256xf32>
      %332 = math.floor %331 : vector<1x256xf32>
      %333 = arith.fptosi %332 : vector<1x256xf32> to vector<1x256xi32>
      %c0_i32_83 = arith.constant 0 : i32
      %334 = vector.broadcast %c0_i32_83 : i32 to vector<1x256xi32>
      %335 = arith.cmpi sge, %329, %334 : vector<1x256xi32>
      %c16_i32_84 = arith.constant 16 : i32
      %336 = vector.broadcast %c16_i32_84 : i32 to vector<1x256xi32>
      %337 = arith.cmpi slt, %329, %336 : vector<1x256xi32>
      %338 = arith.andi %335, %337 : vector<1x256xi1>
      %c0_i32_85 = arith.constant 0 : i32
      %339 = vector.broadcast %c0_i32_85 : i32 to vector<1x256xi32>
      %340 = arith.cmpi sge, %333, %339 : vector<1x256xi32>
      %341 = arith.andi %338, %340 : vector<1x256xi1>
      %c16_i32_86 = arith.constant 16 : i32
      %342 = vector.broadcast %c16_i32_86 : i32 to vector<1x256xi32>
      %343 = arith.cmpi slt, %333, %342 : vector<1x256xi32>
      %344 = arith.andi %341, %343 : vector<1x256xi1>
      %345 = vector.broadcast %312 : f32 to vector<1x256xf32>
      %346 = arith.cmpf olt, %345, %13 : vector<1x256xf32>
      %347 = arith.andi %344, %346 : vector<1x256xi1>
      %c-1_i32_87 = arith.constant -1 : i32
      %348 = vector.broadcast %c-1_i32_87 : i32 to vector<1x256xi32>
      %349 = arith.select %347, %325, %348 : vector<1x256xi1>, vector<1x256xi32>
      %c16_i32_88 = arith.constant 16 : i32
      %350 = vector.broadcast %c16_i32_88 : i32 to vector<1x256xi32>
      %351 = arith.muli %329, %350 : vector<1x256xi32>
      %352 = arith.addi %351, %333 : vector<1x256xi32>
      %353 = tpu.concatenate %65, %106, %147, %188, %229, %270, %311, %352 in 1 : vector<1x256xi32>, vector<1x256xi32>, vector<1x256xi32>, vector<1x256xi32>, vector<1x256xi32>, vector<1x256xi32>, vector<1x256xi32>, vector<1x256xi32> -> vector<1x2048xi32>
      %354 = tpu.concatenate %62, %103, %144, %185, %226, %267, %308, %349 in 1 : vector<1x256xi32>, vector<1x256xi32>, vector<1x256xi32>, vector<1x256xi32>, vector<1x256xi32>, vector<1x256xi32>, vector<1x256xi32>, vector<1x256xi32> -> vector<1x2048xi32>
      %355 = tpu.iota {dimensions = array<i32: 0>} : vector<256x2048xi32>
      %356 = vector.broadcast %353 : vector<1x2048xi32> to vector<256x2048xi32>
      %357 = arith.cmpi eq, %355, %356 : vector<256x2048xi32>
      %358 = arith.extui %357 : vector<256x2048xi1> to vector<256x2048xi32>
      %359 = arith.sitofp %358 : vector<256x2048xi32> to vector<256x2048xf32>
      %360 = arith.truncf %359 : vector<256x2048xf32> to vector<256x2048xbf16>
      %cst_89 = arith.constant dense<0.000000e+00> : vector<16x2048xf32>
      %361 = tpu.matmul %4, %360, %cst_89 {dimension_numbers = #tpu.dot_dimension_numbers<[1], [0], [0], [1], [0, 0, 1, 1], [], []>} : vector<16x256xbf16>, vector<256x2048xbf16>, vector<16x2048xf32> -> vector<16x2048xf32>
      %362 = tpu.iota {dimensions = array<i32: 0>} : vector<16x2048xi32>
      %363 = vector.broadcast %354 : vector<1x2048xi32> to vector<16x2048xi32>
      %364 = arith.cmpi eq, %362, %363 : vector<16x2048xi32>
      %365 = arith.extui %364 : vector<16x2048xi1> to vector<16x2048xi32>
      %366 = arith.sitofp %365 : vector<16x2048xi32> to vector<16x2048xf32>
      %367 = arith.mulf %361, %366 : vector<16x2048xf32>
      %cst_90 = arith.constant dense<0.000000e+00> : vector<2048xf32>
      %368 = vector.multi_reduction <add>, %367, %cst_90 [0] : vector<16x2048xf32> to vector<2048xf32>
      %369 = vector.shape_cast %368 : vector<2048xf32> to vector<1x2048xf32>
      %370 = vector.extract_strided_slice %369 {offsets = [0, 0], sizes = [1, 256], strides = [1, 1]} : vector<1x2048xf32> to vector<1x256xf32>
      %371 = vector.extract_strided_slice %369 {offsets = [0, 256], sizes = [1, 256], strides = [1, 1]} : vector<1x2048xf32> to vector<1x256xf32>
      %372 = arith.addf %370, %371 : vector<1x256xf32>
      %373 = vector.extract_strided_slice %369 {offsets = [0, 512], sizes = [1, 256], strides = [1, 1]} : vector<1x2048xf32> to vector<1x256xf32>
      %374 = arith.addf %372, %373 : vector<1x256xf32>
      %375 = vector.extract_strided_slice %369 {offsets = [0, 768], sizes = [1, 256], strides = [1, 1]} : vector<1x2048xf32> to vector<1x256xf32>
      %376 = arith.addf %374, %375 : vector<1x256xf32>
      %377 = vector.extract_strided_slice %369 {offsets = [0, 1024], sizes = [1, 256], strides = [1, 1]} : vector<1x2048xf32> to vector<1x256xf32>
      %378 = arith.addf %376, %377 : vector<1x256xf32>
      %379 = vector.extract_strided_slice %369 {offsets = [0, 1280], sizes = [1, 256], strides = [1, 1]} : vector<1x2048xf32> to vector<1x256xf32>
      %380 = arith.addf %378, %379 : vector<1x256xf32>
      %381 = vector.extract_strided_slice %369 {offsets = [0, 1536], sizes = [1, 256], strides = [1, 1]} : vector<1x2048xf32> to vector<1x256xf32>
      %382 = arith.addf %380, %381 : vector<1x256xf32>
      %383 = vector.extract_strided_slice %369 {offsets = [0, 1792], sizes = [1, 256], strides = [1, 1]} : vector<1x2048xf32> to vector<1x256xf32>
      %384 = arith.addf %382, %383 : vector<1x256xf32>
      %385 = arith.addf %arg8, %384 : vector<1x256xf32>
      scf.yield %385 : vector<1x256xf32>
    }
    %cst_6 = arith.constant 5.000000e-02 : f32
    %18 = vector.broadcast %cst_6 : f32 to vector<1x256xf32>
    %19 = arith.mulf %17, %18 : vector<1x256xf32>
    %c0_7 = arith.constant 0 : index
    %c0_8 = arith.constant 0 : index
    %c0_9 = arith.constant 0 : index
    %c0_10 = arith.constant 0 : index
    %20 = vector.load %arg6[%c0_7, %c0_8, %c0_9, %c0_10] : memref<1x1x1x256xf32, #tpu.memory_space<vmem>>, vector<1x1x1x256xf32>
    %21 = vector.shape_cast %20 : vector<1x1x1x256xf32> to vector<1x256xf32>
    %22 = vector.shape_cast %19 : vector<1x256xf32> to vector<1x1x1x256xf32>
    tpu.vector_store %arg6[%c0_7, %c0_8, %c0_9, %c0_10], %22 {strides = array<i32>} : memref<1x1x1x256xf32, #tpu.memory_space<vmem>>, vector<1x1x1x256xf32>,
    return
  }
  func.func @transform_0(%arg0: i32, %arg1: i32, %arg2: i32, %arg3: memref<2x1xi32, #tpu.memory_space<smem>>) -> (i32, i32, i32, i32) {
    %c0_i32 = arith.constant 0 : i32
    %c0_i32_0 = arith.constant 0 : i32
    %c0_i32_1 = arith.constant 0 : i32
    return %arg0, %arg1, %c0_i32, %c0_i32_0 : i32, i32, i32, i32
  }
  func.func @transform_1(%arg0: i32, %arg1: i32, %arg2: i32, %arg3: memref<2x1xi32, #tpu.memory_space<smem>>) -> (i32, i32, i32) {
    %c0_i32 = arith.constant 0 : i32
    %c0_i32_0 = arith.constant 0 : i32
    return %arg0, %c0_i32, %arg2 : i32, i32, i32
  }
  func.func @transform_2(%arg0: i32, %arg1: i32, %arg2: i32, %arg3: memref<2x1xi32, #tpu.memory_space<smem>>) -> (i32, i32, i32, i32) {
    %c0_i32 = arith.constant 0 : i32
    %c0_i32_0 = arith.constant 0 : i32
    return %arg0, %arg1, %c0_i32, %arg2 : i32, i32, i32, i32
  }
}

</mosaic_0001>

<llo_original>
// kernel: tpu_custom_call.1
$region0: #{tpu_custom_call.1}
  #allocation0 [shape = 'u32[]', space=smem, size = 0x4, offset = 0x4, fixed_abs, tag = 'smem constant byte address 0x4 - core index']
  #allocation1 [shape = 'u32[72,128]{1,0:T(1,128)}', space=vmem, size = 0x9000, scoped, tag = 'internal scratch']
  #allocation2 [shape = 's32[1]{0}', space=sflag, size = 0x4, scoped, tag = 'scoped memory for tpu_custom_call.1']
  #allocation3 [shape = 'u8[1024]{0}', space=smem, size = 0x400, scoped, tag = 'prefetched SMEM operand 0']
  %s0 = inlined_call_operand.vmem [shape: s32[2,1], index: 0, kind: input, shape index: {}]
  %s1 = inlined_call_operand.hbm [shape: bf16[2,2,16,256], index: 1, kind: input, shape index: {}]
  %s2 = inlined_call_operand.hbm [shape: f32[2,8,256], index: 2, kind: input, shape index: {}]
  %s3 = inlined_call_operand.hbm [shape: f32[2,2,1,256], index: 3, kind: output, shape index: {}]
  %s4 = sld [smem:[#allocation0]]
  $region56: #{tpu_custom_call.1} parent=0
    _
  %s6 = ssub.s32 1, %s4
  %s7 = scalar_select 0, %s6, %s4
  %s9 = sshll.u32 %s0, 4
  %s10 = int_to_ptr.vmem [resolvable:$true] %s9
  %12 = dma.vmem_to_smem %s10, 32, [#allocation3], [#allocation2]
  %14 = dma.done [#allocation2], 32
  %15 = sfence
  $region1: #{tpu_custom_call.1} parent=0
    #allocation4 [shape = 'u8[16384]{0}', space=vmem, size = 0x4000, scoped, tag = 'input window, operand 1']
    #allocation5 [shape = 's32[2]{0}', space=sflag, size = 0x8, scoped, tag = 'scoped memory for tpu_custom_call.1']
    #allocation6 [shape = 's32[2]{0}', space=sflag, size = 0x8, scoped, tag = 'scoped memory for tpu_custom_call.1']
    #allocation7 [shape = 'u8[16384]{0}', space=vmem, size = 0x4000, scoped, tag = 'input window, operand 2']
    #allocation8 [shape = 's32[2]{0}', space=sflag, size = 0x8, scoped, tag = 'scoped memory for tpu_custom_call.1']
    #allocation9 [shape = 'u8[2048]{0}', space=vmem, size = 0x800, scoped, tag = 'output window, operand 0']
    %16 = vsyncpa [#allocation5], 0
    %s17 = scalar_lea.sflag [#allocation5], 1
    %18 = vsyncpa %s17, 0
    %19 = vsyncpa [#allocation8], 0
    %s20 = scalar_lea.sflag [#allocation8], 1
    %21 = vsyncpa %s20, 0
    %22 = vsyncpa [#allocation6], 0
    %s23 = scalar_lea.sflag [#allocation6], 1
    %24 = vsyncpa %s23, 0
    loop: start=0, step=1, limit=6
    $region2: #{tpu_custom_call.1} parent=1 // loop_pre_header
      _
    $region3: #{tpu_custom_call.1} parent=1 // loop_header
      %s26 = sphi 0, %s30
      %p27 = scmp.ge.s32.totalorder %s26, 6
      %s33 = sphi 0, %s52
      %s34 = sphi 0, %s48
      %s35 = sphi 0, %s44
      %s36 = sphi 0, %s33
      %s37 = sphi 0, %s34
      %s38 = sphi 0, %s35
      %s39 = sphi 0, %s36
      %s40 = sphi 0, %s37
      %s41 = sphi 0, %s38
      %s57 = sphi 0, %s59
      %s60 = sphi 0, %s57
      %s61 = sphi 0, %s60
      %s77 = sphi 0, %s61
      %s85 = sphi 0, %s87
      %s88 = sphi 0, %s85
      %s89 = sphi 0, %s88
      %s105 = sphi 0, %s89
      %s115 = sphi 0, %s117
      %s118 = sphi 0, %s115
      %s119 = sphi 0, %s118
      %s135 = sphi 0, %s119
    $region4: #{tpu_custom_call.1} parent=1 // loop_header_branch
      %29 = sbr.rel (%p27) target = $region8
    $region5: #{tpu_custom_call.1} parent=1 // loop_body
      %s31 = ssub.s32 %s26, 1
      %s32 = ssub.s32 %s26, 2
      %s42 = sadd.s32 1, %s35
      %p43 = scmp.ge.s32.totalorder %s42, 1
      %s44 = scalar_select %p43, 0, %s42
      %s45 = sadd.s32 1, %s34
      %s46 = scalar_select %p43, %s45, %s34
      %p47 = scmp.ge.s32.totalorder %s46, 2
      %s48 = scalar_select %p47, 0, %s46
      %s49 = sadd.s32 1, %s33
      %s50 = scalar_select %p47, %s49, %s33
      %p51 = scmp.ge.s32.totalorder %s50, 2
      %s52 = scalar_select %p51, 0, %s50
      %s53 = ssub.s32 %s33, %s52
      %s54 = ssub.s32 %s34, %s48
      %s55 = sor.u32 %s53, %s54
      %p56 = scmp.eq.s32.totalorder %s55, 0
      %s58 = sadd.s32 %s57, 1
      %s59 = scalar_select %p56, %s57, %s58
      %p62 = pneg %p56
      %p63 = scmp.eq.s32.totalorder %s26, 3
      %p64 = por %p62, %p63
      %p65 = scmp.ne.s32.totalorder %s57, %s60
      %p66 = scmp.eq.s32.totalorder %s26, 0
      %p67 = por %p65, %p66
      %p68 = scmp.ne.s32.totalorder %s57, %s60
      %p69 = scmp.eq.s32.totalorder %s31, 3
      %p70 = por %p68, %p69
      %p71 = scmp.ne.s32.totalorder %s60, %s61
      %p72 = scmp.eq.s32.totalorder %s31, 0
      %p73 = por %p71, %p72
      %p74 = scmp.ne.s32.totalorder %s60, %s61
      %p75 = scmp.eq.s32.totalorder %s32, 3
      %p76 = por %p74, %p75
      %p78 = scmp.ne.s32.totalorder %s61, %s77
      %p79 = scmp.eq.s32.totalorder %s32, 0
      %p80 = por %p78, %p79
      %s81 = ssub.s32 %s33, %s52
      %s82 = ssub.s32 %s35, %s44
      %s83 = sor.u32 %s81, %s82
      %p84 = scmp.eq.s32.totalorder %s83, 0
      %s86 = sadd.s32 %s85, 1
      %s87 = scalar_select %p84, %s85, %s86
      %p90 = pneg %p84
      %p91 = scmp.eq.s32.totalorder %s26, 3
      %p92 = por %p90, %p91
      %p93 = scmp.ne.s32.totalorder %s85, %s88
      %p94 = scmp.eq.s32.totalorder %s26, 0
      %p95 = por %p93, %p94
      %p96 = scmp.ne.s32.totalorder %s85, %s88
      %p97 = scmp.eq.s32.totalorder %s31, 3
      %p98 = por %p96, %p97
      %p99 = scmp.ne.s32.totalorder %s88, %s89
      %p100 = scmp.eq.s32.totalorder %s31, 0
      %p101 = por %p99, %p100
      %p102 = scmp.ne.s32.totalorder %s88, %s89
      %p103 = scmp.eq.s32.totalorder %s32, 3
      %p104 = por %p102, %p103
      %p106 = scmp.ne.s32.totalorder %s89, %s105
      %p107 = scmp.eq.s32.totalorder %s32, 0
      %p108 = por %p106, %p107
      %s109 = ssub.s32 %s33, %s52
      %s110 = ssub.s32 %s34, %s48
      %s111 = sor.u32 %s109, %s110
      %s112 = ssub.s32 %s35, %s44
      %s113 = sor.u32 %s111, %s112
      %p114 = scmp.eq.s32.totalorder %s113, 0
      %s116 = sadd.s32 %s115, 1
      %s117 = scalar_select %p114, %s115, %s116
      %p120 = pneg %p114
      %p121 = scmp.eq.s32.totalorder %s26, 3
      %p122 = por %p120, %p121
      %p123 = scmp.ne.s32.totalorder %s115, %s118
      %p124 = scmp.eq.s32.totalorder %s26, 0
      %p125 = por %p123, %p124
      %p126 = scmp.ne.s32.totalorder %s115, %s118
      %p127 = scmp.eq.s32.totalorder %s31, 3
      %p128 = por %p126, %p127
      %p129 = scmp.ne.s32.totalorder %s118, %s119
      %p130 = scmp.eq.s32.totalorder %s31, 0
      %p131 = por %p129, %p130
      %p132 = scmp.ne.s32.totalorder %s118, %s119
      %p133 = scmp.eq.s32.totalorder %s32, 3
      %p134 = por %p132, %p133
      %p136 = scmp.ne.s32.totalorder %s119, %s135
      %p137 = scmp.eq.s32.totalorder %s32, 0
      %p138 = por %p136, %p137
      %p139 = scmp.le.s32.totalorder 1, %s26
      %p140 = scmp.lt.s32.totalorder %s26, 5
      %p141 = pnand %p139, %p140
      %p142 = pneg %p141
      // Predicated region
      $region9: #{tpu_custom_call.1} parent=5 // pred_check
        _
      $region10: #{tpu_custom_call.1} parent=5 // pred_check_branch
        %144 = sbr.rel (%p141) target = $region12
      $region11: #{tpu_custom_call.1} parent=5 // pred_region
        %s145 = ssub.s32 %s26, 1
      $region12: #{tpu_custom_call.1} parent=5 // pred_fallthru
        _
      %p146 = scmp.lt.s32.totalorder %s26, 4
      // Predicated region
      $region13: #{tpu_custom_call.1} parent=5 // pred_check
        %p147 = pneg %p146
      $region14: #{tpu_custom_call.1} parent=5 // pred_check_branch
        %149 = sbr.rel (%p147) target = $region16
      $region15: #{tpu_custom_call.1} parent=5 // pred_region
        // Predicated region
        $region17: #{tpu_custom_call.1} parent=15 // pred_check
          %p150 = pneg %p67
        $region18: #{tpu_custom_call.1} parent=15 // pred_check_branch
          %152 = sbr.rel (%p150) target = $region20
        $region19: #{tpu_custom_call.1} parent=15 // pred_region
          %s153 = sand.u32 %s57, 1
          %s154 = scalar_lea.sflag [#allocation5], %s153
          %s155 = sand.u32 %s57, 1
          %s156 = smul.addr %s155, 16
          %s157 = scalar_lea.vmem [#allocation4], %s156
          %159 = vsyncadd %s154, 0
          %s160 = smul.addr %s34, 4
          %s161 = smul.addr %s33, 8
          %s162 = sadd.s32 %s160, %s161
          %s163 = smul.addr %s162, 4
          %s164 = scalar_lea.hbm %s1, %s163
          %s165 = sshll.u32 %s164, 4
          %s166 = int_to_ptr.hbm [resolvable:$true] %s165
          %s167 = sshll.u32 %s157, 4
          %s168 = int_to_ptr.vmem [resolvable:$true] %s167
          %173 = dma.hbm_to_vmem [thread:$0]  %s166, 256, %s168, %s154, 128, 128, 8
        $region20: #{tpu_custom_call.1} parent=15 // pred_fallthru
          _
        // Predicated region
        $region21: #{tpu_custom_call.1} parent=15 // pred_check
          %p174 = pneg %p95
        $region22: #{tpu_custom_call.1} parent=15 // pred_check_branch
          %176 = sbr.rel (%p174) target = $region24
        $region23: #{tpu_custom_call.1} parent=15 // pred_region
          %s177 = sand.u32 %s85, 1
          %s178 = scalar_lea.sflag [#allocation8], %s177
          %s179 = sand.u32 %s85, 1
          %s180 = smul.addr %s179, 16
          %s181 = scalar_lea.vmem [#allocation7], %s180
          %s182 = smul.u32 2, %s35
          %184 = vsyncadd %s178, 0
          %s185 = smul.addr %s33, 2
          %s186 = sadd.s32 %s182, %s185
          %s187 = smul.addr %s186, 8
          %s188 = scalar_lea.hbm %s2, %s187
          %s190 = sshll.u32 %s188, 4
          %s191 = int_to_ptr.hbm [resolvable:$true] %s190
          %s192 = sshll.u32 %s181, 4
          %s193 = int_to_ptr.vmem [resolvable:$true] %s192
          %195 = dma.hbm_to_vmem [thread:$0]  %s191, 256, %s193, %s178
        $region24: #{tpu_custom_call.1} parent=15 // pred_fallthru
          _
      $region16: #{tpu_custom_call.1} parent=5 // pred_fallthru
        _
      %p196 = scmp.le.s32.totalorder 1, %s26
      %p197 = scmp.lt.s32.totalorder %s26, 5
      %p198 = pnand %p196, %p197
      %p199 = pneg %p198
      // Predicated region
      $region25: #{tpu_custom_call.1} parent=5 // pred_check
        _
      $region26: #{tpu_custom_call.1} parent=5 // pred_check_branch
        %201 = sbr.rel (%p198) target = $region28
      $region27: #{tpu_custom_call.1} parent=5 // pred_region
        %s202 = ssub.s32 %s26, 1
        %s203 = sand.u32 %s60, 1
        %s204 = scalar_lea.sflag [#allocation5], %s203
        %s205 = sand.u32 %s60, 1
        %s206 = smul.addr %s205, 16
        %s207 = scalar_lea.vmem [#allocation4], %s206
        // Predicated region
        $region29: #{tpu_custom_call.1} parent=27 // pred_check
          %p208 = pneg %p73
        $region30: #{tpu_custom_call.1} parent=27 // pred_check_branch
          %210 = sbr.rel (%p208) target = $region32
        $region31: #{tpu_custom_call.1} parent=27 // pred_region
          %212 = dma.done %s204, 256
        $region32: #{tpu_custom_call.1} parent=27 // pred_fallthru
          _
        %s213 = sand.u32 %s88, 1
        %s214 = scalar_lea.sflag [#allocation8], %s213
        %s215 = sand.u32 %s88, 1
        %s216 = smul.addr %s215, 16
        %s217 = scalar_lea.vmem [#allocation7], %s216
        // Predicated region
        $region33: #{tpu_custom_call.1} parent=27 // pred_check
          %p218 = pneg %p101
        $region34: #{tpu_custom_call.1} parent=27 // pred_check_branch
          %220 = sbr.rel (%p218) target = $region36
        $region35: #{tpu_custom_call.1} parent=27 // pred_region
          %222 = dma.done %s214, 256
        $region36: #{tpu_custom_call.1} parent=27 // pred_fallthru
          _
        %s223 = sand.u32 %s60, 1
        %s224 = scalar_lea.sflag [#allocation5], %s223
        %s225 = sand.u32 %s60, 1
        %s226 = smul.addr %s225, 16
        %s227 = scalar_lea.vmem [#allocation4], %s226
        %p228 = pneg %p73
        %p229 = pneg %p70
        %s230 = sand.u32 %s88, 1
        %s231 = scalar_lea.sflag [#allocation8], %s230
        %s232 = sand.u32 %s88, 1
        %s233 = smul.addr %s232, 16
        %s234 = scalar_lea.vmem [#allocation7], %s233
        %p235 = pneg %p101
        %p236 = pneg %p98
        %p237 = pneg %p131
        %p238 = pneg %p128
        %s239 = sand.u32 %s118, 1
        %s240 = scalar_lea.sflag [#allocation6], %s239
        %s241 = sand.u32 %s118, 1
        %s242 = smul.addr %s241, 2
        %s243 = scalar_lea.vmem [#allocation9], %s242
        %s244 = smul.u32 2, %s38
        %s245 = smul.u32 2, %s38
        %s246 = sshra.s32 %s38, 7
        %s247 = sand.u32 %s38, 127
        %s248 = sadd.s32 %s246, %s36
        %s249 = smul.u32 %s248, 128
        %s250 = sshra.s32 %s38, 7
        %s251 = sand.u32 %s38, 127
        %s252 = sadd.s32 %s249, %s251
        %s253 = sld [smem:[#allocation3 + %s252]]
        %v254 = vld [vmem:[%s207] sm:$0xff]
        %v255 = vld [vmem:[%s207 + $0x8] sm:$0xff]
        %v256 = vld [vmem:[%s217] sm:$0xff]
        %v257 = vld [vmem:[%s217 + $0x8] sm:$0xff]
        // While loop
        $region37: #{tpu_custom_call.1} parent=27 // loop_pre_header
          _
        $region38: #{tpu_custom_call.1} parent=27 // loop_header
          %s259 = sphi 0, %s261
          %p260 = scmp.ge.s32.totalorder %s259, %s253
          %v264 = vphi 0.0, %v3317
          %v265 = vphi 0.0, %v3318
        $region39: #{tpu_custom_call.1} parent=27 // loop_header_branch
          %263 = sbr.rel (%p260) target = $region43
        $region40: #{tpu_custom_call.1} parent=27 // loop_body
          %s266 = smul.u32 %s259, 8
          %s267 = scvt.s32.f32 %s266
          %s268 = sadd.f32 %s267, 0.0
          %v269 = vstv %s268
          %v270 = vmul.f32 %v269, %v256
          %v271 = vmul.f32 %v269, %v257
          %v274 = vrot.slane %v270, 3
          %v275 = vrot.slane %v271, 3
          %v278 = vadd.f32 %v256, %v274
          %v279 = vadd.f32 %v257, %v275
          %v280 = vadd.f32 %v278, 0.5
          %v281 = vadd.f32 %v279, 0.5
          %v282 = vfloor.f32 %v280
          %v283 = vfloor.f32 %v281
          %v284 = vcvt.f32.s32.to.zero.pseudo %v282
          %v285 = vcvt.f32.s32.to.zero.pseudo %v283
          %vm286 = vcmp.ge.s32.totalorder %v284, 0
          %vm287 = vcmp.ge.s32.totalorder %v285, 0
          %vm288 = vcmp.lt.s32.totalorder %v284, 16
          %vm289 = vcmp.lt.s32.totalorder %v285, 16
          %vm290 = vmand %vm286, %vm288
          %vm291 = vmand %vm287, %vm289
          %v292 = vsel %vm286, 1, 0
          %v293 = vsel %vm287, 1, 0
          %v294 = vrot.slane %v292, 1
          %v295 = vrot.slane %v293, 1
          %vm296 = vcmp.ne.s32.totalorder %v294, 0
          %vm297 = vcmp.ne.s32.totalorder %v295, 0
          %vm298 = vmand %vm290, %vm296
          %vm299 = vmand %vm291, %vm297
          %v300 = vsel %vm288, 1, 0
          %v301 = vsel %vm289, 1, 0
          %v302 = vrot.slane %v300, 1
          %v303 = vrot.slane %v301, 1
          %vm304 = vcmp.ne.s32.totalorder %v302, 0
          %vm305 = vcmp.ne.s32.totalorder %v303, 0
          %vm306 = vmand %vm298, %vm304
          %vm307 = vmand %vm299, %vm305
          %vm308 = vcmp.lt.f32.partialorder %v269, %v256
          %vm309 = vcmp.lt.f32.partialorder %v269, %v257
          %v310 = vsel %vm308, 1, 0
          %v311 = vsel %vm309, 1, 0
          %v312 = vrot.slane %v310, 5
          %v313 = vrot.slane %v311, 5
          %vm314 = vcmp.ne.s32.totalorder %v312, 0
          %vm315 = vcmp.ne.s32.totalorder %v313, 0
          %vm316 = vmand %vm306, %vm314
          %vm317 = vmand %vm307, %vm315
          %v318 = vrot.slane %v284, 7
          %v319 = vrot.slane %v285, 7
          %v320 = vsel %vm316, %v318, 4294967295
          %v321 = vsel %vm317, %v319, 4294967295
          %v322 = vmul.u32 %v284, 16
          %v323 = vmul.u32 %v285, 16
          %v324 = vrot.slane %v284, 1
          %v325 = vrot.slane %v285, 1
          %v326 = vadd.s32 %v322, %v324
          %v327 = vadd.s32 %v323, %v325
          %s328 = sadd.f32 %s267, 1.0
          %v329 = vstv %s328
          %v330 = vmul.f32 %v329, %v256
          %v331 = vmul.f32 %v329, %v257
          %v334 = vrot.slane %v330, 3
          %v335 = vrot.slane %v331, 3
          %v338 = vadd.f32 %v256, %v334
          %v339 = vadd.f32 %v257, %v335
          %v340 = vadd.f32 %v338, 0.5
          %v341 = vadd.f32 %v339, 0.5
          %v342 = vfloor.f32 %v340
          %v343 = vfloor.f32 %v341
          %v344 = vcvt.f32.s32.to.zero.pseudo %v342
          %v345 = vcvt.f32.s32.to.zero.pseudo %v343
          %vm346 = vcmp.ge.s32.totalorder %v344, 0
          %vm347 = vcmp.ge.s32.totalorder %v345, 0
          %vm348 = vcmp.lt.s32.totalorder %v344, 16
          %vm349 = vcmp.lt.s32.totalorder %v345, 16
          %vm350 = vmand %vm346, %vm348
          %vm351 = vmand %vm347, %vm349
          %v352 = vsel %vm346, 1, 0
          %v353 = vsel %vm347, 1, 0
          %v354 = vrot.slane %v352, 1
          %v355 = vrot.slane %v353, 1
          %vm356 = vcmp.ne.s32.totalorder %v354, 0
          %vm357 = vcmp.ne.s32.totalorder %v355, 0
          %vm358 = vmand %vm350, %vm356
          %vm359 = vmand %vm351, %vm357
          %v360 = vsel %vm348, 1, 0
          %v361 = vsel %vm349, 1, 0
          %v362 = vrot.slane %v360, 1
          %v363 = vrot.slane %v361, 1
          %vm364 = vcmp.ne.s32.totalorder %v362, 0
          %vm365 = vcmp.ne.s32.totalorder %v363, 0
          %vm366 = vmand %vm358, %vm364
          %vm367 = vmand %vm359, %vm365
          %vm368 = vcmp.lt.f32.partialorder %v329, %v256
          %vm369 = vcmp.lt.f32.partialorder %v329, %v257
          %v370 = vsel %vm368, 1, 0
          %v371 = vsel %vm369, 1, 0
          %v372 = vrot.slane %v370, 5
          %v373 = vrot.slane %v371, 5
          %vm374 = vcmp.ne.s32.totalorder %v372, 0
          %vm375 = vcmp.ne.s32.totalorder %v373, 0
          %vm376 = vmand %vm366, %vm374
          %vm377 = vmand %vm367, %vm375
          %v378 = vrot.slane %v344, 7
          %v379 = vrot.slane %v345, 7
          %v380 = vsel %vm376, %v378, 4294967295
          %v381 = vsel %vm377, %v379, 4294967295
          %v382 = vmul.u32 %v344, 16
          %v383 = vmul.u32 %v345, 16
          %v384 = vrot.slane %v344, 1
          %v385 = vrot.slane %v345, 1
          %v386 = vadd.s32 %v382, %v384
          %v387 = vadd.s32 %v383, %v385
          %s388 = sadd.f32 %s267, 2.0
          %v389 = vstv %s388
          %v390 = vmul.f32 %v389, %v256
          %v391 = vmul.f32 %v389, %v257
          %v394 = vrot.slane %v390, 3
          %v395 = vrot.slane %v391, 3
          %v398 = vadd.f32 %v256, %v394
          %v399 = vadd.f32 %v257, %v395
          %v400 = vadd.f32 %v398, 0.5
          %v401 = vadd.f32 %v399, 0.5
          %v402 = vfloor.f32 %v400
          %v403 = vfloor.f32 %v401
          %v404 = vcvt.f32.s32.to.zero.pseudo %v402
          %v405 = vcvt.f32.s32.to.zero.pseudo %v403
          %vm406 = vcmp.ge.s32.totalorder %v404, 0
          %vm407 = vcmp.ge.s32.totalorder %v405, 0
          %vm408 = vcmp.lt.s32.totalorder %v404, 16
          %vm409 = vcmp.lt.s32.totalorder %v405, 16
          %vm410 = vmand %vm406, %vm408
          %vm411 = vmand %vm407, %vm409
          %v412 = vsel %vm406, 1, 0
          %v413 = vsel %vm407, 1, 0
          %v414 = vrot.slane %v412, 1
          %v415 = vrot.slane %v413, 1
          %vm416 = vcmp.ne.s32.totalorder %v414, 0
          %vm417 = vcmp.ne.s32.totalorder %v415, 0
          %vm418 = vmand %vm410, %vm416
          %vm419 = vmand %vm411, %vm417
          %v420 = vsel %vm408, 1, 0
          %v421 = vsel %vm409, 1, 0
          %v422 = vrot.slane %v420, 1
          %v423 = vrot.slane %v421, 1
          %vm424 = vcmp.ne.s32.totalorder %v422, 0
          %vm425 = vcmp.ne.s32.totalorder %v423, 0
          %vm426 = vmand %vm418, %vm424
          %vm427 = vmand %vm419, %vm425
          %vm428 = vcmp.lt.f32.partialorder %v389, %v256
          %vm429 = vcmp.lt.f32.partialorder %v389, %v257
          %v430 = vsel %vm428, 1, 0
          %v431 = vsel %vm429, 1, 0
          %v432 = vrot.slane %v430, 5
          %v433 = vrot.slane %v431, 5
          %vm434 = vcmp.ne.s32.totalorder %v432, 0
          %vm435 = vcmp.ne.s32.totalorder %v433, 0
          %vm436 = vmand %vm426, %vm434
          %vm437 = vmand %vm427, %vm435
          %v438 = vrot.slane %v404, 7
          %v439 = vrot.slane %v405, 7
          %v440 = vsel %vm436, %v438, 4294967295
          %v441 = vsel %vm437, %v439, 4294967295
          %v442 = vmul.u32 %v404, 16
          %v443 = vmul.u32 %v405, 16
          %v444 = vrot.slane %v404, 1
          %v445 = vrot.slane %v405, 1
          %v446 = vadd.s32 %v442, %v444
          %v447 = vadd.s32 %v443, %v445
          %s448 = sadd.f32 %s267, 3.0
          %v449 = vstv %s448
          %v450 = vmul.f32 %v449, %v256
          %v451 = vmul.f32 %v449, %v257
          %v454 = vrot.slane %v450, 3
          %v455 = vrot.slane %v451, 3
          %v458 = vadd.f32 %v256, %v454
          %v459 = vadd.f32 %v257, %v455
          %v460 = vadd.f32 %v458, 0.5
          %v461 = vadd.f32 %v459, 0.5
          %v462 = vfloor.f32 %v460
          %v463 = vfloor.f32 %v461
          %v464 = vcvt.f32.s32.to.zero.pseudo %v462
          %v465 = vcvt.f32.s32.to.zero.pseudo %v463
          %vm466 = vcmp.ge.s32.totalorder %v464, 0
          %vm467 = vcmp.ge.s32.totalorder %v465, 0
          %vm468 = vcmp.lt.s32.totalorder %v464, 16
          %vm469 = vcmp.lt.s32.totalorder %v465, 16
          %vm470 = vmand %vm466, %vm468
          %vm471 = vmand %vm467, %vm469
          %v472 = vsel %vm466, 1, 0
          %v473 = vsel %vm467, 1, 0
          %v474 = vrot.slane %v472, 1
          %v475 = vrot.slane %v473, 1
          %vm476 = vcmp.ne.s32.totalorder %v474, 0
          %vm477 = vcmp.ne.s32.totalorder %v475, 0
          %vm478 = vmand %vm470, %vm476
          %vm479 = vmand %vm471, %vm477
          %v480 = vsel %vm468, 1, 0
          %v481 = vsel %vm469, 1, 0
          %v482 = vrot.slane %v480, 1
          %v483 = vrot.slane %v481, 1
          %vm484 = vcmp.ne.s32.totalorder %v482, 0
          %vm485 = vcmp.ne.s32.totalorder %v483, 0
          %vm486 = vmand %vm478, %vm484
          %vm487 = vmand %vm479, %vm485
          %vm488 = vcmp.lt.f32.partialorder %v449, %v256
          %vm489 = vcmp.lt.f32.partialorder %v449, %v257
          %v490 = vsel %vm488, 1, 0
          %v491 = vsel %vm489, 1, 0
          %v492 = vrot.slane %v490, 5
          %v493 = vrot.slane %v491, 5
          %vm494 = vcmp.ne.s32.totalorder %v492, 0
          %vm495 = vcmp.ne.s32.totalorder %v493, 0
          %vm496 = vmand %vm486, %vm494
          %vm497 = vmand %vm487, %vm495
          %v498 = vrot.slane %v464, 7
          %v499 = vrot.slane %v465, 7
          %v500 = vsel %vm496, %v498, 4294967295
          %v501 = vsel %vm497, %v499, 4294967295
          %v502 = vmul.u32 %v464, 16
          %v503 = vmul.u32 %v465, 16
          %v504 = vrot.slane %v464, 1
          %v505 = vrot.slane %v465, 1
          %v506 = vadd.s32 %v502, %v504
          %v507 = vadd.s32 %v503, %v505
          %s508 = sadd.f32 %s267, 4.0
          %v509 = vstv %s508
          %v510 = vmul.f32 %v509, %v256
          %v511 = vmul.f32 %v509, %v257
          %v514 = vrot.slane %v510, 3
          %v515 = vrot.slane %v511, 3
          %v518 = vadd.f32 %v256, %v514
          %v519 = vadd.f32 %v257, %v515
          %v520 = vadd.f32 %v518, 0.5
          %v521 = vadd.f32 %v519, 0.5
          %v522 = vfloor.f32 %v520
          %v523 = vfloor.f32 %v521
          %v524 = vcvt.f32.s32.to.zero.pseudo %v522
          %v525 = vcvt.f32.s32.to.zero.pseudo %v523
          %vm526 = vcmp.ge.s32.totalorder %v524, 0
          %vm527 = vcmp.ge.s32.totalorder %v525, 0
          %vm528 = vcmp.lt.s32.totalorder %v524, 16
          %vm529 = vcmp.lt.s32.totalorder %v525, 16
          %vm530 = vmand %vm526, %vm528
          %vm531 = vmand %vm527, %vm529
          %v532 = vsel %vm526, 1, 0
          %v533 = vsel %vm527, 1, 0
          %v534 = vrot.slane %v532, 1
          %v535 = vrot.slane %v533, 1
          %vm536 = vcmp.ne.s32.totalorder %v534, 0
          %vm537 = vcmp.ne.s32.totalorder %v535, 0
          %vm538 = vmand %vm530, %vm536
          %vm539 = vmand %vm531, %vm537
          %v540 = vsel %vm528, 1, 0
          %v541 = vsel %vm529, 1, 0
          %v542 = vrot.slane %v540, 1
          %v543 = vrot.slane %v541, 1
          %vm544 = vcmp.ne.s32.totalorder %v542, 0
          %vm545 = vcmp.ne.s32.totalorder %v543, 0
          %vm546 = vmand %vm538, %vm544
          %vm547 = vmand %vm539, %vm545
          %vm548 = vcmp.lt.f32.partialorder %v509, %v256
          %vm549 = vcmp.lt.f32.partialorder %v509, %v257
          %v550 = vsel %vm548, 1, 0
          %v551 = vsel %vm549, 1, 0
          %v552 = vrot.slane %v550, 5
          %v553 = vrot.slane %v551, 5
          %vm554 = vcmp.ne.s32.totalorder %v552, 0
          %vm555 = vcmp.ne.s32.totalorder %v553, 0
          %vm556 = vmand %vm546, %vm554
          %vm557 = vmand %vm547, %vm555
          %v558 = vrot.slane %v524, 7
          %v559 = vrot.slane %v525, 7
          %v560 = vsel %vm556, %v558, 4294967295
          %v561 = vsel %vm557, %v559, 4294967295
          %v562 = vmul.u32 %v524, 16
          %v563 = vmul.u32 %v525, 16
          %v564 = vrot.slane %v524, 1
          %v565 = vrot.slane %v525, 1
          %v566 = vadd.s32 %v562, %v564
          %v567 = vadd.s32 %v563, %v565
          %s568 = sadd.f32 %s267, 5.0
          %v569 = vstv %s568
          %v570 = vmul.f32 %v569, %v256
          %v571 = vmul.f32 %v569, %v257
          %v574 = vrot.slane %v570, 3
          %v575 = vrot.slane %v571, 3
          %v578 = vadd.f32 %v256, %v574
          %v579 = vadd.f32 %v257, %v575
          %v580 = vadd.f32 %v578, 0.5
          %v581 = vadd.f32 %v579, 0.5
          %v582 = vfloor.f32 %v580
          %v583 = vfloor.f32 %v581
          %v584 = vcvt.f32.s32.to.zero.pseudo %v582
          %v585 = vcvt.f32.s32.to.zero.pseudo %v583
          %vm586 = vcmp.ge.s32.totalorder %v584, 0
          %vm587 = vcmp.ge.s32.totalorder %v585, 0
          %vm588 = vcmp.lt.s32.totalorder %v584, 16
          %vm589 = vcmp.lt.s32.totalorder %v585, 16
          %vm590 = vmand %vm586, %vm588
          %vm591 = vmand %vm587, %vm589
          %v592 = vsel %vm586, 1, 0
          %v593 = vsel %vm587, 1, 0
          %v594 = vrot.slane %v592, 1
          %v595 = vrot.slane %v593, 1
          %vm596 = vcmp.ne.s32.totalorder %v594, 0
          %vm597 = vcmp.ne.s32.totalorder %v595, 0
          %vm598 = vmand %vm590, %vm596
          %vm599 = vmand %vm591, %vm597
          %v600 = vsel %vm588, 1, 0
          %v601 = vsel %vm589, 1, 0
          %v602 = vrot.slane %v600, 1
          %v603 = vrot.slane %v601, 1
          %vm604 = vcmp.ne.s32.totalorder %v602, 0
          %vm605 = vcmp.ne.s32.totalorder %v603, 0
          %vm606 = vmand %vm598, %vm604
          %vm607 = vmand %vm599, %vm605
          %vm608 = vcmp.lt.f32.partialorder %v569, %v256
          %vm609 = vcmp.lt.f32.partialorder %v569, %v257
          %v610 = vsel %vm608, 1, 0
          %v611 = vsel %vm609, 1, 0
          %v612 = vrot.slane %v610, 5
          %v613 = vrot.slane %v611, 5
          %vm614 = vcmp.ne.s32.totalorder %v612, 0
          %vm615 = vcmp.ne.s32.totalorder %v613, 0
          %vm616 = vmand %vm606, %vm614
          %vm617 = vmand %vm607, %vm615
          %v618 = vrot.slane %v584, 7
          %v619 = vrot.slane %v585, 7
          %v620 = vsel %vm616, %v618, 4294967295
          %v621 = vsel %vm617, %v619, 4294967295
          %v622 = vmul.u32 %v584, 16
          %v623 = vmul.u32 %v585, 16
          %v624 = vrot.slane %v584, 1
          %v625 = vrot.slane %v585, 1
          %v626 = vadd.s32 %v622, %v624
          %v627 = vadd.s32 %v623, %v625
          %s628 = sadd.f32 %s267, 6.0
          %v629 = vstv %s628
          %v630 = vmul.f32 %v629, %v256
          %v631 = vmul.f32 %v629, %v257
          %v634 = vrot.slane %v630, 3
          %v635 = vrot.slane %v631, 3
          %v638 = vadd.f32 %v256, %v634
          %v639 = vadd.f32 %v257, %v635
          %v640 = vadd.f32 %v638, 0.5
          %v641 = vadd.f32 %v639, 0.5
          %v642 = vfloor.f32 %v640
          %v643 = vfloor.f32 %v641
          %v644 = vcvt.f32.s32.to.zero.pseudo %v642
          %v645 = vcvt.f32.s32.to.zero.pseudo %v643
          %vm646 = vcmp.ge.s32.totalorder %v644, 0
          %vm647 = vcmp.ge.s32.totalorder %v645, 0
          %vm648 = vcmp.lt.s32.totalorder %v644, 16
          %vm649 = vcmp.lt.s32.totalorder %v645, 16
          %vm650 = vmand %vm646, %vm648
          %vm651 = vmand %vm647, %vm649
          %v652 = vsel %vm646, 1, 0
          %v653 = vsel %vm647, 1, 0
          %v654 = vrot.slane %v652, 1
          %v655 = vrot.slane %v653, 1
          %vm656 = vcmp.ne.s32.totalorder %v654, 0
          %vm657 = vcmp.ne.s32.totalorder %v655, 0
          %vm658 = vmand %vm650, %vm656
          %vm659 = vmand %vm651, %vm657
          %v660 = vsel %vm648, 1, 0
          %v661 = vsel %vm649, 1, 0
          %v662 = vrot.slane %v660, 1
          %v663 = vrot.slane %v661, 1
          %vm664 = vcmp.ne.s32.totalorder %v662, 0
          %vm665 = vcmp.ne.s32.totalorder %v663, 0
          %vm666 = vmand %vm658, %vm664
          %vm667 = vmand %vm659, %vm665
          %vm668 = vcmp.lt.f32.partialorder %v629, %v256
          %vm669 = vcmp.lt.f32.partialorder %v629, %v257
          %v670 = vsel %vm668, 1, 0
          %v671 = vsel %vm669, 1, 0
          %v672 = vrot.slane %v670, 5
          %v673 = vrot.slane %v671, 5
          %vm674 = vcmp.ne.s32.totalorder %v672, 0
          %vm675 = vcmp.ne.s32.totalorder %v673, 0
          %vm676 = vmand %vm666, %vm674
          %vm677 = vmand %vm667, %vm675
          %v678 = vrot.slane %v644, 7
          %v679 = vrot.slane %v645, 7
          %v680 = vsel %vm676, %v678, 4294967295
          %v681 = vsel %vm677, %v679, 4294967295
          %v682 = vmul.u32 %v644, 16
          %v683 = vmul.u32 %v645, 16
          %v684 = vrot.slane %v644, 1
          %v685 = vrot.slane %v645, 1
          %v686 = vadd.s32 %v682, %v684
          %v687 = vadd.s32 %v683, %v685
          %s688 = sadd.f32 %s267, 7.0
          %v689 = vstv %s688
          %v690 = vmul.f32 %v689, %v256
          %v691 = vmul.f32 %v689, %v257
          %v694 = vrot.slane %v690, 3
          %v695 = vrot.slane %v691, 3
          %v698 = vadd.f32 %v256, %v694
          %v699 = vadd.f32 %v257, %v695
          %v700 = vadd.f32 %v698, 0.5
          %v701 = vadd.f32 %v699, 0.5
          %v702 = vfloor.f32 %v700
          %v703 = vfloor.f32 %v701
          %v704 = vcvt.f32.s32.to.zero.pseudo %v702
          %v705 = vcvt.f32.s32.to.zero.pseudo %v703
          %vm706 = vcmp.ge.s32.totalorder %v704, 0
          %vm707 = vcmp.ge.s32.totalorder %v705, 0
          %vm708 = vcmp.lt.s32.totalorder %v704, 16
          %vm709 = vcmp.lt.s32.totalorder %v705, 16
          %vm710 = vmand %vm706, %vm708
          %vm711 = vmand %vm707, %vm709
          %v712 = vsel %vm706, 1, 0
          %v713 = vsel %vm707, 1, 0
          %v714 = vrot.slane %v712, 1
          %v715 = vrot.slane %v713, 1
          %vm716 = vcmp.ne.s32.totalorder %v714, 0
          %vm717 = vcmp.ne.s32.totalorder %v715, 0
          %vm718 = vmand %vm710, %vm716
          %vm719 = vmand %vm711, %vm717
          %v720 = vsel %vm708, 1, 0
          %v721 = vsel %vm709, 1, 0
          %v722 = vrot.slane %v720, 1
          %v723 = vrot.slane %v721, 1
          %vm724 = vcmp.ne.s32.totalorder %v722, 0
          %vm725 = vcmp.ne.s32.totalorder %v723, 0
          %vm726 = vmand %vm718, %vm724
          %vm727 = vmand %vm719, %vm725
          %vm728 = vcmp.lt.f32.partialorder %v689, %v256
          %vm729 = vcmp.lt.f32.partialorder %v689, %v257
          %v730 = vsel %vm728, 1, 0
          %v731 = vsel %vm729, 1, 0
          %v732 = vrot.slane %v730, 5
          %v733 = vrot.slane %v731, 5
          %vm734 = vcmp.ne.s32.totalorder %v732, 0
          %vm735 = vcmp.ne.s32.totalorder %v733, 0
          %vm736 = vmand %vm726, %vm734
          %vm737 = vmand %vm727, %vm735
          %v738 = vrot.slane %v704, 7
          %v739 = vrot.slane %v705, 7
          %v740 = vsel %vm736, %v738, 4294967295
          %v741 = vsel %vm737, %v739, 4294967295
          %v742 = vmul.u32 %v704, 16
          %v743 = vmul.u32 %v705, 16
          %v744 = vrot.slane %v704, 1
          %v745 = vrot.slane %v705, 1
          %v746 = vadd.s32 %v742, %v744
          %v747 = vadd.s32 %v743, %v745
          %v748 = vlaneseq
          %v749 = vshrl.u32 %v748, 7
          %v750 = vadd.s32 %v749, 8
          %v751 = vadd.s32 %v749, 16
          %v752 = vadd.s32 %v749, 24
          %v753 = vadd.s32 %v749, 32
          %v754 = vadd.s32 %v749, 40
          %v755 = vadd.s32 %v749, 48
          %v756 = vadd.s32 %v749, 56
          %v757 = vadd.s32 %v749, 64
          %v758 = vadd.s32 %v749, 72
          %v759 = vadd.s32 %v749, 80
          %v760 = vadd.s32 %v749, 88
          %v761 = vadd.s32 %v749, 96
          %v762 = vadd.s32 %v749, 104
          %v763 = vadd.s32 %v749, 112
          %v764 = vadd.s32 %v749, 120
          %v765 = vadd.s32 %v749, 128
          %v766 = vadd.s32 %v749, 136
          %v767 = vadd.s32 %v749, 144
          %v768 = vadd.s32 %v749, 152
          %v769 = vadd.s32 %v749, 160
          %v770 = vadd.s32 %v749, 168
          %v771 = vadd.s32 %v749, 176
          %v772 = vadd.s32 %v749, 184
          %v773 = vadd.s32 %v749, 192
          %v774 = vadd.s32 %v749, 200
          %v775 = vadd.s32 %v749, 208
          %v776 = vadd.s32 %v749, 216
          %v777 = vadd.s32 %v749, 224
          %v778 = vadd.s32 %v749, 232
          %v779 = vadd.s32 %v749, 240
          %v780 = vadd.s32 %v749, 248
          %v781 = vperm.slane %v326, 1
          %v782 = vperm.slane %v327, 1
          %v783 = vperm.slane %v386, 1
          %v784 = vperm.slane %v387, 1
          %v785 = vperm.slane %v446, 1
          %v786 = vperm.slane %v447, 1
          %v787 = vperm.slane %v506, 1
          %v788 = vperm.slane %v507, 1
          %v789 = vperm.slane %v566, 1
          %v790 = vperm.slane %v567, 1
          %v791 = vperm.slane %v626, 1
          %v792 = vperm.slane %v627, 1
          %v793 = vperm.slane %v686, 1
          %v794 = vperm.slane %v687, 1
          %v795 = vperm.slane %v746, 1
          %v796 = vperm.slane %v747, 1
          %vm797 = vcmp.eq.s32.totalorder %v749, %v781
          %vm798 = vcmp.eq.s32.totalorder %v749, %v782
          %vm799 = vcmp.eq.s32.totalorder %v749, %v783
          %vm800 = vcmp.eq.s32.totalorder %v749, %v784
          %vm801 = vcmp.eq.s32.totalorder %v749, %v785
          %vm802 = vcmp.eq.s32.totalorder %v749, %v786
          %vm803 = vcmp.eq.s32.totalorder %v749, %v787
          %vm804 = vcmp.eq.s32.totalorder %v749, %v788
          %vm805 = vcmp.eq.s32.totalorder %v749, %v789
          %vm806 = vcmp.eq.s32.totalorder %v749, %v790
          %vm807 = vcmp.eq.s32.totalorder %v749, %v791
          %vm808 = vcmp.eq.s32.totalorder %v749, %v792
          %vm809 = vcmp.eq.s32.totalorder %v749, %v793
          %vm810 = vcmp.eq.s32.totalorder %v749, %v794
          %vm811 = vcmp.eq.s32.totalorder %v749, %v795
          %vm812 = vcmp.eq.s32.totalorder %v749, %v796
          %vm813 = vcmp.eq.s32.totalorder %v750, %v781
          %vm814 = vcmp.eq.s32.totalorder %v750, %v782
          %vm815 = vcmp.eq.s32.totalorder %v750, %v783
          %vm816 = vcmp.eq.s32.totalorder %v750, %v784
          %vm817 = vcmp.eq.s32.totalorder %v750, %v785
          %vm818 = vcmp.eq.s32.totalorder %v750, %v786
          %vm819 = vcmp.eq.s32.totalorder %v750, %v787
          %vm820 = vcmp.eq.s32.totalorder %v750, %v788
          %vm821 = vcmp.eq.s32.totalorder %v750, %v789
          %vm822 = vcmp.eq.s32.totalorder %v750, %v790
          %vm823 = vcmp.eq.s32.totalorder %v750, %v791
          %vm824 = vcmp.eq.s32.totalorder %v750, %v792
          %vm825 = vcmp.eq.s32.totalorder %v750, %v793
          %vm826 = vcmp.eq.s32.totalorder %v750, %v794
          %vm827 = vcmp.eq.s32.totalorder %v750, %v795
          %vm828 = vcmp.eq.s32.totalorder %v750, %v796
          %vm829 = vcmp.eq.s32.totalorder %v751, %v781
          %vm830 = vcmp.eq.s32.totalorder %v751, %v782
          %vm831 = vcmp.eq.s32.totalorder %v751, %v783
          %vm832 = vcmp.eq.s32.totalorder %v751, %v784
          %vm833 = vcmp.eq.s32.totalorder %v751, %v785
          %vm834 = vcmp.eq.s32.totalorder %v751, %v786
          %vm835 = vcmp.eq.s32.totalorder %v751, %v787
          %vm836 = vcmp.eq.s32.totalorder %v751, %v788
          %vm837 = vcmp.eq.s32.totalorder %v751, %v789
          %vm838 = vcmp.eq.s32.totalorder %v751, %v790
          %vm839 = vcmp.eq.s32.totalorder %v751, %v791
          %vm840 = vcmp.eq.s32.totalorder %v751, %v792
          %vm841 = vcmp.eq.s32.totalorder %v751, %v793
          %vm842 = vcmp.eq.s32.totalorder %v751, %v794
          %vm843 = vcmp.eq.s32.totalorder %v751, %v795
          %vm844 = vcmp.eq.s32.totalorder %v751, %v796
          %vm845 = vcmp.eq.s32.totalorder %v752, %v781
          %vm846 = vcmp.eq.s32.totalorder %v752, %v782
          %vm847 = vcmp.eq.s32.totalorder %v752, %v783
          %vm848 = vcmp.eq.s32.totalorder %v752, %v784
          %vm849 = vcmp.eq.s32.totalorder %v752, %v785
          %vm850 = vcmp.eq.s32.totalorder %v752, %v786
          %vm851 = vcmp.eq.s32.totalorder %v752, %v787
          %vm852 = vcmp.eq.s32.totalorder %v752, %v788
          %vm853 = vcmp.eq.s32.totalorder %v752, %v789
          %vm854 = vcmp.eq.s32.totalorder %v752, %v790
          %vm855 = vcmp.eq.s32.totalorder %v752, %v791
          %vm856 = vcmp.eq.s32.totalorder %v752, %v792
          %vm857 = vcmp.eq.s32.totalorder %v752, %v793
          %vm858 = vcmp.eq.s32.totalorder %v752, %v794
          %vm859 = vcmp.eq.s32.totalorder %v752, %v795
          %vm860 = vcmp.eq.s32.totalorder %v752, %v796
          %vm861 = vcmp.eq.s32.totalorder %v753, %v781
          %vm862 = vcmp.eq.s32.totalorder %v753, %v782
          %vm863 = vcmp.eq.s32.totalorder %v753, %v783
          %vm864 = vcmp.eq.s32.totalorder %v753, %v784
          %vm865 = vcmp.eq.s32.totalorder %v753, %v785
          %vm866 = vcmp.eq.s32.totalorder %v753, %v786
          %vm867 = vcmp.eq.s32.totalorder %v753, %v787
          %vm868 = vcmp.eq.s32.totalorder %v753, %v788
          %vm869 = vcmp.eq.s32.totalorder %v753, %v789
          %vm870 = vcmp.eq.s32.totalorder %v753, %v790
          %vm871 = vcmp.eq.s32.totalorder %v753, %v791
          %vm872 = vcmp.eq.s32.totalorder %v753, %v792
          %vm873 = vcmp.eq.s32.totalorder %v753, %v793
          %vm874 = vcmp.eq.s32.totalorder %v753, %v794
          %vm875 = vcmp.eq.s32.totalorder %v753, %v795
          %vm876 = vcmp.eq.s32.totalorder %v753, %v796
          %vm877 = vcmp.eq.s32.totalorder %v754, %v781
          %vm878 = vcmp.eq.s32.totalorder %v754, %v782
          %vm879 = vcmp.eq.s32.totalorder %v754, %v783
          %vm880 = vcmp.eq.s32.totalorder %v754, %v784
          %vm881 = vcmp.eq.s32.totalorder %v754, %v785
          %vm882 = vcmp.eq.s32.totalorder %v754, %v786
          %vm883 = vcmp.eq.s32.totalorder %v754, %v787
          %vm884 = vcmp.eq.s32.totalorder %v754, %v788
          %vm885 = vcmp.eq.s32.totalorder %v754, %v789
          %vm886 = vcmp.eq.s32.totalorder %v754, %v790
          %vm887 = vcmp.eq.s32.totalorder %v754, %v791
          %vm888 = vcmp.eq.s32.totalorder %v754, %v792
          %vm889 = vcmp.eq.s32.totalorder %v754, %v793
          %vm890 = vcmp.eq.s32.totalorder %v754, %v794
          %vm891 = vcmp.eq.s32.totalorder %v754, %v795
          %vm892 = vcmp.eq.s32.totalorder %v754, %v796
          %vm893 = vcmp.eq.s32.totalorder %v755, %v781
          %vm894 = vcmp.eq.s32.totalorder %v755, %v782
          %vm895 = vcmp.eq.s32.totalorder %v755, %v783
          %vm896 = vcmp.eq.s32.totalorder %v755, %v784
          %vm897 = vcmp.eq.s32.totalorder %v755, %v785
          %vm898 = vcmp.eq.s32.totalorder %v755, %v786
          %vm899 = vcmp.eq.s32.totalorder %v755, %v787
          %vm900 = vcmp.eq.s32.totalorder %v755, %v788
          %vm901 = vcmp.eq.s32.totalorder %v755, %v789
          %vm902 = vcmp.eq.s32.totalorder %v755, %v790
          %vm903 = vcmp.eq.s32.totalorder %v755, %v791
          %vm904 = vcmp.eq.s32.totalorder %v755, %v792
          %vm905 = vcmp.eq.s32.totalorder %v755, %v793
          %vm906 = vcmp.eq.s32.totalorder %v755, %v794
          %vm907 = vcmp.eq.s32.totalorder %v755, %v795
          %vm908 = vcmp.eq.s32.totalorder %v755, %v796
          %vm909 = vcmp.eq.s32.totalorder %v756, %v781
          %vm910 = vcmp.eq.s32.totalorder %v756, %v782
          %vm911 = vcmp.eq.s32.totalorder %v756, %v783
          %vm912 = vcmp.eq.s32.totalorder %v756, %v784
          %vm913 = vcmp.eq.s32.totalorder %v756, %v785
          %vm914 = vcmp.eq.s32.totalorder %v756, %v786
          %vm915 = vcmp.eq.s32.totalorder %v756, %v787
          %vm916 = vcmp.eq.s32.totalorder %v756, %v788
          %vm917 = vcmp.eq.s32.totalorder %v756, %v789
          %vm918 = vcmp.eq.s32.totalorder %v756, %v790
          %vm919 = vcmp.eq.s32.totalorder %v756, %v791
          %vm920 = vcmp.eq.s32.totalorder %v756, %v792
          %vm921 = vcmp.eq.s32.totalorder %v756, %v793
          %vm922 = vcmp.eq.s32.totalorder %v756, %v794
          %vm923 = vcmp.eq.s32.totalorder %v756, %v795
          %vm924 = vcmp.eq.s32.totalorder %v756, %v796
          %vm925 = vcmp.eq.s32.totalorder %v757, %v781
          %vm926 = vcmp.eq.s32.totalorder %v757, %v782
          %vm927 = vcmp.eq.s32.totalorder %v757, %v783
          %vm928 = vcmp.eq.s32.totalorder %v757, %v784
          %vm929 = vcmp.eq.s32.totalorder %v757, %v785
          %vm930 = vcmp.eq.s32.totalorder %v757, %v786
          %vm931 = vcmp.eq.s32.totalorder %v757, %v787
          %vm932 = vcmp.eq.s32.totalorder %v757, %v788
          %vm933 = vcmp.eq.s32.totalorder %v757, %v789
          %vm934 = vcmp.eq.s32.totalorder %v757, %v790
          %vm935 = vcmp.eq.s32.totalorder %v757, %v791
          %vm936 = vcmp.eq.s32.totalorder %v757, %v792
          %vm937 = vcmp.eq.s32.totalorder %v757, %v793
          %vm938 = vcmp.eq.s32.totalorder %v757, %v794
          %vm939 = vcmp.eq.s32.totalorder %v757, %v795
          %vm940 = vcmp.eq.s32.totalorder %v757, %v796
          %vm941 = vcmp.eq.s32.totalorder %v758, %v781
          %vm942 = vcmp.eq.s32.totalorder %v758, %v782
          %vm943 = vcmp.eq.s32.totalorder %v758, %v783
          %vm944 = vcmp.eq.s32.totalorder %v758, %v784
          %vm945 = vcmp.eq.s32.totalorder %v758, %v785
          %vm946 = vcmp.eq.s32.totalorder %v758, %v786
          %vm947 = vcmp.eq.s32.totalorder %v758, %v787
          %vm948 = vcmp.eq.s32.totalorder %v758, %v788
          %vm949 = vcmp.eq.s32.totalorder %v758, %v789
          %vm950 = vcmp.eq.s32.totalorder %v758, %v790
          %vm951 = vcmp.eq.s32.totalorder %v758, %v791
          %vm952 = vcmp.eq.s32.totalorder %v758, %v792
          %vm953 = vcmp.eq.s32.totalorder %v758, %v793
          %vm954 = vcmp.eq.s32.totalorder %v758, %v794
          %vm955 = vcmp.eq.s32.totalorder %v758, %v795
          %vm956 = vcmp.eq.s32.totalorder %v758, %v796
          %vm957 = vcmp.eq.s32.totalorder %v759, %v781
          %vm958 = vcmp.eq.s32.totalorder %v759, %v782
          %vm959 = vcmp.eq.s32.totalorder %v759, %v783
          %vm960 = vcmp.eq.s32.totalorder %v759, %v784
          %vm961 = vcmp.eq.s32.totalorder %v759, %v785
          %vm962 = vcmp.eq.s32.totalorder %v759, %v786
          %vm963 = vcmp.eq.s32.totalorder %v759, %v787
          %vm964 = vcmp.eq.s32.totalorder %v759, %v788
          %vm965 = vcmp.eq.s32.totalorder %v759, %v789
          %vm966 = vcmp.eq.s32.totalorder %v759, %v790
          %vm967 = vcmp.eq.s32.totalorder %v759, %v791
          %vm968 = vcmp.eq.s32.totalorder %v759, %v792
          %vm969 = vcmp.eq.s32.totalorder %v759, %v793
          %vm970 = vcmp.eq.s32.totalorder %v759, %v794
          %vm971 = vcmp.eq.s32.totalorder %v759, %v795
          %vm972 = vcmp.eq.s32.totalorder %v759, %v796
          %vm973 = vcmp.eq.s32.totalorder %v760, %v781
          %vm974 = vcmp.eq.s32.totalorder %v760, %v782
          %vm975 = vcmp.eq.s32.totalorder %v760, %v783
          %vm976 = vcmp.eq.s32.totalorder %v760, %v784
          %vm977 = vcmp.eq.s32.totalorder %v760, %v785
          %vm978 = vcmp.eq.s32.totalorder %v760, %v786
          %vm979 = vcmp.eq.s32.totalorder %v760, %v787
          %vm980 = vcmp.eq.s32.totalorder %v760, %v788
          %vm981 = vcmp.eq.s32.totalorder %v760, %v789
          %vm982 = vcmp.eq.s32.totalorder %v760, %v790
          %vm983 = vcmp.eq.s32.totalorder %v760, %v791
          %vm984 = vcmp.eq.s32.totalorder %v760, %v792
          %vm985 = vcmp.eq.s32.totalorder %v760, %v793
          %vm986 = vcmp.eq.s32.totalorder %v760, %v794
          %vm987 = vcmp.eq.s32.totalorder %v760, %v795
          %vm988 = vcmp.eq.s32.totalorder %v760, %v796
          %vm989 = vcmp.eq.s32.totalorder %v761, %v781
          %vm990 = vcmp.eq.s32.totalorder %v761, %v782
          %vm991 = vcmp.eq.s32.totalorder %v761, %v783
          %vm992 = vcmp.eq.s32.totalorder %v761, %v784
          %vm993 = vcmp.eq.s32.totalorder %v761, %v785
          %vm994 = vcmp.eq.s32.totalorder %v761, %v786
          %vm995 = vcmp.eq.s32.totalorder %v761, %v787
          %vm996 = vcmp.eq.s32.totalorder %v761, %v788
          %vm997 = vcmp.eq.s32.totalorder %v761, %v789
          %vm998 = vcmp.eq.s32.totalorder %v761, %v790
          %vm999 = vcmp.eq.s32.totalorder %v761, %v791
          %vm1000 = vcmp.eq.s32.totalorder %v761, %v792
          %vm1001 = vcmp.eq.s32.totalorder %v761, %v793
          %vm1002 = vcmp.eq.s32.totalorder %v761, %v794
          %vm1003 = vcmp.eq.s32.totalorder %v761, %v795
          %vm1004 = vcmp.eq.s32.totalorder %v761, %v796
          %vm1005 = vcmp.eq.s32.totalorder %v762, %v781
          %vm1006 = vcmp.eq.s32.totalorder %v762, %v782
          %vm1007 = vcmp.eq.s32.totalorder %v762, %v783
          %vm1008 = vcmp.eq.s32.totalorder %v762, %v784
          %vm1009 = vcmp.eq.s32.totalorder %v762, %v785
          %vm1010 = vcmp.eq.s32.totalorder %v762, %v786
          %vm1011 = vcmp.eq.s32.totalorder %v762, %v787
          %vm1012 = vcmp.eq.s32.totalorder %v762, %v788
          %vm1013 = vcmp.eq.s32.totalorder %v762, %v789
          %vm1014 = vcmp.eq.s32.totalorder %v762, %v790
          %vm1015 = vcmp.eq.s32.totalorder %v762, %v791
          %vm1016 = vcmp.eq.s32.totalorder %v762, %v792
          %vm1017 = vcmp.eq.s32.totalorder %v762, %v793
          %vm1018 = vcmp.eq.s32.totalorder %v762, %v794
          %vm1019 = vcmp.eq.s32.totalorder %v762, %v795
          %vm1020 = vcmp.eq.s32.totalorder %v762, %v796
          %vm1021 = vcmp.eq.s32.totalorder %v763, %v781
          %vm1022 = vcmp.eq.s32.totalorder %v763, %v782
          %vm1023 = vcmp.eq.s32.totalorder %v763, %v783
          %vm1024 = vcmp.eq.s32.totalorder %v763, %v784
          %vm1025 = vcmp.eq.s32.totalorder %v763, %v785
          %vm1026 = vcmp.eq.s32.totalorder %v763, %v786
          %vm1027 = vcmp.eq.s32.totalorder %v763, %v787
          %vm1028 = vcmp.eq.s32.totalorder %v763, %v788
          %vm1029 = vcmp.eq.s32.totalorder %v763, %v789
          %vm1030 = vcmp.eq.s32.totalorder %v763, %v790
          %vm1031 = vcmp.eq.s32.totalorder %v763, %v791
          %vm1032 = vcmp.eq.s32.totalorder %v763, %v792
          %vm1033 = vcmp.eq.s32.totalorder %v763, %v793
          %vm1034 = vcmp.eq.s32.totalorder %v763, %v794
          %vm1035 = vcmp.eq.s32.totalorder %v763, %v795
          %vm1036 = vcmp.eq.s32.totalorder %v763, %v796
          %vm1037 = vcmp.eq.s32.totalorder %v764, %v781
          %vm1038 = vcmp.eq.s32.totalorder %v764, %v782
          %vm1039 = vcmp.eq.s32.totalorder %v764, %v783
          %vm1040 = vcmp.eq.s32.totalorder %v764, %v784
          %vm1041 = vcmp.eq.s32.totalorder %v764, %v785
          %vm1042 = vcmp.eq.s32.totalorder %v764, %v786
          %vm1043 = vcmp.eq.s32.totalorder %v764, %v787
          %vm1044 = vcmp.eq.s32.totalorder %v764, %v788
          %vm1045 = vcmp.eq.s32.totalorder %v764, %v789
          %vm1046 = vcmp.eq.s32.totalorder %v764, %v790
          %vm1047 = vcmp.eq.s32.totalorder %v764, %v791
          %vm1048 = vcmp.eq.s32.totalorder %v764, %v792
          %vm1049 = vcmp.eq.s32.totalorder %v764, %v793
          %vm1050 = vcmp.eq.s32.totalorder %v764, %v794
          %vm1051 = vcmp.eq.s32.totalorder %v764, %v795
          %vm1052 = vcmp.eq.s32.totalorder %v764, %v796
          %vm1053 = vcmp.eq.s32.totalorder %v765, %v781
          %vm1054 = vcmp.eq.s32.totalorder %v765, %v782
          %vm1055 = vcmp.eq.s32.totalorder %v765, %v783
          %vm1056 = vcmp.eq.s32.totalorder %v765, %v784
          %vm1057 = vcmp.eq.s32.totalorder %v765, %v785
          %vm1058 = vcmp.eq.s32.totalorder %v765, %v786
          %vm1059 = vcmp.eq.s32.totalorder %v765, %v787
          %vm1060 = vcmp.eq.s32.totalorder %v765, %v788
          %vm1061 = vcmp.eq.s32.totalorder %v765, %v789
          %vm1062 = vcmp.eq.s32.totalorder %v765, %v790
          %vm1063 = vcmp.eq.s32.totalorder %v765, %v791
          %vm1064 = vcmp.eq.s32.totalorder %v765, %v792
          %vm1065 = vcmp.eq.s32.totalorder %v765, %v793
          %vm1066 = vcmp.eq.s32.totalorder %v765, %v794
          %vm1067 = vcmp.eq.s32.totalorder %v765, %v795
          %vm1068 = vcmp.eq.s32.totalorder %v765, %v796
          %vm1069 = vcmp.eq.s32.totalorder %v766, %v781
          %vm1070 = vcmp.eq.s32.totalorder %v766, %v782
          %vm1071 = vcmp.eq.s32.totalorder %v766, %v783
          %vm1072 = vcmp.eq.s32.totalorder %v766, %v784
          %vm1073 = vcmp.eq.s32.totalorder %v766, %v785
          %vm1074 = vcmp.eq.s32.totalorder %v766, %v786
          %vm1075 = vcmp.eq.s32.totalorder %v766, %v787
          %vm1076 = vcmp.eq.s32.totalorder %v766, %v788
          %vm1077 = vcmp.eq.s32.totalorder %v766, %v789
          %vm1078 = vcmp.eq.s32.totalorder %v766, %v790
          %vm1079 = vcmp.eq.s32.totalorder %v766, %v791
          %vm1080 = vcmp.eq.s32.totalorder %v766, %v792
          %vm1081 = vcmp.eq.s32.totalorder %v766, %v793
          %vm1082 = vcmp.eq.s32.totalorder %v766, %v794
          %vm1083 = vcmp.eq.s32.totalorder %v766, %v795
          %vm1084 = vcmp.eq.s32.totalorder %v766, %v796
          %vm1085 = vcmp.eq.s32.totalorder %v767, %v781
          %vm1086 = vcmp.eq.s32.totalorder %v767, %v782
          %vm1087 = vcmp.eq.s32.totalorder %v767, %v783
          %vm1088 = vcmp.eq.s32.totalorder %v767, %v784
          %vm1089 = vcmp.eq.s32.totalorder %v767, %v785
          %vm1090 = vcmp.eq.s32.totalorder %v767, %v786
          %vm1091 = vcmp.eq.s32.totalorder %v767, %v787
          %vm1092 = vcmp.eq.s32.totalorder %v767, %v788
          %vm1093 = vcmp.eq.s32.totalorder %v767, %v789
          %vm1094 = vcmp.eq.s32.totalorder %v767, %v790
          %vm1095 = vcmp.eq.s32.totalorder %v767, %v791
          %vm1096 = vcmp.eq.s32.totalorder %v767, %v792
          %vm1097 = vcmp.eq.s32.totalorder %v767, %v793
          %vm1098 = vcmp.eq.s32.totalorder %v767, %v794
          %vm1099 = vcmp.eq.s32.totalorder %v767, %v795
          %vm1100 = vcmp.eq.s32.totalorder %v767, %v796
          %vm1101 = vcmp.eq.s32.totalorder %v768, %v781
          %vm1102 = vcmp.eq.s32.totalorder %v768, %v782
          %vm1103 = vcmp.eq.s32.totalorder %v768, %v783
          %vm1104 = vcmp.eq.s32.totalorder %v768, %v784
          %vm1105 = vcmp.eq.s32.totalorder %v768, %v785
          %vm1106 = vcmp.eq.s32.totalorder %v768, %v786
          %vm1107 = vcmp.eq.s32.totalorder %v768, %v787
          %vm1108 = vcmp.eq.s32.totalorder %v768, %v788
          %vm1109 = vcmp.eq.s32.totalorder %v768, %v789
          %vm1110 = vcmp.eq.s32.totalorder %v768, %v790
          %vm1111 = vcmp.eq.s32.totalorder %v768, %v791
          %vm1112 = vcmp.eq.s32.totalorder %v768, %v792
          %vm1113 = vcmp.eq.s32.totalorder %v768, %v793
          %vm1114 = vcmp.eq.s32.totalorder %v768, %v794
          %vm1115 = vcmp.eq.s32.totalorder %v768, %v795
          %vm1116 = vcmp.eq.s32.totalorder %v768, %v796
          %vm1117 = vcmp.eq.s32.totalorder %v769, %v781
          %vm1118 = vcmp.eq.s32.totalorder %v769, %v782
          %vm1119 = vcmp.eq.s32.totalorder %v769, %v783
          %vm1120 = vcmp.eq.s32.totalorder %v769, %v784
          %vm1121 = vcmp.eq.s32.totalorder %v769, %v785
          %vm1122 = vcmp.eq.s32.totalorder %v769, %v786
          %vm1123 = vcmp.eq.s32.totalorder %v769, %v787
          %vm1124 = vcmp.eq.s32.totalorder %v769, %v788
          %vm1125 = vcmp.eq.s32.totalorder %v769, %v789
          %vm1126 = vcmp.eq.s32.totalorder %v769, %v790
          %vm1127 = vcmp.eq.s32.totalorder %v769, %v791
          %vm1128 = vcmp.eq.s32.totalorder %v769, %v792
          %vm1129 = vcmp.eq.s32.totalorder %v769, %v793
          %vm1130 = vcmp.eq.s32.totalorder %v769, %v794
          %vm1131 = vcmp.eq.s32.totalorder %v769, %v795
          %vm1132 = vcmp.eq.s32.totalorder %v769, %v796
          %vm1133 = vcmp.eq.s32.totalorder %v770, %v781
          %vm1134 = vcmp.eq.s32.totalorder %v770, %v782
          %vm1135 = vcmp.eq.s32.totalorder %v770, %v783
          %vm1136 = vcmp.eq.s32.totalorder %v770, %v784
          %vm1137 = vcmp.eq.s32.totalorder %v770, %v785
          %vm1138 = vcmp.eq.s32.totalorder %v770, %v786
          %vm1139 = vcmp.eq.s32.totalorder %v770, %v787
          %vm1140 = vcmp.eq.s32.totalorder %v770, %v788
          %vm1141 = vcmp.eq.s32.totalorder %v770, %v789
          %vm1142 = vcmp.eq.s32.totalorder %v770, %v790
          %vm1143 = vcmp.eq.s32.totalorder %v770, %v791
          %vm1144 = vcmp.eq.s32.totalorder %v770, %v792
          %vm1145 = vcmp.eq.s32.totalorder %v770, %v793
          %vm1146 = vcmp.eq.s32.totalorder %v770, %v794
          %vm1147 = vcmp.eq.s32.totalorder %v770, %v795
          %vm1148 = vcmp.eq.s32.totalorder %v770, %v796
          %vm1149 = vcmp.eq.s32.totalorder %v771, %v781
          %vm1150 = vcmp.eq.s32.totalorder %v771, %v782
          %vm1151 = vcmp.eq.s32.totalorder %v771, %v783
          %vm1152 = vcmp.eq.s32.totalorder %v771, %v784
          %vm1153 = vcmp.eq.s32.totalorder %v771, %v785
          %vm1154 = vcmp.eq.s32.totalorder %v771, %v786
          %vm1155 = vcmp.eq.s32.totalorder %v771, %v787
          %vm1156 = vcmp.eq.s32.totalorder %v771, %v788
          %vm1157 = vcmp.eq.s32.totalorder %v771, %v789
          %vm1158 = vcmp.eq.s32.totalorder %v771, %v790
          %vm1159 = vcmp.eq.s32.totalorder %v771, %v791
          %vm1160 = vcmp.eq.s32.totalorder %v771, %v792
          %vm1161 = vcmp.eq.s32.totalorder %v771, %v793
          %vm1162 = vcmp.eq.s32.totalorder %v771, %v794
          %vm1163 = vcmp.eq.s32.totalorder %v771, %v795
          %vm1164 = vcmp.eq.s32.totalorder %v771, %v796
          %vm1165 = vcmp.eq.s32.totalorder %v772, %v781
          %vm1166 = vcmp.eq.s32.totalorder %v772, %v782
          %vm1167 = vcmp.eq.s32.totalorder %v772, %v783
          %vm1168 = vcmp.eq.s32.totalorder %v772, %v784
          %vm1169 = vcmp.eq.s32.totalorder %v772, %v785
          %vm1170 = vcmp.eq.s32.totalorder %v772, %v786
          %vm1171 = vcmp.eq.s32.totalorder %v772, %v787
          %vm1172 = vcmp.eq.s32.totalorder %v772, %v788
          %vm1173 = vcmp.eq.s32.totalorder %v772, %v789
          %vm1174 = vcmp.eq.s32.totalorder %v772, %v790
          %vm1175 = vcmp.eq.s32.totalorder %v772, %v791
          %vm1176 = vcmp.eq.s32.totalorder %v772, %v792
          %vm1177 = vcmp.eq.s32.totalorder %v772, %v793
          %vm1178 = vcmp.eq.s32.totalorder %v772, %v794
          %vm1179 = vcmp.eq.s32.totalorder %v772, %v795
          %vm1180 = vcmp.eq.s32.totalorder %v772, %v796
          %vm1181 = vcmp.eq.s32.totalorder %v773, %v781
          %vm1182 = vcmp.eq.s32.totalorder %v773, %v782
          %vm1183 = vcmp.eq.s32.totalorder %v773, %v783
          %vm1184 = vcmp.eq.s32.totalorder %v773, %v784
          %vm1185 = vcmp.eq.s32.totalorder %v773, %v785
          %vm1186 = vcmp.eq.s32.totalorder %v773, %v786
          %vm1187 = vcmp.eq.s32.totalorder %v773, %v787
          %vm1188 = vcmp.eq.s32.totalorder %v773, %v788
          %vm1189 = vcmp.eq.s32.totalorder %v773, %v789
          %vm1190 = vcmp.eq.s32.totalorder %v773, %v790
          %vm1191 = vcmp.eq.s32.totalorder %v773, %v791
          %vm1192 = vcmp.eq.s32.totalorder %v773, %v792
          %vm1193 = vcmp.eq.s32.totalorder %v773, %v793
          %vm1194 = vcmp.eq.s32.totalorder %v773, %v794
          %vm1195 = vcmp.eq.s32.totalorder %v773, %v795
          %vm1196 = vcmp.eq.s32.totalorder %v773, %v796
          %vm1197 = vcmp.eq.s32.totalorder %v774, %v781
          %vm1198 = vcmp.eq.s32.totalorder %v774, %v782
          %vm1199 = vcmp.eq.s32.totalorder %v774, %v783
          %vm1200 = vcmp.eq.s32.totalorder %v774, %v784
          %vm1201 = vcmp.eq.s32.totalorder %v774, %v785
          %vm1202 = vcmp.eq.s32.totalorder %v774, %v786
          %vm1203 = vcmp.eq.s32.totalorder %v774, %v787
          %vm1204 = vcmp.eq.s32.totalorder %v774, %v788
          %vm1205 = vcmp.eq.s32.totalorder %v774, %v789
          %vm1206 = vcmp.eq.s32.totalorder %v774, %v790
          %vm1207 = vcmp.eq.s32.totalorder %v774, %v791
          %vm1208 = vcmp.eq.s32.totalorder %v774, %v792
          %vm1209 = vcmp.eq.s32.totalorder %v774, %v793
          %vm1210 = vcmp.eq.s32.totalorder %v774, %v794
          %vm1211 = vcmp.eq.s32.totalorder %v774, %v795
          %vm1212 = vcmp.eq.s32.totalorder %v774, %v796
          %vm1213 = vcmp.eq.s32.totalorder %v775, %v781
          %vm1214 = vcmp.eq.s32.totalorder %v775, %v782
          %vm1215 = vcmp.eq.s32.totalorder %v775, %v783
          %vm1216 = vcmp.eq.s32.totalorder %v775, %v784
          %vm1217 = vcmp.eq.s32.totalorder %v775, %v785
          %vm1218 = vcmp.eq.s32.totalorder %v775, %v786
          %vm1219 = vcmp.eq.s32.totalorder %v775, %v787
          %vm1220 = vcmp.eq.s32.totalorder %v775, %v788
          %vm1221 = vcmp.eq.s32.totalorder %v775, %v789
          %vm1222 = vcmp.eq.s32.totalorder %v775, %v790
          %vm1223 = vcmp.eq.s32.totalorder %v775, %v791
          %vm1224 = vcmp.eq.s32.totalorder %v775, %v792
          %vm1225 = vcmp.eq.s32.totalorder %v775, %v793
          %vm1226 = vcmp.eq.s32.totalorder %v775, %v794
          %vm1227 = vcmp.eq.s32.totalorder %v775, %v795
          %vm1228 = vcmp.eq.s32.totalorder %v775, %v796
          %vm1229 = vcmp.eq.s32.totalorder %v776, %v781
          %vm1230 = vcmp.eq.s32.totalorder %v776, %v782
          %vm1231 = vcmp.eq.s32.totalorder %v776, %v783
          %vm1232 = vcmp.eq.s32.totalorder %v776, %v784
          %vm1233 = vcmp.eq.s32.totalorder %v776, %v785
          %vm1234 = vcmp.eq.s32.totalorder %v776, %v786
          %vm1235 = vcmp.eq.s32.totalorder %v776, %v787
          %vm1236 = vcmp.eq.s32.totalorder %v776, %v788
          %vm1237 = vcmp.eq.s32.totalorder %v776, %v789
          %vm1238 = vcmp.eq.s32.totalorder %v776, %v790
          %vm1239 = vcmp.eq.s32.totalorder %v776, %v791
          %vm1240 = vcmp.eq.s32.totalorder %v776, %v792
          %vm1241 = vcmp.eq.s32.totalorder %v776, %v793
          %vm1242 = vcmp.eq.s32.totalorder %v776, %v794
          %vm1243 = vcmp.eq.s32.totalorder %v776, %v795
          %vm1244 = vcmp.eq.s32.totalorder %v776, %v796
          %vm1245 = vcmp.eq.s32.totalorder %v777, %v781
          %vm1246 = vcmp.eq.s32.totalorder %v777, %v782
          %vm1247 = vcmp.eq.s32.totalorder %v777, %v783
          %vm1248 = vcmp.eq.s32.totalorder %v777, %v784
          %vm1249 = vcmp.eq.s32.totalorder %v777, %v785
          %vm1250 = vcmp.eq.s32.totalorder %v777, %v786
          %vm1251 = vcmp.eq.s32.totalorder %v777, %v787
          %vm1252 = vcmp.eq.s32.totalorder %v777, %v788
          %vm1253 = vcmp.eq.s32.totalorder %v777, %v789
          %vm1254 = vcmp.eq.s32.totalorder %v777, %v790
          %vm1255 = vcmp.eq.s32.totalorder %v777, %v791
          %vm1256 = vcmp.eq.s32.totalorder %v777, %v792
          %vm1257 = vcmp.eq.s32.totalorder %v777, %v793
          %vm1258 = vcmp.eq.s32.totalorder %v777, %v794
          %vm1259 = vcmp.eq.s32.totalorder %v777, %v795
          %vm1260 = vcmp.eq.s32.totalorder %v777, %v796
          %vm1261 = vcmp.eq.s32.totalorder %v778, %v781
          %vm1262 = vcmp.eq.s32.totalorder %v778, %v782
          %vm1263 = vcmp.eq.s32.totalorder %v778, %v783
          %vm1264 = vcmp.eq.s32.totalorder %v778, %v784
          %vm1265 = vcmp.eq.s32.totalorder %v778, %v785
          %vm1266 = vcmp.eq.s32.totalorder %v778, %v786
          %vm1267 = vcmp.eq.s32.totalorder %v778, %v787
          %vm1268 = vcmp.eq.s32.totalorder %v778, %v788
          %vm1269 = vcmp.eq.s32.totalorder %v778, %v789
          %vm1270 = vcmp.eq.s32.totalorder %v778, %v790
          %vm1271 = vcmp.eq.s32.totalorder %v778, %v791
          %vm1272 = vcmp.eq.s32.totalorder %v778, %v792
          %vm1273 = vcmp.eq.s32.totalorder %v778, %v793
          %vm1274 = vcmp.eq.s32.totalorder %v778, %v794
          %vm1275 = vcmp.eq.s32.totalorder %v778, %v795
          %vm1276 = vcmp.eq.s32.totalorder %v778, %v796
          %vm1277 = vcmp.eq.s32.totalorder %v779, %v781
          %vm1278 = vcmp.eq.s32.totalorder %v779, %v782
          %vm1279 = vcmp.eq.s32.totalorder %v779, %v783
          %vm1280 = vcmp.eq.s32.totalorder %v779, %v784
          %vm1281 = vcmp.eq.s32.totalorder %v779, %v785
          %vm1282 = vcmp.eq.s32.totalorder %v779, %v786
          %vm1283 = vcmp.eq.s32.totalorder %v779, %v787
          %vm1284 = vcmp.eq.s32.totalorder %v779, %v788
          %vm1285 = vcmp.eq.s32.totalorder %v779, %v789
          %vm1286 = vcmp.eq.s32.totalorder %v779, %v790
          %vm1287 = vcmp.eq.s32.totalorder %v779, %v791
          %vm1288 = vcmp.eq.s32.totalorder %v779, %v792
          %vm1289 = vcmp.eq.s32.totalorder %v779, %v793
          %vm1290 = vcmp.eq.s32.totalorder %v779, %v794
          %vm1291 = vcmp.eq.s32.totalorder %v779, %v795
          %vm1292 = vcmp.eq.s32.totalorder %v779, %v796
          %vm1293 = vcmp.eq.s32.totalorder %v780, %v781
          %vm1294 = vcmp.eq.s32.totalorder %v780, %v782
          %vm1295 = vcmp.eq.s32.totalorder %v780, %v783
          %vm1296 = vcmp.eq.s32.totalorder %v780, %v784
          %vm1297 = vcmp.eq.s32.totalorder %v780, %v785
          %vm1298 = vcmp.eq.s32.totalorder %v780, %v786
          %vm1299 = vcmp.eq.s32.totalorder %v780, %v787
          %vm1300 = vcmp.eq.s32.totalorder %v780, %v788
          %vm1301 = vcmp.eq.s32.totalorder %v780, %v789
          %vm1302 = vcmp.eq.s32.totalorder %v780, %v790
          %vm1303 = vcmp.eq.s32.totalorder %v780, %v791
          %vm1304 = vcmp.eq.s32.totalorder %v780, %v792
          %vm1305 = vcmp.eq.s32.totalorder %v780, %v793
          %vm1306 = vcmp.eq.s32.totalorder %v780, %v794
          %vm1307 = vcmp.eq.s32.totalorder %v780, %v795
          %vm1308 = vcmp.eq.s32.totalorder %v780, %v796
          %v1309 = vsel %vm797, 1, 0
          %v1310 = vsel %vm798, 1, 0
          %v1311 = vsel %vm799, 1, 0
          %v1312 = vsel %vm800, 1, 0
          %v1313 = vsel %vm801, 1, 0
          %v1314 = vsel %vm802, 1, 0
          %v1315 = vsel %vm803, 1, 0
          %v1316 = vsel %vm804, 1, 0
          %v1317 = vsel %vm805, 1, 0
          %v1318 = vsel %vm806, 1, 0
          %v1319 = vsel %vm807, 1, 0
          %v1320 = vsel %vm808, 1, 0
          %v1321 = vsel %vm809, 1, 0
          %v1322 = vsel %vm810, 1, 0
          %v1323 = vsel %vm811, 1, 0
          %v1324 = vsel %vm812, 1, 0
          %v1325 = vsel %vm813, 1, 0
          %v1326 = vsel %vm814, 1, 0
          %v1327 = vsel %vm815, 1, 0
          %v1328 = vsel %vm816, 1, 0
          %v1329 = vsel %vm817, 1, 0
          %v1330 = vsel %vm818, 1, 0
          %v1331 = vsel %vm819, 1, 0
          %v1332 = vsel %vm820, 1, 0
          %v1333 = vsel %vm821, 1, 0
          %v1334 = vsel %vm822, 1, 0
          %v1335 = vsel %vm823, 1, 0
          %v1336 = vsel %vm824, 1, 0
          %v1337 = vsel %vm825, 1, 0
          %v1338 = vsel %vm826, 1, 0
          %v1339 = vsel %vm827, 1, 0
          %v1340 = vsel %vm828, 1, 0
          %v1341 = vsel %vm829, 1, 0
          %v1342 = vsel %vm830, 1, 0
          %v1343 = vsel %vm831, 1, 0
          %v1344 = vsel %vm832, 1, 0
          %v1345 = vsel %vm833, 1, 0
          %v1346 = vsel %vm834, 1, 0
          %v1347 = vsel %vm835, 1, 0
          %v1348 = vsel %vm836, 1, 0
          %v1349 = vsel %vm837, 1, 0
          %v1350 = vsel %vm838, 1, 0
          %v1351 = vsel %vm839, 1, 0
          %v1352 = vsel %vm840, 1, 0
          %v1353 = vsel %vm841, 1, 0
          %v1354 = vsel %vm842, 1, 0
          %v1355 = vsel %vm843, 1, 0
          %v1356 = vsel %vm844, 1, 0
          %v1357 = vsel %vm845, 1, 0
          %v1358 = vsel %vm846, 1, 0
          %v1359 = vsel %vm847, 1, 0
          %v1360 = vsel %vm848, 1, 0
          %v1361 = vsel %vm849, 1, 0
          %v1362 = vsel %vm850, 1, 0
          %v1363 = vsel %vm851, 1, 0
          %v1364 = vsel %vm852, 1, 0
          %v1365 = vsel %vm853, 1, 0
          %v1366 = vsel %vm854, 1, 0
          %v1367 = vsel %vm855, 1, 0
          %v1368 = vsel %vm856, 1, 0
          %v1369 = vsel %vm857, 1, 0
          %v1370 = vsel %vm858, 1, 0
          %v1371 = vsel %vm859, 1, 0
          %v1372 = vsel %vm860, 1, 0
          %v1373 = vsel %vm861, 1, 0
          %v1374 = vsel %vm862, 1, 0
          %v1375 = vsel %vm863, 1, 0
          %v1376 = vsel %vm864, 1, 0
          %v1377 = vsel %vm865, 1, 0
          %v1378 = vsel %vm866, 1, 0
          %v1379 = vsel %vm867, 1, 0
          %v1380 = vsel %vm868, 1, 0
          %v1381 = vsel %vm869, 1, 0
          %v1382 = vsel %vm870, 1, 0
          %v1383 = vsel %vm871, 1, 0
          %v1384 = vsel %vm872, 1, 0
          %v1385 = vsel %vm873, 1, 0
          %v1386 = vsel %vm874, 1, 0
          %v1387 = vsel %vm875, 1, 0
          %v1388 = vsel %vm876, 1, 0
          %v1389 = vsel %vm877, 1, 0
          %v1390 = vsel %vm878, 1, 0
          %v1391 = vsel %vm879, 1, 0
          %v1392 = vsel %vm880, 1, 0
          %v1393 = vsel %vm881, 1, 0
          %v1394 = vsel %vm882, 1, 0
          %v1395 = vsel %vm883, 1, 0
          %v1396 = vsel %vm884, 1, 0
          %v1397 = vsel %vm885, 1, 0
          %v1398 = vsel %vm886, 1, 0
          %v1399 = vsel %vm887, 1, 0
          %v1400 = vsel %vm888, 1, 0
          %v1401 = vsel %vm889, 1, 0
          %v1402 = vsel %vm890, 1, 0
          %v1403 = vsel %vm891, 1, 0
          %v1404 = vsel %vm892, 1, 0
          %v1405 = vsel %vm893, 1, 0
          %v1406 = vsel %vm894, 1, 0
          %v1407 = vsel %vm895, 1, 0
          %v1408 = vsel %vm896, 1, 0
          %v1409 = vsel %vm897, 1, 0
          %v1410 = vsel %vm898, 1, 0
          %v1411 = vsel %vm899, 1, 0
          %v1412 = vsel %vm900, 1, 0
          %v1413 = vsel %vm901, 1, 0
          %v1414 = vsel %vm902, 1, 0
          %v1415 = vsel %vm903, 1, 0
          %v1416 = vsel %vm904, 1, 0
          %v1417 = vsel %vm905, 1, 0
          %v1418 = vsel %vm906, 1, 0
          %v1419 = vsel %vm907, 1, 0
          %v1420 = vsel %vm908, 1, 0
          %v1421 = vsel %vm909, 1, 0
          %v1422 = vsel %vm910, 1, 0
          %v1423 = vsel %vm911, 1, 0
          %v1424 = vsel %vm912, 1, 0
          %v1425 = vsel %vm913, 1, 0
          %v1426 = vsel %vm914, 1, 0
          %v1427 = vsel %vm915, 1, 0
          %v1428 = vsel %vm916, 1, 0
          %v1429 = vsel %vm917, 1, 0
          %v1430 = vsel %vm918, 1, 0
          %v1431 = vsel %vm919, 1, 0
          %v1432 = vsel %vm920, 1, 0
          %v1433 = vsel %vm921, 1, 0
          %v1434 = vsel %vm922, 1, 0
          %v1435 = vsel %vm923, 1, 0
          %v1436 = vsel %vm924, 1, 0
          %v1437 = vsel %vm925, 1, 0
          %v1438 = vsel %vm926, 1, 0
          %v1439 = vsel %vm927, 1, 0
          %v1440 = vsel %vm928, 1, 0
          %v1441 = vsel %vm929, 1, 0
          %v1442 = vsel %vm930, 1, 0
          %v1443 = vsel %vm931, 1, 0
          %v1444 = vsel %vm932, 1, 0
          %v1445 = vsel %vm933, 1, 0
          %v1446 = vsel %vm934, 1, 0
          %v1447 = vsel %vm935, 1, 0
          %v1448 = vsel %vm936, 1, 0
          %v1449 = vsel %vm937, 1, 0
          %v1450 = vsel %vm938, 1, 0
          %v1451 = vsel %vm939, 1, 0
          %v1452 = vsel %vm940, 1, 0
          %v1453 = vsel %vm941, 1, 0
          %v1454 = vsel %vm942, 1, 0
          %v1455 = vsel %vm943, 1, 0
          %v1456 = vsel %vm944, 1, 0
          %v1457 = vsel %vm945, 1, 0
          %v1458 = vsel %vm946, 1, 0
          %v1459 = vsel %vm947, 1, 0
          %v1460 = vsel %vm948, 1, 0
          %v1461 = vsel %vm949, 1, 0
          %v1462 = vsel %vm950, 1, 0
          %v1463 = vsel %vm951, 1, 0
          %v1464 = vsel %vm952, 1, 0
          %v1465 = vsel %vm953, 1, 0
          %v1466 = vsel %vm954, 1, 0
          %v1467 = vsel %vm955, 1, 0
          %v1468 = vsel %vm956, 1, 0
          %v1469 = vsel %vm957, 1, 0
          %v1470 = vsel %vm958, 1, 0
          %v1471 = vsel %vm959, 1, 0
          %v1472 = vsel %vm960, 1, 0
          %v1473 = vsel %vm961, 1, 0
          %v1474 = vsel %vm962, 1, 0
          %v1475 = vsel %vm963, 1, 0
          %v1476 = vsel %vm964, 1, 0
          %v1477 = vsel %vm965, 1, 0
          %v1478 = vsel %vm966, 1, 0
          %v1479 = vsel %vm967, 1, 0
          %v1480 = vsel %vm968, 1, 0
          %v1481 = vsel %vm969, 1, 0
          %v1482 = vsel %vm970, 1, 0
          %v1483 = vsel %vm971, 1, 0
          %v1484 = vsel %vm972, 1, 0
          %v1485 = vsel %vm973, 1, 0
          %v1486 = vsel %vm974, 1, 0
          %v1487 = vsel %vm975, 1, 0
          %v1488 = vsel %vm976, 1, 0
          %v1489 = vsel %vm977, 1, 0
          %v1490 = vsel %vm978, 1, 0
          %v1491 = vsel %vm979, 1, 0
          %v1492 = vsel %vm980, 1, 0
          %v1493 = vsel %vm981, 1, 0
          %v1494 = vsel %vm982, 1, 0
          %v1495 = vsel %vm983, 1, 0
          %v1496 = vsel %vm984, 1, 0
          %v1497 = vsel %vm985, 1, 0
          %v1498 = vsel %vm986, 1, 0
          %v1499 = vsel %vm987, 1, 0
          %v1500 = vsel %vm988, 1, 0
          %v1501 = vsel %vm989, 1, 0
          %v1502 = vsel %vm990, 1, 0
          %v1503 = vsel %vm991, 1, 0
          %v1504 = vsel %vm992, 1, 0
          %v1505 = vsel %vm993, 1, 0
          %v1506 = vsel %vm994, 1, 0
          %v1507 = vsel %vm995, 1, 0
          %v1508 = vsel %vm996, 1, 0
          %v1509 = vsel %vm997, 1, 0
          %v1510 = vsel %vm998, 1, 0
          %v1511 = vsel %vm999, 1, 0
          %v1512 = vsel %vm1000, 1, 0
          %v1513 = vsel %vm1001, 1, 0
          %v1514 = vsel %vm1002, 1, 0
          %v1515 = vsel %vm1003, 1, 0
          %v1516 = vsel %vm1004, 1, 0
          %v1517 = vsel %vm1005, 1, 0
          %v1518 = vsel %vm1006, 1, 0
          %v1519 = vsel %vm1007, 1, 0
          %v1520 = vsel %vm1008, 1, 0
          %v1521 = vsel %vm1009, 1, 0
          %v1522 = vsel %vm1010, 1, 0
          %v1523 = vsel %vm1011, 1, 0
          %v1524 = vsel %vm1012, 1, 0
          %v1525 = vsel %vm1013, 1, 0
          %v1526 = vsel %vm1014, 1, 0
          %v1527 = vsel %vm1015, 1, 0
          %v1528 = vsel %vm1016, 1, 0
          %v1529 = vsel %vm1017, 1, 0
          %v1530 = vsel %vm1018, 1, 0
          %v1531 = vsel %vm1019, 1, 0
          %v1532 = vsel %vm1020, 1, 0
          %v1533 = vsel %vm1021, 1, 0
          %v1534 = vsel %vm1022, 1, 0
          %v1535 = vsel %vm1023, 1, 0
          %v1536 = vsel %vm1024, 1, 0
          %v1537 = vsel %vm1025, 1, 0
          %v1538 = vsel %vm1026, 1, 0
          %v1539 = vsel %vm1027, 1, 0
          %v1540 = vsel %vm1028, 1, 0
          %v1541 = vsel %vm1029, 1, 0
          %v1542 = vsel %vm1030, 1, 0
          %v1543 = vsel %vm1031, 1, 0
          %v1544 = vsel %vm1032, 1, 0
          %v1545 = vsel %vm1033, 1, 0
          %v1546 = vsel %vm1034, 1, 0
          %v1547 = vsel %vm1035, 1, 0
          %v1548 = vsel %vm1036, 1, 0
          %v1549 = vsel %vm1037, 1, 0
          %v1550 = vsel %vm1038, 1, 0
          %v1551 = vsel %vm1039, 1, 0
          %v1552 = vsel %vm1040, 1, 0
          %v1553 = vsel %vm1041, 1, 0
          %v1554 = vsel %vm1042, 1, 0
          %v1555 = vsel %vm1043, 1, 0
          %v1556 = vsel %vm1044, 1, 0
          %v1557 = vsel %vm1045, 1, 0
          %v1558 = vsel %vm1046, 1, 0
          %v1559 = vsel %vm1047, 1, 0
          %v1560 = vsel %vm1048, 1, 0
          %v1561 = vsel %vm1049, 1, 0
          %v1562 = vsel %vm1050, 1, 0
          %v1563 = vsel %vm1051, 1, 0
          %v1564 = vsel %vm1052, 1, 0
          %v1565 = vsel %vm1053, 1, 0
          %v1566 = vsel %vm1054, 1, 0
          %v1567 = vsel %vm1055, 1, 0
          %v1568 = vsel %vm1056, 1, 0
          %v1569 = vsel %vm1057, 1, 0
          %v1570 = vsel %vm1058, 1, 0
          %v1571 = vsel %vm1059, 1, 0
          %v1572 = vsel %vm1060, 1, 0
          %v1573 = vsel %vm1061, 1, 0
          %v1574 = vsel %vm1062, 1, 0
          %v1575 = vsel %vm1063, 1, 0
          %v1576 = vsel %vm1064, 1, 0
          %v1577 = vsel %vm1065, 1, 0
          %v1578 = vsel %vm1066, 1, 0
          %v1579 = vsel %vm1067, 1, 0
          %v1580 = vsel %vm1068, 1, 0
          %v1581 = vsel %vm1069, 1, 0
          %v1582 = vsel %vm1070, 1, 0
          %v1583 = vsel %vm1071, 1, 0
          %v1584 = vsel %vm1072, 1, 0
          %v1585 = vsel %vm1073, 1, 0
          %v1586 = vsel %vm1074, 1, 0
          %v1587 = vsel %vm1075, 1, 0
          %v1588 = vsel %vm1076, 1, 0
          %v1589 = vsel %vm1077, 1, 0
          %v1590 = vsel %vm1078, 1, 0
          %v1591 = vsel %vm1079, 1, 0
          %v1592 = vsel %vm1080, 1, 0
          %v1593 = vsel %vm1081, 1, 0
          %v1594 = vsel %vm1082, 1, 0
          %v1595 = vsel %vm1083, 1, 0
          %v1596 = vsel %vm1084, 1, 0
          %v1597 = vsel %vm1085, 1, 0
          %v1598 = vsel %vm1086, 1, 0
          %v1599 = vsel %vm1087, 1, 0
          %v1600 = vsel %vm1088, 1, 0
          %v1601 = vsel %vm1089, 1, 0
          %v1602 = vsel %vm1090, 1, 0
          %v1603 = vsel %vm1091, 1, 0
          %v1604 = vsel %vm1092, 1, 0
          %v1605 = vsel %vm1093, 1, 0
          %v1606 = vsel %vm1094, 1, 0
          %v1607 = vsel %vm1095, 1, 0
          %v1608 = vsel %vm1096, 1, 0
          %v1609 = vsel %vm1097, 1, 0
          %v1610 = vsel %vm1098, 1, 0
          %v1611 = vsel %vm1099, 1, 0
          %v1612 = vsel %vm1100, 1, 0
          %v1613 = vsel %vm1101, 1, 0
          %v1614 = vsel %vm1102, 1, 0
          %v1615 = vsel %vm1103, 1, 0
          %v1616 = vsel %vm1104, 1, 0
          %v1617 = vsel %vm1105, 1, 0
          %v1618 = vsel %vm1106, 1, 0
          %v1619 = vsel %vm1107, 1, 0
          %v1620 = vsel %vm1108, 1, 0
          %v1621 = vsel %vm1109, 1, 0
          %v1622 = vsel %vm1110, 1, 0
          %v1623 = vsel %vm1111, 1, 0
          %v1624 = vsel %vm1112, 1, 0
          %v1625 = vsel %vm1113, 1, 0
          %v1626 = vsel %vm1114, 1, 0
          %v1627 = vsel %vm1115, 1, 0
          %v1628 = vsel %vm1116, 1, 0
          %v1629 = vsel %vm1117, 1, 0
          %v1630 = vsel %vm1118, 1, 0
          %v1631 = vsel %vm1119, 1, 0
          %v1632 = vsel %vm1120, 1, 0
          %v1633 = vsel %vm1121, 1, 0
          %v1634 = vsel %vm1122, 1, 0
          %v1635 = vsel %vm1123, 1, 0
          %v1636 = vsel %vm1124, 1, 0
          %v1637 = vsel %vm1125, 1, 0
          %v1638 = vsel %vm1126, 1, 0
          %v1639 = vsel %vm1127, 1, 0
          %v1640 = vsel %vm1128, 1, 0
          %v1641 = vsel %vm1129, 1, 0
          %v1642 = vsel %vm1130, 1, 0
          %v1643 = vsel %vm1131, 1, 0
          %v1644 = vsel %vm1132, 1, 0
          %v1645 = vsel %vm1133, 1, 0
          %v1646 = vsel %vm1134, 1, 0
          %v1647 = vsel %vm1135, 1, 0
          %v1648 = vsel %vm1136, 1, 0
          %v1649 = vsel %vm1137, 1, 0
          %v1650 = vsel %vm1138, 1, 0
          %v1651 = vsel %vm1139, 1, 0
          %v1652 = vsel %vm1140, 1, 0
          %v1653 = vsel %vm1141, 1, 0
          %v1654 = vsel %vm1142, 1, 0
          %v1655 = vsel %vm1143, 1, 0
          %v1656 = vsel %vm1144, 1, 0
          %v1657 = vsel %vm1145, 1, 0
          %v1658 = vsel %vm1146, 1, 0
          %v1659 = vsel %vm1147, 1, 0
          %v1660 = vsel %vm1148, 1, 0
          %v1661 = vsel %vm1149, 1, 0
          %v1662 = vsel %vm1150, 1, 0
          %v1663 = vsel %vm1151, 1, 0
          %v1664 = vsel %vm1152, 1, 0
          %v1665 = vsel %vm1153, 1, 0
          %v1666 = vsel %vm1154, 1, 0
          %v1667 = vsel %vm1155, 1, 0
          %v1668 = vsel %vm1156, 1, 0
          %v1669 = vsel %vm1157, 1, 0
          %v1670 = vsel %vm1158, 1, 0
          %v1671 = vsel %vm1159, 1, 0
          %v1672 = vsel %vm1160, 1, 0
          %v1673 = vsel %vm1161, 1, 0
          %v1674 = vsel %vm1162, 1, 0
          %v1675 = vsel %vm1163, 1, 0
          %v1676 = vsel %vm1164, 1, 0
          %v1677 = vsel %vm1165, 1, 0
          %v1678 = vsel %vm1166, 1, 0
          %v1679 = vsel %vm1167, 1, 0
          %v1680 = vsel %vm1168, 1, 0
          %v1681 = vsel %vm1169, 1, 0
          %v1682 = vsel %vm1170, 1, 0
          %v1683 = vsel %vm1171, 1, 0
          %v1684 = vsel %vm1172, 1, 0
          %v1685 = vsel %vm1173, 1, 0
          %v1686 = vsel %vm1174, 1, 0
          %v1687 = vsel %vm1175, 1, 0
          %v1688 = vsel %vm1176, 1, 0
          %v1689 = vsel %vm1177, 1, 0
          %v1690 = vsel %vm1178, 1, 0
          %v1691 = vsel %vm1179, 1, 0
          %v1692 = vsel %vm1180, 1, 0
          %v1693 = vsel %vm1181, 1, 0
          %v1694 = vsel %vm1182, 1, 0
          %v1695 = vsel %vm1183, 1, 0
          %v1696 = vsel %vm1184, 1, 0
          %v1697 = vsel %vm1185, 1, 0
          %v1698 = vsel %vm1186, 1, 0
          %v1699 = vsel %vm1187, 1, 0
          %v1700 = vsel %vm1188, 1, 0
          %v1701 = vsel %vm1189, 1, 0
          %v1702 = vsel %vm1190, 1, 0
          %v1703 = vsel %vm1191, 1, 0
          %v1704 = vsel %vm1192, 1, 0
          %v1705 = vsel %vm1193, 1, 0
          %v1706 = vsel %vm1194, 1, 0
          %v1707 = vsel %vm1195, 1, 0
          %v1708 = vsel %vm1196, 1, 0
          %v1709 = vsel %vm1197, 1, 0
          %v1710 = vsel %vm1198, 1, 0
          %v1711 = vsel %vm1199, 1, 0
          %v1712 = vsel %vm1200, 1, 0
          %v1713 = vsel %vm1201, 1, 0
          %v1714 = vsel %vm1202, 1, 0
          %v1715 = vsel %vm1203, 1, 0
          %v1716 = vsel %vm1204, 1, 0
          %v1717 = vsel %vm1205, 1, 0
          %v1718 = vsel %vm1206, 1, 0
          %v1719 = vsel %vm1207, 1, 0
          %v1720 = vsel %vm1208, 1, 0
          %v1721 = vsel %vm1209, 1, 0
          %v1722 = vsel %vm1210, 1, 0
          %v1723 = vsel %vm1211, 1, 0
          %v1724 = vsel %vm1212, 1, 0
          %v1725 = vsel %vm1213, 1, 0
          %v1726 = vsel %vm1214, 1, 0
          %v1727 = vsel %vm1215, 1, 0
          %v1728 = vsel %vm1216, 1, 0
          %v1729 = vsel %vm1217, 1, 0
          %v1730 = vsel %vm1218, 1, 0
          %v1731 = vsel %vm1219, 1, 0
          %v1732 = vsel %vm1220, 1, 0
          %v1733 = vsel %vm1221, 1, 0
          %v1734 = vsel %vm1222, 1, 0
          %v1735 = vsel %vm1223, 1, 0
          %v1736 = vsel %vm1224, 1, 0
          %v1737 = vsel %vm1225, 1, 0
          %v1738 = vsel %vm1226, 1, 0
          %v1739 = vsel %vm1227, 1, 0
          %v1740 = vsel %vm1228, 1, 0
          %v1741 = vsel %vm1229, 1, 0
          %v1742 = vsel %vm1230, 1, 0
          %v1743 = vsel %vm1231, 1, 0
          %v1744 = vsel %vm1232, 1, 0
          %v1745 = vsel %vm1233, 1, 0
          %v1746 = vsel %vm1234, 1, 0
          %v1747 = vsel %vm1235, 1, 0
          %v1748 = vsel %vm1236, 1, 0
          %v1749 = vsel %vm1237, 1, 0
          %v1750 = vsel %vm1238, 1, 0
          %v1751 = vsel %vm1239, 1, 0
          %v1752 = vsel %vm1240, 1, 0
          %v1753 = vsel %vm1241, 1, 0
          %v1754 = vsel %vm1242, 1, 0
          %v1755 = vsel %vm1243, 1, 0
          %v1756 = vsel %vm1244, 1, 0
          %v1757 = vsel %vm1245, 1, 0
          %v1758 = vsel %vm1246, 1, 0
          %v1759 = vsel %vm1247, 1, 0
          %v1760 = vsel %vm1248, 1, 0
          %v1761 = vsel %vm1249, 1, 0
          %v1762 = vsel %vm1250, 1, 0
          %v1763 = vsel %vm1251, 1, 0
          %v1764 = vsel %vm1252, 1, 0
          %v1765 = vsel %vm1253, 1, 0
          %v1766 = vsel %vm1254, 1, 0
          %v1767 = vsel %vm1255, 1, 0
          %v1768 = vsel %vm1256, 1, 0
          %v1769 = vsel %vm1257, 1, 0
          %v1770 = vsel %vm1258, 1, 0
          %v1771 = vsel %vm1259, 1, 0
          %v1772 = vsel %vm1260, 1, 0
          %v1773 = vsel %vm1261, 1, 0
          %v1774 = vsel %vm1262, 1, 0
          %v1775 = vsel %vm1263, 1, 0
          %v1776 = vsel %vm1264, 1, 0
          %v1777 = vsel %vm1265, 1, 0
          %v1778 = vsel %vm1266, 1, 0
          %v1779 = vsel %vm1267, 1, 0
          %v1780 = vsel %vm1268, 1, 0
          %v1781 = vsel %vm1269, 1, 0
          %v1782 = vsel %vm1270, 1, 0
          %v1783 = vsel %vm1271, 1, 0
          %v1784 = vsel %vm1272, 1, 0
          %v1785 = vsel %vm1273, 1, 0
          %v1786 = vsel %vm1274, 1, 0
          %v1787 = vsel %vm1275, 1, 0
          %v1788 = vsel %vm1276, 1, 0
          %v1789 = vsel %vm1277, 1, 0
          %v1790 = vsel %vm1278, 1, 0
          %v1791 = vsel %vm1279, 1, 0
          %v1792 = vsel %vm1280, 1, 0
          %v1793 = vsel %vm1281, 1, 0
          %v1794 = vsel %vm1282, 1, 0
          %v1795 = vsel %vm1283, 1, 0
          %v1796 = vsel %vm1284, 1, 0
          %v1797 = vsel %vm1285, 1, 0
          %v1798 = vsel %vm1286, 1, 0
          %v1799 = vsel %vm1287, 1, 0
          %v1800 = vsel %vm1288, 1, 0
          %v1801 = vsel %vm1289, 1, 0
          %v1802 = vsel %vm1290, 1, 0
          %v1803 = vsel %vm1291, 1, 0
          %v1804 = vsel %vm1292, 1, 0
          %v1805 = vsel %vm1293, 1, 0
          %v1806 = vsel %vm1294, 1, 0
          %v1807 = vsel %vm1295, 1, 0
          %v1808 = vsel %vm1296, 1, 0
          %v1809 = vsel %vm1297, 1, 0
          %v1810 = vsel %vm1298, 1, 0
          %v1811 = vsel %vm1299, 1, 0
          %v1812 = vsel %vm1300, 1, 0
          %v1813 = vsel %vm1301, 1, 0
          %v1814 = vsel %vm1302, 1, 0
          %v1815 = vsel %vm1303, 1, 0
          %v1816 = vsel %vm1304, 1, 0
          %v1817 = vsel %vm1305, 1, 0
          %v1818 = vsel %vm1306, 1, 0
          %v1819 = vsel %vm1307, 1, 0
          %v1820 = vsel %vm1308, 1, 0
          %v1821 = vcvt.s32.f32 %v1309
          %v1822 = vcvt.s32.f32 %v1310
          %v1823 = vcvt.s32.f32 %v1311
          %v1824 = vcvt.s32.f32 %v1312
          %v1825 = vcvt.s32.f32 %v1313
          %v1826 = vcvt.s32.f32 %v1314
          %v1827 = vcvt.s32.f32 %v1315
          %v1828 = vcvt.s32.f32 %v1316
          %v1829 = vcvt.s32.f32 %v1317
          %v1830 = vcvt.s32.f32 %v1318
          %v1831 = vcvt.s32.f32 %v1319
          %v1832 = vcvt.s32.f32 %v1320
          %v1833 = vcvt.s32.f32 %v1321
          %v1834 = vcvt.s32.f32 %v1322
          %v1835 = vcvt.s32.f32 %v1323
          %v1836 = vcvt.s32.f32 %v1324
          %v1837 = vcvt.s32.f32 %v1325
          %v1838 = vcvt.s32.f32 %v1326
          %v1839 = vcvt.s32.f32 %v1327
          %v1840 = vcvt.s32.f32 %v1328
          %v1841 = vcvt.s32.f32 %v1329
          %v1842 = vcvt.s32.f32 %v1330
          %v1843 = vcvt.s32.f32 %v1331
          %v1844 = vcvt.s32.f32 %v1332
          %v1845 = vcvt.s32.f32 %v1333
          %v1846 = vcvt.s32.f32 %v1334
          %v1847 = vcvt.s32.f32 %v1335
          %v1848 = vcvt.s32.f32 %v1336
          %v1849 = vcvt.s32.f32 %v1337
          %v1850 = vcvt.s32.f32 %v1338
          %v1851 = vcvt.s32.f32 %v1339
          %v1852 = vcvt.s32.f32 %v1340
          %v1853 = vcvt.s32.f32 %v1341
          %v1854 = vcvt.s32.f32 %v1342
          %v1855 = vcvt.s32.f32 %v1343
          %v1856 = vcvt.s32.f32 %v1344
          %v1857 = vcvt.s32.f32 %v1345
          %v1858 = vcvt.s32.f32 %v1346
          %v1859 = vcvt.s32.f32 %v1347
          %v1860 = vcvt.s32.f32 %v1348
          %v1861 = vcvt.s32.f32 %v1349
          %v1862 = vcvt.s32.f32 %v1350
          %v1863 = vcvt.s32.f32 %v1351
          %v1864 = vcvt.s32.f32 %v1352
          %v1865 = vcvt.s32.f32 %v1353
          %v1866 = vcvt.s32.f32 %v1354
          %v1867 = vcvt.s32.f32 %v1355
          %v1868 = vcvt.s32.f32 %v1356
          %v1869 = vcvt.s32.f32 %v1357
          %v1870 = vcvt.s32.f32 %v1358
          %v1871 = vcvt.s32.f32 %v1359
          %v1872 = vcvt.s32.f32 %v1360
          %v1873 = vcvt.s32.f32 %v1361
          %v1874 = vcvt.s32.f32 %v1362
          %v1875 = vcvt.s32.f32 %v1363
          %v1876 = vcvt.s32.f32 %v1364
          %v1877 = vcvt.s32.f32 %v1365
          %v1878 = vcvt.s32.f32 %v1366
          %v1879 = vcvt.s32.f32 %v1367
          %v1880 = vcvt.s32.f32 %v1368
          %v1881 = vcvt.s32.f32 %v1369
          %v1882 = vcvt.s32.f32 %v1370
          %v1883 = vcvt.s32.f32 %v1371
          %v1884 = vcvt.s32.f32 %v1372
          %v1885 = vcvt.s32.f32 %v1373
          %v1886 = vcvt.s32.f32 %v1374
          %v1887 = vcvt.s32.f32 %v1375
          %v1888 = vcvt.s32.f32 %v1376
          %v1889 = vcvt.s32.f32 %v1377
          %v1890 = vcvt.s32.f32 %v1378
          %v1891 = vcvt.s32.f32 %v1379
          %v1892 = vcvt.s32.f32 %v1380
          %v1893 = vcvt.s32.f32 %v1381
          %v1894 = vcvt.s32.f32 %v1382
          %v1895 = vcvt.s32.f32 %v1383
          %v1896 = vcvt.s32.f32 %v1384
          %v1897 = vcvt.s32.f32 %v1385
          %v1898 = vcvt.s32.f32 %v1386
          %v1899 = vcvt.s32.f32 %v1387
          %v1900 = vcvt.s32.f32 %v1388
          %v1901 = vcvt.s32.f32 %v1389
          %v1902 = vcvt.s32.f32 %v1390
          %v1903 = vcvt.s32.f32 %v1391
          %v1904 = vcvt.s32.f32 %v1392
          %v1905 = vcvt.s32.f32 %v1393
          %v1906 = vcvt.s32.f32 %v1394
          %v1907 = vcvt.s32.f32 %v1395
          %v1908 = vcvt.s32.f32 %v1396
          %v1909 = vcvt.s32.f32 %v1397
          %v1910 = vcvt.s32.f32 %v1398
          %v1911 = vcvt.s32.f32 %v1399
          %v1912 = vcvt.s32.f32 %v1400
          %v1913 = vcvt.s32.f32 %v1401
          %v1914 = vcvt.s32.f32 %v1402
          %v1915 = vcvt.s32.f32 %v1403
          %v1916 = vcvt.s32.f32 %v1404
          %v1917 = vcvt.s32.f32 %v1405
          %v1918 = vcvt.s32.f32 %v1406
          %v1919 = vcvt.s32.f32 %v1407
          %v1920 = vcvt.s32.f32 %v1408
          %v1921 = vcvt.s32.f32 %v1409
          %v1922 = vcvt.s32.f32 %v1410
          %v1923 = vcvt.s32.f32 %v1411
          %v1924 = vcvt.s32.f32 %v1412
          %v1925 = vcvt.s32.f32 %v1413
          %v1926 = vcvt.s32.f32 %v1414
          %v1927 = vcvt.s32.f32 %v1415
          %v1928 = vcvt.s32.f32 %v1416
          %v1929 = vcvt.s32.f32 %v1417
          %v1930 = vcvt.s32.f32 %v1418
          %v1931 = vcvt.s32.f32 %v1419
          %v1932 = vcvt.s32.f32 %v1420
          %v1933 = vcvt.s32.f32 %v1421
          %v1934 = vcvt.s32.f32 %v1422
          %v1935 = vcvt.s32.f32 %v1423
          %v1936 = vcvt.s32.f32 %v1424
          %v1937 = vcvt.s32.f32 %v1425
          %v1938 = vcvt.s32.f32 %v1426
          %v1939 = vcvt.s32.f32 %v1427
          %v1940 = vcvt.s32.f32 %v1428
          %v1941 = vcvt.s32.f32 %v1429
          %v1942 = vcvt.s32.f32 %v1430
          %v1943 = vcvt.s32.f32 %v1431
          %v1944 = vcvt.s32.f32 %v1432
          %v1945 = vcvt.s32.f32 %v1433
          %v1946 = vcvt.s32.f32 %v1434
          %v1947 = vcvt.s32.f32 %v1435
          %v1948 = vcvt.s32.f32 %v1436
          %v1949 = vcvt.s32.f32 %v1437
          %v1950 = vcvt.s32.f32 %v1438
          %v1951 = vcvt.s32.f32 %v1439
          %v1952 = vcvt.s32.f32 %v1440
          %v1953 = vcvt.s32.f32 %v1441
          %v1954 = vcvt.s32.f32 %v1442
          %v1955 = vcvt.s32.f32 %v1443
          %v1956 = vcvt.s32.f32 %v1444
          %v1957 = vcvt.s32.f32 %v1445
          %v1958 = vcvt.s32.f32 %v1446
          %v1959 = vcvt.s32.f32 %v1447
          %v1960 = vcvt.s32.f32 %v1448
          %v1961 = vcvt.s32.f32 %v1449
          %v1962 = vcvt.s32.f32 %v1450
          %v1963 = vcvt.s32.f32 %v1451
          %v1964 = vcvt.s32.f32 %v1452
          %v1965 = vcvt.s32.f32 %v1453
          %v1966 = vcvt.s32.f32 %v1454
          %v1967 = vcvt.s32.f32 %v1455
          %v1968 = vcvt.s32.f32 %v1456
          %v1969 = vcvt.s32.f32 %v1457
          %v1970 = vcvt.s32.f32 %v1458
          %v1971 = vcvt.s32.f32 %v1459
          %v1972 = vcvt.s32.f32 %v1460
          %v1973 = vcvt.s32.f32 %v1461
          %v1974 = vcvt.s32.f32 %v1462
          %v1975 = vcvt.s32.f32 %v1463
          %v1976 = vcvt.s32.f32 %v1464
          %v1977 = vcvt.s32.f32 %v1465
          %v1978 = vcvt.s32.f32 %v1466
          %v1979 = vcvt.s32.f32 %v1467
          %v1980 = vcvt.s32.f32 %v1468
          %v1981 = vcvt.s32.f32 %v1469
          %v1982 = vcvt.s32.f32 %v1470
          %v1983 = vcvt.s32.f32 %v1471
          %v1984 = vcvt.s32.f32 %v1472
          %v1985 = vcvt.s32.f32 %v1473
          %v1986 = vcvt.s32.f32 %v1474
          %v1987 = vcvt.s32.f32 %v1475
          %v1988 = vcvt.s32.f32 %v1476
          %v1989 = vcvt.s32.f32 %v1477
          %v1990 = vcvt.s32.f32 %v1478
          %v1991 = vcvt.s32.f32 %v1479
          %v1992 = vcvt.s32.f32 %v1480
          %v1993 = vcvt.s32.f32 %v1481
          %v1994 = vcvt.s32.f32 %v1482
          %v1995 = vcvt.s32.f32 %v1483
          %v1996 = vcvt.s32.f32 %v1484
          %v1997 = vcvt.s32.f32 %v1485
          %v1998 = vcvt.s32.f32 %v1486
          %v1999 = vcvt.s32.f32 %v1487
          %v2000 = vcvt.s32.f32 %v1488
          %v2001 = vcvt.s32.f32 %v1489
          %v2002 = vcvt.s32.f32 %v1490
          %v2003 = vcvt.s32.f32 %v1491
          %v2004 = vcvt.s32.f32 %v1492
          %v2005 = vcvt.s32.f32 %v1493
          %v2006 = vcvt.s32.f32 %v1494
          %v2007 = vcvt.s32.f32 %v1495
          %v2008 = vcvt.s32.f32 %v1496
          %v2009 = vcvt.s32.f32 %v1497
          %v2010 = vcvt.s32.f32 %v1498
          %v2011 = vcvt.s32.f32 %v1499
          %v2012 = vcvt.s32.f32 %v1500
          %v2013 = vcvt.s32.f32 %v1501
          %v2014 = vcvt.s32.f32 %v1502
          %v2015 = vcvt.s32.f32 %v1503
          %v2016 = vcvt.s32.f32 %v1504
          %v2017 = vcvt.s32.f32 %v1505
          %v2018 = vcvt.s32.f32 %v1506
          %v2019 = vcvt.s32.f32 %v1507
          %v2020 = vcvt.s32.f32 %v1508
          %v2021 = vcvt.s32.f32 %v1509
          %v2022 = vcvt.s32.f32 %v1510
          %v2023 = vcvt.s32.f32 %v1511
          %v2024 = vcvt.s32.f32 %v1512
          %v2025 = vcvt.s32.f32 %v1513
          %v2026 = vcvt.s32.f32 %v1514
          %v2027 = vcvt.s32.f32 %v1515
          %v2028 = vcvt.s32.f32 %v1516
          %v2029 = vcvt.s32.f32 %v1517
          %v2030 = vcvt.s32.f32 %v1518
          %v2031 = vcvt.s32.f32 %v1519
          %v2032 = vcvt.s32.f32 %v1520
          %v2033 = vcvt.s32.f32 %v1521
          %v2034 = vcvt.s32.f32 %v1522
          %v2035 = vcvt.s32.f32 %v1523
          %v2036 = vcvt.s32.f32 %v1524
          %v2037 = vcvt.s32.f32 %v1525
          %v2038 = vcvt.s32.f32 %v1526
          %v2039 = vcvt.s32.f32 %v1527
          %v2040 = vcvt.s32.f32 %v1528
          %v2041 = vcvt.s32.f32 %v1529
          %v2042 = vcvt.s32.f32 %v1530
          %v2043 = vcvt.s32.f32 %v1531
          %v2044 = vcvt.s32.f32 %v1532
          %v2045 = vcvt.s32.f32 %v1533
          %v2046 = vcvt.s32.f32 %v1534
          %v2047 = vcvt.s32.f32 %v1535
          %v2048 = vcvt.s32.f32 %v1536
          %v2049 = vcvt.s32.f32 %v1537
          %v2050 = vcvt.s32.f32 %v1538
          %v2051 = vcvt.s32.f32 %v1539
          %v2052 = vcvt.s32.f32 %v1540
          %v2053 = vcvt.s32.f32 %v1541
          %v2054 = vcvt.s32.f32 %v1542
          %v2055 = vcvt.s32.f32 %v1543
          %v2056 = vcvt.s32.f32 %v1544
          %v2057 = vcvt.s32.f32 %v1545
          %v2058 = vcvt.s32.f32 %v1546
          %v2059 = vcvt.s32.f32 %v1547
          %v2060 = vcvt.s32.f32 %v1548
          %v2061 = vcvt.s32.f32 %v1549
          %v2062 = vcvt.s32.f32 %v1550
          %v2063 = vcvt.s32.f32 %v1551
          %v2064 = vcvt.s32.f32 %v1552
          %v2065 = vcvt.s32.f32 %v1553
          %v2066 = vcvt.s32.f32 %v1554
          %v2067 = vcvt.s32.f32 %v1555
          %v2068 = vcvt.s32.f32 %v1556
          %v2069 = vcvt.s32.f32 %v1557
          %v2070 = vcvt.s32.f32 %v1558
          %v2071 = vcvt.s32.f32 %v1559
          %v2072 = vcvt.s32.f32 %v1560
          %v2073 = vcvt.s32.f32 %v1561
          %v2074 = vcvt.s32.f32 %v1562
          %v2075 = vcvt.s32.f32 %v1563
          %v2076 = vcvt.s32.f32 %v1564
          %v2077 = vcvt.s32.f32 %v1565
          %v2078 = vcvt.s32.f32 %v1566
          %v2079 = vcvt.s32.f32 %v1567
          %v2080 = vcvt.s32.f32 %v1568
          %v2081 = vcvt.s32.f32 %v1569
          %v2082 = vcvt.s32.f32 %v1570
          %v2083 = vcvt.s32.f32 %v1571
          %v2084 = vcvt.s32.f32 %v1572
          %v2085 = vcvt.s32.f32 %v1573
          %v2086 = vcvt.s32.f32 %v1574
          %v2087 = vcvt.s32.f32 %v1575
          %v2088 = vcvt.s32.f32 %v1576
          %v2089 = vcvt.s32.f32 %v1577
          %v2090 = vcvt.s32.f32 %v1578
          %v2091 = vcvt.s32.f32 %v1579
          %v2092 = vcvt.s32.f32 %v1580
          %v2093 = vcvt.s32.f32 %v1581
          %v2094 = vcvt.s32.f32 %v1582
          %v2095 = vcvt.s32.f32 %v1583
          %v2096 = vcvt.s32.f32 %v1584
          %v2097 = vcvt.s32.f32 %v1585
          %v2098 = vcvt.s32.f32 %v1586
          %v2099 = vcvt.s32.f32 %v1587
          %v2100 = vcvt.s32.f32 %v1588
          %v2101 = vcvt.s32.f32 %v1589
          %v2102 = vcvt.s32.f32 %v1590
          %v2103 = vcvt.s32.f32 %v1591
          %v2104 = vcvt.s32.f32 %v1592
          %v2105 = vcvt.s32.f32 %v1593
          %v2106 = vcvt.s32.f32 %v1594
          %v2107 = vcvt.s32.f32 %v1595
          %v2108 = vcvt.s32.f32 %v1596
          %v2109 = vcvt.s32.f32 %v1597
          %v2110 = vcvt.s32.f32 %v1598
          %v2111 = vcvt.s32.f32 %v1599
          %v2112 = vcvt.s32.f32 %v1600
          %v2113 = vcvt.s32.f32 %v1601
          %v2114 = vcvt.s32.f32 %v1602
          %v2115 = vcvt.s32.f32 %v1603
          %v2116 = vcvt.s32.f32 %v1604
          %v2117 = vcvt.s32.f32 %v1605
          %v2118 = vcvt.s32.f32 %v1606
          %v2119 = vcvt.s32.f32 %v1607
          %v2120 = vcvt.s32.f32 %v1608
          %v2121 = vcvt.s32.f32 %v1609
          %v2122 = vcvt.s32.f32 %v1610
          %v2123 = vcvt.s32.f32 %v1611
          %v2124 = vcvt.s32.f32 %v1612
          %v2125 = vcvt.s32.f32 %v1613
          %v2126 = vcvt.s32.f32 %v1614
          %v2127 = vcvt.s32.f32 %v1615
          %v2128 = vcvt.s32.f32 %v1616
          %v2129 = vcvt.s32.f32 %v1617
          %v2130 = vcvt.s32.f32 %v1618
          %v2131 = vcvt.s32.f32 %v1619
          %v2132 = vcvt.s32.f32 %v1620
          %v2133 = vcvt.s32.f32 %v1621
          %v2134 = vcvt.s32.f32 %v1622
          %v2135 = vcvt.s32.f32 %v1623
          %v2136 = vcvt.s32.f32 %v1624
          %v2137 = vcvt.s32.f32 %v1625
          %v2138 = vcvt.s32.f32 %v1626
          %v2139 = vcvt.s32.f32 %v1627
          %v2140 = vcvt.s32.f32 %v1628
          %v2141 = vcvt.s32.f32 %v1629
          %v2142 = vcvt.s32.f32 %v1630
          %v2143 = vcvt.s32.f32 %v1631
          %v2144 = vcvt.s32.f32 %v1632
          %v2145 = vcvt.s32.f32 %v1633
          %v2146 = vcvt.s32.f32 %v1634
          %v2147 = vcvt.s32.f32 %v1635
          %v2148 = vcvt.s32.f32 %v1636
          %v2149 = vcvt.s32.f32 %v1637
          %v2150 = vcvt.s32.f32 %v1638
          %v2151 = vcvt.s32.f32 %v1639
          %v2152 = vcvt.s32.f32 %v1640
          %v2153 = vcvt.s32.f32 %v1641
          %v2154 = vcvt.s32.f32 %v1642
          %v2155 = vcvt.s32.f32 %v1643
          %v2156 = vcvt.s32.f32 %v1644
          %v2157 = vcvt.s32.f32 %v1645
          %v2158 = vcvt.s32.f32 %v1646
          %v2159 = vcvt.s32.f32 %v1647
          %v2160 = vcvt.s32.f32 %v1648
          %v2161 = vcvt.s32.f32 %v1649
          %v2162 = vcvt.s32.f32 %v1650
          %v2163 = vcvt.s32.f32 %v1651
          %v2164 = vcvt.s32.f32 %v1652
          %v2165 = vcvt.s32.f32 %v1653
          %v2166 = vcvt.s32.f32 %v1654
          %v2167 = vcvt.s32.f32 %v1655
          %v2168 = vcvt.s32.f32 %v1656
          %v2169 = vcvt.s32.f32 %v1657
          %v2170 = vcvt.s32.f32 %v1658
          %v2171 = vcvt.s32.f32 %v1659
          %v2172 = vcvt.s32.f32 %v1660
          %v2173 = vcvt.s32.f32 %v1661
          %v2174 = vcvt.s32.f32 %v1662
          %v2175 = vcvt.s32.f32 %v1663
          %v2176 = vcvt.s32.f32 %v1664
          %v2177 = vcvt.s32.f32 %v1665
          %v2178 = vcvt.s32.f32 %v1666
          %v2179 = vcvt.s32.f32 %v1667
          %v2180 = vcvt.s32.f32 %v1668
          %v2181 = vcvt.s32.f32 %v1669
          %v2182 = vcvt.s32.f32 %v1670
          %v2183 = vcvt.s32.f32 %v1671
          %v2184 = vcvt.s32.f32 %v1672
          %v2185 = vcvt.s32.f32 %v1673
          %v2186 = vcvt.s32.f32 %v1674
          %v2187 = vcvt.s32.f32 %v1675
          %v2188 = vcvt.s32.f32 %v1676
          %v2189 = vcvt.s32.f32 %v1677
          %v2190 = vcvt.s32.f32 %v1678
          %v2191 = vcvt.s32.f32 %v1679
          %v2192 = vcvt.s32.f32 %v1680
          %v2193 = vcvt.s32.f32 %v1681
          %v2194 = vcvt.s32.f32 %v1682
          %v2195 = vcvt.s32.f32 %v1683
          %v2196 = vcvt.s32.f32 %v1684
          %v2197 = vcvt.s32.f32 %v1685
          %v2198 = vcvt.s32.f32 %v1686
          %v2199 = vcvt.s32.f32 %v1687
          %v2200 = vcvt.s32.f32 %v1688
          %v2201 = vcvt.s32.f32 %v1689
          %v2202 = vcvt.s32.f32 %v1690
          %v2203 = vcvt.s32.f32 %v1691
          %v2204 = vcvt.s32.f32 %v1692
          %v2205 = vcvt.s32.f32 %v1693
          %v2206 = vcvt.s32.f32 %v1694
          %v2207 = vcvt.s32.f32 %v1695
          %v2208 = vcvt.s32.f32 %v1696
          %v2209 = vcvt.s32.f32 %v1697
          %v2210 = vcvt.s32.f32 %v1698
          %v2211 = vcvt.s32.f32 %v1699
          %v2212 = vcvt.s32.f32 %v1700
          %v2213 = vcvt.s32.f32 %v1701
          %v2214 = vcvt.s32.f32 %v1702
          %v2215 = vcvt.s32.f32 %v1703
          %v2216 = vcvt.s32.f32 %v1704
          %v2217 = vcvt.s32.f32 %v1705
          %v2218 = vcvt.s32.f32 %v1706
          %v2219 = vcvt.s32.f32 %v1707
          %v2220 = vcvt.s32.f32 %v1708
          %v2221 = vcvt.s32.f32 %v1709
          %v2222 = vcvt.s32.f32 %v1710
          %v2223 = vcvt.s32.f32 %v1711
          %v2224 = vcvt.s32.f32 %v1712
          %v2225 = vcvt.s32.f32 %v1713
          %v2226 = vcvt.s32.f32 %v1714
          %v2227 = vcvt.s32.f32 %v1715
          %v2228 = vcvt.s32.f32 %v1716
          %v2229 = vcvt.s32.f32 %v1717
          %v2230 = vcvt.s32.f32 %v1718
          %v2231 = vcvt.s32.f32 %v1719
          %v2232 = vcvt.s32.f32 %v1720
          %v2233 = vcvt.s32.f32 %v1721
          %v2234 = vcvt.s32.f32 %v1722
          %v2235 = vcvt.s32.f32 %v1723
          %v2236 = vcvt.s32.f32 %v1724
          %v2237 = vcvt.s32.f32 %v1725
          %v2238 = vcvt.s32.f32 %v1726
          %v2239 = vcvt.s32.f32 %v1727
          %v2240 = vcvt.s32.f32 %v1728
          %v2241 = vcvt.s32.f32 %v1729
          %v2242 = vcvt.s32.f32 %v1730
          %v2243 = vcvt.s32.f32 %v1731
          %v2244 = vcvt.s32.f32 %v1732
          %v2245 = vcvt.s32.f32 %v1733
          %v2246 = vcvt.s32.f32 %v1734
          %v2247 = vcvt.s32.f32 %v1735
          %v2248 = vcvt.s32.f32 %v1736
          %v2249 = vcvt.s32.f32 %v1737
          %v2250 = vcvt.s32.f32 %v1738
          %v2251 = vcvt.s32.f32 %v1739
          %v2252 = vcvt.s32.f32 %v1740
          %v2253 = vcvt.s32.f32 %v1741
          %v2254 = vcvt.s32.f32 %v1742
          %v2255 = vcvt.s32.f32 %v1743
          %v2256 = vcvt.s32.f32 %v1744
          %v2257 = vcvt.s32.f32 %v1745
          %v2258 = vcvt.s32.f32 %v1746
          %v2259 = vcvt.s32.f32 %v1747
          %v2260 = vcvt.s32.f32 %v1748
          %v2261 = vcvt.s32.f32 %v1749
          %v2262 = vcvt.s32.f32 %v1750
          %v2263 = vcvt.s32.f32 %v1751
          %v2264 = vcvt.s32.f32 %v1752
          %v2265 = vcvt.s32.f32 %v1753
          %v2266 = vcvt.s32.f32 %v1754
          %v2267 = vcvt.s32.f32 %v1755
          %v2268 = vcvt.s32.f32 %v1756
          %v2269 = vcvt.s32.f32 %v1757
          %v2270 = vcvt.s32.f32 %v1758
          %v2271 = vcvt.s32.f32 %v1759
          %v2272 = vcvt.s32.f32 %v1760
          %v2273 = vcvt.s32.f32 %v1761
          %v2274 = vcvt.s32.f32 %v1762
          %v2275 = vcvt.s32.f32 %v1763
          %v2276 = vcvt.s32.f32 %v1764
          %v2277 = vcvt.s32.f32 %v1765
          %v2278 = vcvt.s32.f32 %v1766
          %v2279 = vcvt.s32.f32 %v1767
          %v2280 = vcvt.s32.f32 %v1768
          %v2281 = vcvt.s32.f32 %v1769
          %v2282 = vcvt.s32.f32 %v1770
          %v2283 = vcvt.s32.f32 %v1771
          %v2284 = vcvt.s32.f32 %v1772
          %v2285 = vcvt.s32.f32 %v1773
          %v2286 = vcvt.s32.f32 %v1774
          %v2287 = vcvt.s32.f32 %v1775
          %v2288 = vcvt.s32.f32 %v1776
          %v2289 = vcvt.s32.f32 %v1777
          %v2290 = vcvt.s32.f32 %v1778
          %v2291 = vcvt.s32.f32 %v1779
          %v2292 = vcvt.s32.f32 %v1780
          %v2293 = vcvt.s32.f32 %v1781
          %v2294 = vcvt.s32.f32 %v1782
          %v2295 = vcvt.s32.f32 %v1783
          %v2296 = vcvt.s32.f32 %v1784
          %v2297 = vcvt.s32.f32 %v1785
          %v2298 = vcvt.s32.f32 %v1786
          %v2299 = vcvt.s32.f32 %v1787
          %v2300 = vcvt.s32.f32 %v1788
          %v2301 = vcvt.s32.f32 %v1789
          %v2302 = vcvt.s32.f32 %v1790
          %v2303 = vcvt.s32.f32 %v1791
          %v2304 = vcvt.s32.f32 %v1792
          %v2305 = vcvt.s32.f32 %v1793
          %v2306 = vcvt.s32.f32 %v1794
          %v2307 = vcvt.s32.f32 %v1795
          %v2308 = vcvt.s32.f32 %v1796
          %v2309 = vcvt.s32.f32 %v1797
          %v2310 = vcvt.s32.f32 %v1798
          %v2311 = vcvt.s32.f32 %v1799
          %v2312 = vcvt.s32.f32 %v1800
          %v2313 = vcvt.s32.f32 %v1801
          %v2314 = vcvt.s32.f32 %v1802
          %v2315 = vcvt.s32.f32 %v1803
          %v2316 = vcvt.s32.f32 %v1804
          %v2317 = vcvt.s32.f32 %v1805
          %v2318 = vcvt.s32.f32 %v1806
          %v2319 = vcvt.s32.f32 %v1807
          %v2320 = vcvt.s32.f32 %v1808
          %v2321 = vcvt.s32.f32 %v1809
          %v2322 = vcvt.s32.f32 %v1810
          %v2323 = vcvt.s32.f32 %v1811
          %v2324 = vcvt.s32.f32 %v1812
          %v2325 = vcvt.s32.f32 %v1813
          %v2326 = vcvt.s32.f32 %v1814
          %v2327 = vcvt.s32.f32 %v1815
          %v2328 = vcvt.s32.f32 %v1816
          %v2329 = vcvt.s32.f32 %v1817
          %v2330 = vcvt.s32.f32 %v1818
          %v2331 = vcvt.s32.f32 %v1819
          %v2332 = vcvt.s32.f32 %v1820
          %v2333 = vpack.c.bf16 %v1837, %v1821
          %v2334 = vpack.c.bf16 %v1838, %v1822
          %v2335 = vpack.c.bf16 %v1839, %v1823
          %v2336 = vpack.c.bf16 %v1840, %v1824
          %v2337 = vpack.c.bf16 %v1841, %v1825
          %v2338 = vpack.c.bf16 %v1842, %v1826
          %v2339 = vpack.c.bf16 %v1843, %v1827
          %v2340 = vpack.c.bf16 %v1844, %v1828
          %v2341 = vpack.c.bf16 %v1845, %v1829
          %v2342 = vpack.c.bf16 %v1846, %v1830
          %v2343 = vpack.c.bf16 %v1847, %v1831
          %v2344 = vpack.c.bf16 %v1848, %v1832
          %v2345 = vpack.c.bf16 %v1849, %v1833
          %v2346 = vpack.c.bf16 %v1850, %v1834
          %v2347 = vpack.c.bf16 %v1851, %v1835
          %v2348 = vpack.c.bf16 %v1852, %v1836
          %v2349 = vpack.c.bf16 %v1869, %v1853
          %v2350 = vpack.c.bf16 %v1870, %v1854
          %v2351 = vpack.c.bf16 %v1871, %v1855
          %v2352 = vpack.c.bf16 %v1872, %v1856
          %v2353 = vpack.c.bf16 %v1873, %v1857
          %v2354 = vpack.c.bf16 %v1874, %v1858
          %v2355 = vpack.c.bf16 %v1875, %v1859
          %v2356 = vpack.c.bf16 %v1876, %v1860
          %v2357 = vpack.c.bf16 %v1877, %v1861
          %v2358 = vpack.c.bf16 %v1878, %v1862
          %v2359 = vpack.c.bf16 %v1879, %v1863
          %v2360 = vpack.c.bf16 %v1880, %v1864
          %v2361 = vpack.c.bf16 %v1881, %v1865
          %v2362 = vpack.c.bf16 %v1882, %v1866
          %v2363 = vpack.c.bf16 %v1883, %v1867
          %v2364 = vpack.c.bf16 %v1884, %v1868
          %v2365 = vpack.c.bf16 %v1901, %v1885
          %v2366 = vpack.c.bf16 %v1902, %v1886
          %v2367 = vpack.c.bf16 %v1903, %v1887
          %v2368 = vpack.c.bf16 %v1904, %v1888
          %v2369 = vpack.c.bf16 %v1905, %v1889
          %v2370 = vpack.c.bf16 %v1906, %v1890
          %v2371 = vpack.c.bf16 %v1907, %v1891
          %v2372 = vpack.c.bf16 %v1908, %v1892
          %v2373 = vpack.c.bf16 %v1909, %v1893
          %v2374 = vpack.c.bf16 %v1910, %v1894
          %v2375 = vpack.c.bf16 %v1911, %v1895
          %v2376 = vpack.c.bf16 %v1912, %v1896
          %v2377 = vpack.c.bf16 %v1913, %v1897
          %v2378 = vpack.c.bf16 %v1914, %v1898
          %v2379 = vpack.c.bf16 %v1915, %v1899
          %v2380 = vpack.c.bf16 %v1916, %v1900
          %v2381 = vpack.c.bf16 %v1933, %v1917
          %v2382 = vpack.c.bf16 %v1934, %v1918
          %v2383 = vpack.c.bf16 %v1935, %v1919
          %v2384 = vpack.c.bf16 %v1936, %v1920
          %v2385 = vpack.c.bf16 %v1937, %v1921
          %v2386 = vpack.c.bf16 %v1938, %v1922
          %v2387 = vpack.c.bf16 %v1939, %v1923
          %v2388 = vpack.c.bf16 %v1940, %v1924
          %v2389 = vpack.c.bf16 %v1941, %v1925
          %v2390 = vpack.c.bf16 %v1942, %v1926
          %v2391 = vpack.c.bf16 %v1943, %v1927
          %v2392 = vpack.c.bf16 %v1944, %v1928
          %v2393 = vpack.c.bf16 %v1945, %v1929
          %v2394 = vpack.c.bf16 %v1946, %v1930
          %v2395 = vpack.c.bf16 %v1947, %v1931
          %v2396 = vpack.c.bf16 %v1948, %v1932
          %v2397 = vpack.c.bf16 %v1965, %v1949
          %v2398 = vpack.c.bf16 %v1966, %v1950
          %v2399 = vpack.c.bf16 %v1967, %v1951
          %v2400 = vpack.c.bf16 %v1968, %v1952
          %v2401 = vpack.c.bf16 %v1969, %v1953
          %v2402 = vpack.c.bf16 %v1970, %v1954
          %v2403 = vpack.c.bf16 %v1971, %v1955
          %v2404 = vpack.c.bf16 %v1972, %v1956
          %v2405 = vpack.c.bf16 %v1973, %v1957
          %v2406 = vpack.c.bf16 %v1974, %v1958
          %v2407 = vpack.c.bf16 %v1975, %v1959
          %v2408 = vpack.c.bf16 %v1976, %v1960
          %v2409 = vpack.c.bf16 %v1977, %v1961
          %v2410 = vpack.c.bf16 %v1978, %v1962
          %v2411 = vpack.c.bf16 %v1979, %v1963
          %v2412 = vpack.c.bf16 %v1980, %v1964
          %v2413 = vpack.c.bf16 %v1997, %v1981
          %v2414 = vpack.c.bf16 %v1998, %v1982
          %v2415 = vpack.c.bf16 %v1999, %v1983
          %v2416 = vpack.c.bf16 %v2000, %v1984
          %v2417 = vpack.c.bf16 %v2001, %v1985
          %v2418 = vpack.c.bf16 %v2002, %v1986
          %v2419 = vpack.c.bf16 %v2003, %v1987
          %v2420 = vpack.c.bf16 %v2004, %v1988
          %v2421 = vpack.c.bf16 %v2005, %v1989
          %v2422 = vpack.c.bf16 %v2006, %v1990
          %v2423 = vpack.c.bf16 %v2007, %v1991
          %v2424 = vpack.c.bf16 %v2008, %v1992
          %v2425 = vpack.c.bf16 %v2009, %v1993
          %v2426 = vpack.c.bf16 %v2010, %v1994
          %v2427 = vpack.c.bf16 %v2011, %v1995
          %v2428 = vpack.c.bf16 %v2012, %v1996
          %v2429 = vpack.c.bf16 %v2029, %v2013
          %v2430 = vpack.c.bf16 %v2030, %v2014
          %v2431 = vpack.c.bf16 %v2031, %v2015
          %v2432 = vpack.c.bf16 %v2032, %v2016
          %v2433 = vpack.c.bf16 %v2033, %v2017
          %v2434 = vpack.c.bf16 %v2034, %v2018
          %v2435 = vpack.c.bf16 %v2035, %v2019
          %v2436 = vpack.c.bf16 %v2036, %v2020
          %v2437 = vpack.c.bf16 %v2037, %v2021
          %v2438 = vpack.c.bf16 %v2038, %v2022
          %v2439 = vpack.c.bf16 %v2039, %v2023
          %v2440 = vpack.c.bf16 %v2040, %v2024
          %v2441 = vpack.c.bf16 %v2041, %v2025
          %v2442 = vpack.c.bf16 %v2042, %v2026
          %v2443 = vpack.c.bf16 %v2043, %v2027
          %v2444 = vpack.c.bf16 %v2044, %v2028
          %v2445 = vpack.c.bf16 %v2061, %v2045
          %v2446 = vpack.c.bf16 %v2062, %v2046
          %v2447 = vpack.c.bf16 %v2063, %v2047
          %v2448 = vpack.c.bf16 %v2064, %v2048
          %v2449 = vpack.c.bf16 %v2065, %v2049
          %v2450 = vpack.c.bf16 %v2066, %v2050
          %v2451 = vpack.c.bf16 %v2067, %v2051
          %v2452 = vpack.c.bf16 %v2068, %v2052
          %v2453 = vpack.c.bf16 %v2069, %v2053
          %v2454 = vpack.c.bf16 %v2070, %v2054
          %v2455 = vpack.c.bf16 %v2071, %v2055
          %v2456 = vpack.c.bf16 %v2072, %v2056
          %v2457 = vpack.c.bf16 %v2073, %v2057
          %v2458 = vpack.c.bf16 %v2074, %v2058
          %v2459 = vpack.c.bf16 %v2075, %v2059
          %v2460 = vpack.c.bf16 %v2076, %v2060
          %v2461 = vpack.c.bf16 %v2093, %v2077
          %v2462 = vpack.c.bf16 %v2094, %v2078
          %v2463 = vpack.c.bf16 %v2095, %v2079
          %v2464 = vpack.c.bf16 %v2096, %v2080
          %v2465 = vpack.c.bf16 %v2097, %v2081
          %v2466 = vpack.c.bf16 %v2098, %v2082
          %v2467 = vpack.c.bf16 %v2099, %v2083
          %v2468 = vpack.c.bf16 %v2100, %v2084
          %v2469 = vpack.c.bf16 %v2101, %v2085
          %v2470 = vpack.c.bf16 %v2102, %v2086
          %v2471 = vpack.c.bf16 %v2103, %v2087
          %v2472 = vpack.c.bf16 %v2104, %v2088
          %v2473 = vpack.c.bf16 %v2105, %v2089
          %v2474 = vpack.c.bf16 %v2106, %v2090
          %v2475 = vpack.c.bf16 %v2107, %v2091
          %v2476 = vpack.c.bf16 %v2108, %v2092
          %v2477 = vpack.c.bf16 %v2125, %v2109
          %v2478 = vpack.c.bf16 %v2126, %v2110
          %v2479 = vpack.c.bf16 %v2127, %v2111
          %v2480 = vpack.c.bf16 %v2128, %v2112
          %v2481 = vpack.c.bf16 %v2129, %v2113
          %v2482 = vpack.c.bf16 %v2130, %v2114
          %v2483 = vpack.c.bf16 %v2131, %v2115
          %v2484 = vpack.c.bf16 %v2132, %v2116
          %v2485 = vpack.c.bf16 %v2133, %v2117
          %v2486 = vpack.c.bf16 %v2134, %v2118
          %v2487 = vpack.c.bf16 %v2135, %v2119
          %v2488 = vpack.c.bf16 %v2136, %v2120
          %v2489 = vpack.c.bf16 %v2137, %v2121
          %v2490 = vpack.c.bf16 %v2138, %v2122
          %v2491 = vpack.c.bf16 %v2139, %v2123
          %v2492 = vpack.c.bf16 %v2140, %v2124
          %v2493 = vpack.c.bf16 %v2157, %v2141
          %v2494 = vpack.c.bf16 %v2158, %v2142
          %v2495 = vpack.c.bf16 %v2159, %v2143
          %v2496 = vpack.c.bf16 %v2160, %v2144
          %v2497 = vpack.c.bf16 %v2161, %v2145
          %v2498 = vpack.c.bf16 %v2162, %v2146
          %v2499 = vpack.c.bf16 %v2163, %v2147
          %v2500 = vpack.c.bf16 %v2164, %v2148
          %v2501 = vpack.c.bf16 %v2165, %v2149
          %v2502 = vpack.c.bf16 %v2166, %v2150
          %v2503 = vpack.c.bf16 %v2167, %v2151
          %v2504 = vpack.c.bf16 %v2168, %v2152
          %v2505 = vpack.c.bf16 %v2169, %v2153
          %v2506 = vpack.c.bf16 %v2170, %v2154
          %v2507 = vpack.c.bf16 %v2171, %v2155
          %v2508 = vpack.c.bf16 %v2172, %v2156
          %v2509 = vpack.c.bf16 %v2189, %v2173
          %v2510 = vpack.c.bf16 %v2190, %v2174
          %v2511 = vpack.c.bf16 %v2191, %v2175
          %v2512 = vpack.c.bf16 %v2192, %v2176
          %v2513 = vpack.c.bf16 %v2193, %v2177
          %v2514 = vpack.c.bf16 %v2194, %v2178
          %v2515 = vpack.c.bf16 %v2195, %v2179
          %v2516 = vpack.c.bf16 %v2196, %v2180
          %v2517 = vpack.c.bf16 %v2197, %v2181
          %v2518 = vpack.c.bf16 %v2198, %v2182
          %v2519 = vpack.c.bf16 %v2199, %v2183
          %v2520 = vpack.c.bf16 %v2200, %v2184
          %v2521 = vpack.c.bf16 %v2201, %v2185
          %v2522 = vpack.c.bf16 %v2202, %v2186
          %v2523 = vpack.c.bf16 %v2203, %v2187
          %v2524 = vpack.c.bf16 %v2204, %v2188
          %v2525 = vpack.c.bf16 %v2221, %v2205
          %v2526 = vpack.c.bf16 %v2222, %v2206
          %v2527 = vpack.c.bf16 %v2223, %v2207
          %v2528 = vpack.c.bf16 %v2224, %v2208
          %v2529 = vpack.c.bf16 %v2225, %v2209
          %v2530 = vpack.c.bf16 %v2226, %v2210
          %v2531 = vpack.c.bf16 %v2227, %v2211
          %v2532 = vpack.c.bf16 %v2228, %v2212
          %v2533 = vpack.c.bf16 %v2229, %v2213
          %v2534 = vpack.c.bf16 %v2230, %v2214
          %v2535 = vpack.c.bf16 %v2231, %v2215
          %v2536 = vpack.c.bf16 %v2232, %v2216
          %v2537 = vpack.c.bf16 %v2233, %v2217
          %v2538 = vpack.c.bf16 %v2234, %v2218
          %v2539 = vpack.c.bf16 %v2235, %v2219
          %v2540 = vpack.c.bf16 %v2236, %v2220
          %v2541 = vpack.c.bf16 %v2253, %v2237
          %v2542 = vpack.c.bf16 %v2254, %v2238
          %v2543 = vpack.c.bf16 %v2255, %v2239
          %v2544 = vpack.c.bf16 %v2256, %v2240
          %v2545 = vpack.c.bf16 %v2257, %v2241
          %v2546 = vpack.c.bf16 %v2258, %v2242
          %v2547 = vpack.c.bf16 %v2259, %v2243
          %v2548 = vpack.c.bf16 %v2260, %v2244
          %v2549 = vpack.c.bf16 %v2261, %v2245
          %v2550 = vpack.c.bf16 %v2262, %v2246
          %v2551 = vpack.c.bf16 %v2263, %v2247
          %v2552 = vpack.c.bf16 %v2264, %v2248
          %v2553 = vpack.c.bf16 %v2265, %v2249
          %v2554 = vpack.c.bf16 %v2266, %v2250
          %v2555 = vpack.c.bf16 %v2267, %v2251
          %v2556 = vpack.c.bf16 %v2268, %v2252
          %v2557 = vpack.c.bf16 %v2285, %v2269
          %v2558 = vpack.c.bf16 %v2286, %v2270
          %v2559 = vpack.c.bf16 %v2287, %v2271
          %v2560 = vpack.c.bf16 %v2288, %v2272
          %v2561 = vpack.c.bf16 %v2289, %v2273
          %v2562 = vpack.c.bf16 %v2290, %v2274
          %v2563 = vpack.c.bf16 %v2291, %v2275
          %v2564 = vpack.c.bf16 %v2292, %v2276
          %v2565 = vpack.c.bf16 %v2293, %v2277
          %v2566 = vpack.c.bf16 %v2294, %v2278
          %v2567 = vpack.c.bf16 %v2295, %v2279
          %v2568 = vpack.c.bf16 %v2296, %v2280
          %v2569 = vpack.c.bf16 %v2297, %v2281
          %v2570 = vpack.c.bf16 %v2298, %v2282
          %v2571 = vpack.c.bf16 %v2299, %v2283
          %v2572 = vpack.c.bf16 %v2300, %v2284
          %v2573 = vpack.c.bf16 %v2317, %v2301
          %v2574 = vpack.c.bf16 %v2318, %v2302
          %v2575 = vpack.c.bf16 %v2319, %v2303
          %v2576 = vpack.c.bf16 %v2320, %v2304
          %v2577 = vpack.c.bf16 %v2321, %v2305
          %v2578 = vpack.c.bf16 %v2322, %v2306
          %v2579 = vpack.c.bf16 %v2323, %v2307
          %v2580 = vpack.c.bf16 %v2324, %v2308
          %v2581 = vpack.c.bf16 %v2325, %v2309
          %v2582 = vpack.c.bf16 %v2326, %v2310
          %v2583 = vpack.c.bf16 %v2327, %v2311
          %v2584 = vpack.c.bf16 %v2328, %v2312
          %v2585 = vpack.c.bf16 %v2329, %v2313
          %v2586 = vpack.c.bf16 %v2330, %v2314
          %v2587 = vpack.c.bf16 %v2331, %v2315
          %v2588 = vpack.c.bf16 %v2332, %v2316
          %v2591 = vunpack.c.l.b16 %v254
          %v2592 = vunpack.c.h.b16 %v254
          %v2593 = vunpack.c.l.b16 %v255
          %v2594 = vunpack.c.h.b16 %v255
          %v2595 = vpack.c.b16 %v2593, %v2591
          %v2596 = vpack.c.b16 %v2594, %v2592
          %2599 = vmatpush.bf16.msra.mxu0 %v2445
          %2600 = vmatpush.bf16.msra.mxu0 %v2429
          %2601 = vmatpush.bf16.msra.mxu0 %v2413
          %2602 = vmatpush.bf16.msra.mxu0 %v2397
          %2603 = vmatpush.bf16.msra.mxu0 %v2381
          %2604 = vmatpush.bf16.msra.mxu0 %v2365
          %2605 = vmatpush.bf16.msra.mxu0 %v2349
          %2606 = vmatpush.bf16.msra.mxu0 %v2333
          %2607 = vmatmul.bf16.gmra.mxu0 %v2595
          %v2608 = vpop.f32.mrf.mxu0
          %v2609 = vadd.f32 0.0, %v2608
          %v2610 = vpop.f32.mrf.mxu0
          %v2611 = vadd.f32 0.0, %v2610
          %2612 = vdwg.mxu0
          %2613 = vmatpush.bf16.msra.mxu0 %v2573
          %2614 = vmatpush.bf16.msra.mxu0 %v2557
          %2615 = vmatpush.bf16.msra.mxu0 %v2541
          %2616 = vmatpush.bf16.msra.mxu0 %v2525
          %2617 = vmatpush.bf16.msra.mxu0 %v2509
          %2618 = vmatpush.bf16.msra.mxu0 %v2493
          %2619 = vmatpush.bf16.msra.mxu0 %v2477
          %2620 = vmatpush.bf16.msra.mxu0 %v2461
          %2621 = vmatmul.bf16.gmra.mxu0 %v2596
          %v2622 = vpop.f32.mrf.mxu0
          %v2623 = vadd.f32 %v2609, %v2622
          %v2624 = vpop.f32.mrf.mxu0
          %v2625 = vadd.f32 %v2611, %v2624
          %2626 = vdwg.mxu0
          %2627 = vmatpush.bf16.msra.mxu0 %v2446
          %2628 = vmatpush.bf16.msra.mxu0 %v2430
          %2629 = vmatpush.bf16.msra.mxu0 %v2414
          %2630 = vmatpush.bf16.msra.mxu0 %v2398
          %2631 = vmatpush.bf16.msra.mxu0 %v2382
          %2632 = vmatpush.bf16.msra.mxu0 %v2366
          %2633 = vmatpush.bf16.msra.mxu0 %v2350
          %2634 = vmatpush.bf16.msra.mxu0 %v2334
          %2635 = vmatmul.bf16.gmra.mxu0 %v2595
          %v2636 = vpop.f32.mrf.mxu0
          %v2637 = vadd.f32 0.0, %v2636
          %v2638 = vpop.f32.mrf.mxu0
          %v2639 = vadd.f32 0.0, %v2638
          %2640 = vdwg.mxu0
          %2641 = vmatpush.bf16.msra.mxu0 %v2574
          %2642 = vmatpush.bf16.msra.mxu0 %v2558
          %2643 = vmatpush.bf16.msra.mxu0 %v2542
          %2644 = vmatpush.bf16.msra.mxu0 %v2526
          %2645 = vmatpush.bf16.msra.mxu0 %v2510
          %2646 = vmatpush.bf16.msra.mxu0 %v2494
          %2647 = vmatpush.bf16.msra.mxu0 %v2478
          %2648 = vmatpush.bf16.msra.mxu0 %v2462
          %2649 = vmatmul.bf16.gmra.mxu0 %v2596
          %v2650 = vpop.f32.mrf.mxu0
          %v2651 = vadd.f32 %v2637, %v2650
          %v2652 = vpop.f32.mrf.mxu0
          %v2653 = vadd.f32 %v2639, %v2652
          %2654 = vdwg.mxu0
          %2655 = vmatpush.bf16.msra.mxu0 %v2447
          %2656 = vmatpush.bf16.msra.mxu0 %v2431
          %2657 = vmatpush.bf16.msra.mxu0 %v2415
          %2658 = vmatpush.bf16.msra.mxu0 %v2399
          %2659 = vmatpush.bf16.msra.mxu0 %v2383
          %2660 = vmatpush.bf16.msra.mxu0 %v2367
          %2661 = vmatpush.bf16.msra.mxu0 %v2351
          %2662 = vmatpush.bf16.msra.mxu0 %v2335
          %2663 = vmatmul.bf16.gmra.mxu0 %v2595
          %v2664 = vpop.f32.mrf.mxu0
          %v2665 = vadd.f32 0.0, %v2664
          %v2666 = vpop.f32.mrf.mxu0
          %v2667 = vadd.f32 0.0, %v2666
          %2668 = vdwg.mxu0
          %2669 = vmatpush.bf16.msra.mxu0 %v2575
          %2670 = vmatpush.bf16.msra.mxu0 %v2559
          %2671 = vmatpush.bf16.msra.mxu0 %v2543
          %2672 = vmatpush.bf16.msra.mxu0 %v2527
          %2673 = vmatpush.bf16.msra.mxu0 %v2511
          %2674 = vmatpush.bf16.msra.mxu0 %v2495
          %2675 = vmatpush.bf16.msra.mxu0 %v2479
          %2676 = vmatpush.bf16.msra.mxu0 %v2463
          %2677 = vmatmul.bf16.gmra.mxu0 %v2596
          %v2678 = vpop.f32.mrf.mxu0
          %v2679 = vadd.f32 %v2665, %v2678
          %v2680 = vpop.f32.mrf.mxu0
          %v2681 = vadd.f32 %v2667, %v2680
          %2682 = vdwg.mxu0
          %2683 = vmatpush.bf16.msra.mxu0 %v2448
          %2684 = vmatpush.bf16.msra.mxu0 %v2432
          %2685 = vmatpush.bf16.msra.mxu0 %v2416
          %2686 = vmatpush.bf16.msra.mxu0 %v2400
          %2687 = vmatpush.bf16.msra.mxu0 %v2384
          %2688 = vmatpush.bf16.msra.mxu0 %v2368
          %2689 = vmatpush.bf16.msra.mxu0 %v2352
          %2690 = vmatpush.bf16.msra.mxu0 %v2336
          %2691 = vmatmul.bf16.gmra.mxu0 %v2595
          %v2692 = vpop.f32.mrf.mxu0
          %v2693 = vadd.f32 0.0, %v2692
          %v2694 = vpop.f32.mrf.mxu0
          %v2695 = vadd.f32 0.0, %v2694
          %2696 = vdwg.mxu0
          %2697 = vmatpush.bf16.msra.mxu0 %v2576
          %2698 = vmatpush.bf16.msra.mxu0 %v2560
          %2699 = vmatpush.bf16.msra.mxu0 %v2544
          %2700 = vmatpush.bf16.msra.mxu0 %v2528
          %2701 = vmatpush.bf16.msra.mxu0 %v2512
          %2702 = vmatpush.bf16.msra.mxu0 %v2496
          %2703 = vmatpush.bf16.msra.mxu0 %v2480
          %2704 = vmatpush.bf16.msra.mxu0 %v2464
          %2705 = vmatmul.bf16.gmra.mxu0 %v2596
          %v2706 = vpop.f32.mrf.mxu0
          %v2707 = vadd.f32 %v2693, %v2706
          %v2708 = vpop.f32.mrf.mxu0
          %v2709 = vadd.f32 %v2695, %v2708
          %2710 = vdwg.mxu0
          %2711 = vmatpush.bf16.msra.mxu0 %v2449
          %2712 = vmatpush.bf16.msra.mxu0 %v2433
          %2713 = vmatpush.bf16.msra.mxu0 %v2417
          %2714 = vmatpush.bf16.msra.mxu0 %v2401
          %2715 = vmatpush.bf16.msra.mxu0 %v2385
          %2716 = vmatpush.bf16.msra.mxu0 %v2369
          %2717 = vmatpush.bf16.msra.mxu0 %v2353
          %2718 = vmatpush.bf16.msra.mxu0 %v2337
          %2719 = vmatmul.bf16.gmra.mxu0 %v2595
          %v2720 = vpop.f32.mrf.mxu0
          %v2721 = vadd.f32 0.0, %v2720
          %v2722 = vpop.f32.mrf.mxu0
          %v2723 = vadd.f32 0.0, %v2722
          %2724 = vdwg.mxu0
          %2725 = vmatpush.bf16.msra.mxu0 %v2577
          %2726 = vmatpush.bf16.msra.mxu0 %v2561
          %2727 = vmatpush.bf16.msra.mxu0 %v2545
          %2728 = vmatpush.bf16.msra.mxu0 %v2529
          %2729 = vmatpush.bf16.msra.mxu0 %v2513
          %2730 = vmatpush.bf16.msra.mxu0 %v2497
          %2731 = vmatpush.bf16.msra.mxu0 %v2481
          %2732 = vmatpush.bf16.msra.mxu0 %v2465
          %2733 = vmatmul.bf16.gmra.mxu0 %v2596
          %v2734 = vpop.f32.mrf.mxu0
          %v2735 = vadd.f32 %v2721, %v2734
          %v2736 = vpop.f32.mrf.mxu0
          %v2737 = vadd.f32 %v2723, %v2736
          %2738 = vdwg.mxu0
          %2739 = vmatpush.bf16.msra.mxu0 %v2450
          %2740 = vmatpush.bf16.msra.mxu0 %v2434
          %2741 = vmatpush.bf16.msra.mxu0 %v2418
          %2742 = vmatpush.bf16.msra.mxu0 %v2402
          %2743 = vmatpush.bf16.msra.mxu0 %v2386
          %2744 = vmatpush.bf16.msra.mxu0 %v2370
          %2745 = vmatpush.bf16.msra.mxu0 %v2354
          %2746 = vmatpush.bf16.msra.mxu0 %v2338
          %2747 = vmatmul.bf16.gmra.mxu0 %v2595
          %v2748 = vpop.f32.mrf.mxu0
          %v2749 = vadd.f32 0.0, %v2748
          %v2750 = vpop.f32.mrf.mxu0
          %v2751 = vadd.f32 0.0, %v2750
          %2752 = vdwg.mxu0
          %2753 = vmatpush.bf16.msra.mxu0 %v2578
          %2754 = vmatpush.bf16.msra.mxu0 %v2562
          %2755 = vmatpush.bf16.msra.mxu0 %v2546
          %2756 = vmatpush.bf16.msra.mxu0 %v2530
          %2757 = vmatpush.bf16.msra.mxu0 %v2514
          %2758 = vmatpush.bf16.msra.mxu0 %v2498
          %2759 = vmatpush.bf16.msra.mxu0 %v2482
          %2760 = vmatpush.bf16.msra.mxu0 %v2466
          %2761 = vmatmul.bf16.gmra.mxu0 %v2596
          %v2762 = vpop.f32.mrf.mxu0
          %v2763 = vadd.f32 %v2749, %v2762
          %v2764 = vpop.f32.mrf.mxu0
          %v2765 = vadd.f32 %v2751, %v2764
          %2766 = vdwg.mxu0
          %2767 = vmatpush.bf16.msra.mxu0 %v2451
          %2768 = vmatpush.bf16.msra.mxu0 %v2435
          %2769 = vmatpush.bf16.msra.mxu0 %v2419
          %2770 = vmatpush.bf16.msra.mxu0 %v2403
          %2771 = vmatpush.bf16.msra.mxu0 %v2387
          %2772 = vmatpush.bf16.msra.mxu0 %v2371
          %2773 = vmatpush.bf16.msra.mxu0 %v2355
          %2774 = vmatpush.bf16.msra.mxu0 %v2339
          %2775 = vmatmul.bf16.gmra.mxu0 %v2595
          %v2776 = vpop.f32.mrf.mxu0
          %v2777 = vadd.f32 0.0, %v2776
          %v2778 = vpop.f32.mrf.mxu0
          %v2779 = vadd.f32 0.0, %v2778
          %2780 = vdwg.mxu0
          %2781 = vmatpush.bf16.msra.mxu0 %v2579
          %2782 = vmatpush.bf16.msra.mxu0 %v2563
          %2783 = vmatpush.bf16.msra.mxu0 %v2547
          %2784 = vmatpush.bf16.msra.mxu0 %v2531
          %2785 = vmatpush.bf16.msra.mxu0 %v2515
          %2786 = vmatpush.bf16.msra.mxu0 %v2499
          %2787 = vmatpush.bf16.msra.mxu0 %v2483
          %2788 = vmatpush.bf16.msra.mxu0 %v2467
          %2789 = vmatmul.bf16.gmra.mxu0 %v2596
          %v2790 = vpop.f32.mrf.mxu0
          %v2791 = vadd.f32 %v2777, %v2790
          %v2792 = vpop.f32.mrf.mxu0
          %v2793 = vadd.f32 %v2779, %v2792
          %2794 = vdwg.mxu0
          %2795 = vmatpush.bf16.msra.mxu0 %v2452
          %2796 = vmatpush.bf16.msra.mxu0 %v2436
          %2797 = vmatpush.bf16.msra.mxu0 %v2420
          %2798 = vmatpush.bf16.msra.mxu0 %v2404
          %2799 = vmatpush.bf16.msra.mxu0 %v2388
          %2800 = vmatpush.bf16.msra.mxu0 %v2372
          %2801 = vmatpush.bf16.msra.mxu0 %v2356
          %2802 = vmatpush.bf16.msra.mxu0 %v2340
          %2803 = vmatmul.bf16.gmra.mxu0 %v2595
          %v2804 = vpop.f32.mrf.mxu0
          %v2805 = vadd.f32 0.0, %v2804
          %v2806 = vpop.f32.mrf.mxu0
          %v2807 = vadd.f32 0.0, %v2806
          %2808 = vdwg.mxu0
          %2809 = vmatpush.bf16.msra.mxu0 %v2580
          %2810 = vmatpush.bf16.msra.mxu0 %v2564
          %2811 = vmatpush.bf16.msra.mxu0 %v2548
          %2812 = vmatpush.bf16.msra.mxu0 %v2532
          %2813 = vmatpush.bf16.msra.mxu0 %v2516
          %2814 = vmatpush.bf16.msra.mxu0 %v2500
          %2815 = vmatpush.bf16.msra.mxu0 %v2484
          %2816 = vmatpush.bf16.msra.mxu0 %v2468
          %2817 = vmatmul.bf16.gmra.mxu0 %v2596
          %v2818 = vpop.f32.mrf.mxu0
          %v2819 = vadd.f32 %v2805, %v2818
          %v2820 = vpop.f32.mrf.mxu0
          %v2821 = vadd.f32 %v2807, %v2820
          %2822 = vdwg.mxu0
          %2823 = vmatpush.bf16.msra.mxu0 %v2453
          %2824 = vmatpush.bf16.msra.mxu0 %v2437
          %2825 = vmatpush.bf16.msra.mxu0 %v2421
          %2826 = vmatpush.bf16.msra.mxu0 %v2405
          %2827 = vmatpush.bf16.msra.mxu0 %v2389
          %2828 = vmatpush.bf16.msra.mxu0 %v2373
          %2829 = vmatpush.bf16.msra.mxu0 %v2357
          %2830 = vmatpush.bf16.msra.mxu0 %v2341
          %2831 = vmatmul.bf16.gmra.mxu0 %v2595
          %v2832 = vpop.f32.mrf.mxu0
          %v2833 = vadd.f32 0.0, %v2832
          %v2834 = vpop.f32.mrf.mxu0
          %v2835 = vadd.f32 0.0, %v2834
          %2836 = vdwg.mxu0
          %2837 = vmatpush.bf16.msra.mxu0 %v2581
          %2838 = vmatpush.bf16.msra.mxu0 %v2565
          %2839 = vmatpush.bf16.msra.mxu0 %v2549
          %2840 = vmatpush.bf16.msra.mxu0 %v2533
          %2841 = vmatpush.bf16.msra.mxu0 %v2517
          %2842 = vmatpush.bf16.msra.mxu0 %v2501
          %2843 = vmatpush.bf16.msra.mxu0 %v2485
          %2844 = vmatpush.bf16.msra.mxu0 %v2469
          %2845 = vmatmul.bf16.gmra.mxu0 %v2596
          %v2846 = vpop.f32.mrf.mxu0
          %v2847 = vadd.f32 %v2833, %v2846
          %v2848 = vpop.f32.mrf.mxu0
          %v2849 = vadd.f32 %v2835, %v2848
          %2850 = vdwg.mxu0
          %2851 = vmatpush.bf16.msra.mxu0 %v2454
          %2852 = vmatpush.bf16.msra.mxu0 %v2438
          %2853 = vmatpush.bf16.msra.mxu0 %v2422
          %2854 = vmatpush.bf16.msra.mxu0 %v2406
          %2855 = vmatpush.bf16.msra.mxu0 %v2390
          %2856 = vmatpush.bf16.msra.mxu0 %v2374
          %2857 = vmatpush.bf16.msra.mxu0 %v2358
          %2858 = vmatpush.bf16.msra.mxu0 %v2342
          %2859 = vmatmul.bf16.gmra.mxu0 %v2595
          %v2860 = vpop.f32.mrf.mxu0
          %v2861 = vadd.f32 0.0, %v2860
          %v2862 = vpop.f32.mrf.mxu0
          %v2863 = vadd.f32 0.0, %v2862
          %2864 = vdwg.mxu0
          %2865 = vmatpush.bf16.msra.mxu0 %v2582
          %2866 = vmatpush.bf16.msra.mxu0 %v2566
          %2867 = vmatpush.bf16.msra.mxu0 %v2550
          %2868 = vmatpush.bf16.msra.mxu0 %v2534
          %2869 = vmatpush.bf16.msra.mxu0 %v2518
          %2870 = vmatpush.bf16.msra.mxu0 %v2502
          %2871 = vmatpush.bf16.msra.mxu0 %v2486
          %2872 = vmatpush.bf16.msra.mxu0 %v2470
          %2873 = vmatmul.bf16.gmra.mxu0 %v2596
          %v2874 = vpop.f32.mrf.mxu0
          %v2875 = vadd.f32 %v2861, %v2874
          %v2876 = vpop.f32.mrf.mxu0
          %v2877 = vadd.f32 %v2863, %v2876
          %2878 = vdwg.mxu0
          %2879 = vmatpush.bf16.msra.mxu0 %v2455
          %2880 = vmatpush.bf16.msra.mxu0 %v2439
          %2881 = vmatpush.bf16.msra.mxu0 %v2423
          %2882 = vmatpush.bf16.msra.mxu0 %v2407
          %2883 = vmatpush.bf16.msra.mxu0 %v2391
          %2884 = vmatpush.bf16.msra.mxu0 %v2375
          %2885 = vmatpush.bf16.msra.mxu0 %v2359
          %2886 = vmatpush.bf16.msra.mxu0 %v2343
          %2887 = vmatmul.bf16.gmra.mxu0 %v2595
          %v2888 = vpop.f32.mrf.mxu0
          %v2889 = vadd.f32 0.0, %v2888
          %v2890 = vpop.f32.mrf.mxu0
          %v2891 = vadd.f32 0.0, %v2890
          %2892 = vdwg.mxu0
          %2893 = vmatpush.bf16.msra.mxu0 %v2583
          %2894 = vmatpush.bf16.msra.mxu0 %v2567
          %2895 = vmatpush.bf16.msra.mxu0 %v2551
          %2896 = vmatpush.bf16.msra.mxu0 %v2535
          %2897 = vmatpush.bf16.msra.mxu0 %v2519
          %2898 = vmatpush.bf16.msra.mxu0 %v2503
          %2899 = vmatpush.bf16.msra.mxu0 %v2487
          %2900 = vmatpush.bf16.msra.mxu0 %v2471
          %2901 = vmatmul.bf16.gmra.mxu0 %v2596
          %v2902 = vpop.f32.mrf.mxu0
          %v2903 = vadd.f32 %v2889, %v2902
          %v2904 = vpop.f32.mrf.mxu0
          %v2905 = vadd.f32 %v2891, %v2904
          %2906 = vdwg.mxu0
          %2907 = vmatpush.bf16.msra.mxu0 %v2456
          %2908 = vmatpush.bf16.msra.mxu0 %v2440
          %2909 = vmatpush.bf16.msra.mxu0 %v2424
          %2910 = vmatpush.bf16.msra.mxu0 %v2408
          %2911 = vmatpush.bf16.msra.mxu0 %v2392
          %2912 = vmatpush.bf16.msra.mxu0 %v2376
          %2913 = vmatpush.bf16.msra.mxu0 %v2360
          %2914 = vmatpush.bf16.msra.mxu0 %v2344
          %2915 = vmatmul.bf16.gmra.mxu0 %v2595
          %v2916 = vpop.f32.mrf.mxu0
          %v2917 = vadd.f32 0.0, %v2916
          %v2918 = vpop.f32.mrf.mxu0
          %v2919 = vadd.f32 0.0, %v2918
          %2920 = vdwg.mxu0
          %2921 = vmatpush.bf16.msra.mxu0 %v2584
          %2922 = vmatpush.bf16.msra.mxu0 %v2568
          %2923 = vmatpush.bf16.msra.mxu0 %v2552
          %2924 = vmatpush.bf16.msra.mxu0 %v2536
          %2925 = vmatpush.bf16.msra.mxu0 %v2520
          %2926 = vmatpush.bf16.msra.mxu0 %v2504
          %2927 = vmatpush.bf16.msra.mxu0 %v2488
          %2928 = vmatpush.bf16.msra.mxu0 %v2472
          %2929 = vmatmul.bf16.gmra.mxu0 %v2596
          %v2930 = vpop.f32.mrf.mxu0
          %v2931 = vadd.f32 %v2917, %v2930
          %v2932 = vpop.f32.mrf.mxu0
          %v2933 = vadd.f32 %v2919, %v2932
          %2934 = vdwg.mxu0
          %2935 = vmatpush.bf16.msra.mxu0 %v2457
          %2936 = vmatpush.bf16.msra.mxu0 %v2441
          %2937 = vmatpush.bf16.msra.mxu0 %v2425
          %2938 = vmatpush.bf16.msra.mxu0 %v2409
          %2939 = vmatpush.bf16.msra.mxu0 %v2393
          %2940 = vmatpush.bf16.msra.mxu0 %v2377
          %2941 = vmatpush.bf16.msra.mxu0 %v2361
          %2942 = vmatpush.bf16.msra.mxu0 %v2345
          %2943 = vmatmul.bf16.gmra.mxu0 %v2595
          %v2944 = vpop.f32.mrf.mxu0
          %v2945 = vadd.f32 0.0, %v2944
          %v2946 = vpop.f32.mrf.mxu0
          %v2947 = vadd.f32 0.0, %v2946
          %2948 = vdwg.mxu0
          %2949 = vmatpush.bf16.msra.mxu0 %v2585
          %2950 = vmatpush.bf16.msra.mxu0 %v2569
          %2951 = vmatpush.bf16.msra.mxu0 %v2553
          %2952 = vmatpush.bf16.msra.mxu0 %v2537
          %2953 = vmatpush.bf16.msra.mxu0 %v2521
          %2954 = vmatpush.bf16.msra.mxu0 %v2505
          %2955 = vmatpush.bf16.msra.mxu0 %v2489
          %2956 = vmatpush.bf16.msra.mxu0 %v2473
          %2957 = vmatmul.bf16.gmra.mxu0 %v2596
          %v2958 = vpop.f32.mrf.mxu0
          %v2959 = vadd.f32 %v2945, %v2958
          %v2960 = vpop.f32.mrf.mxu0
          %v2961 = vadd.f32 %v2947, %v2960
          %2962 = vdwg.mxu0
          %2963 = vmatpush.bf16.msra.mxu0 %v2458
          %2964 = vmatpush.bf16.msra.mxu0 %v2442
          %2965 = vmatpush.bf16.msra.mxu0 %v2426
          %2966 = vmatpush.bf16.msra.mxu0 %v2410
          %2967 = vmatpush.bf16.msra.mxu0 %v2394
          %2968 = vmatpush.bf16.msra.mxu0 %v2378
          %2969 = vmatpush.bf16.msra.mxu0 %v2362
          %2970 = vmatpush.bf16.msra.mxu0 %v2346
          %2971 = vmatmul.bf16.gmra.mxu0 %v2595
          %v2972 = vpop.f32.mrf.mxu0
          %v2973 = vadd.f32 0.0, %v2972
          %v2974 = vpop.f32.mrf.mxu0
          %v2975 = vadd.f32 0.0, %v2974
          %2976 = vdwg.mxu0
          %2977 = vmatpush.bf16.msra.mxu0 %v2586
          %2978 = vmatpush.bf16.msra.mxu0 %v2570
          %2979 = vmatpush.bf16.msra.mxu0 %v2554
          %2980 = vmatpush.bf16.msra.mxu0 %v2538
          %2981 = vmatpush.bf16.msra.mxu0 %v2522
          %2982 = vmatpush.bf16.msra.mxu0 %v2506
          %2983 = vmatpush.bf16.msra.mxu0 %v2490
          %2984 = vmatpush.bf16.msra.mxu0 %v2474
          %2985 = vmatmul.bf16.gmra.mxu0 %v2596
          %v2986 = vpop.f32.mrf.mxu0
          %v2987 = vadd.f32 %v2973, %v2986
          %v2988 = vpop.f32.mrf.mxu0
          %v2989 = vadd.f32 %v2975, %v2988
          %2990 = vdwg.mxu0
          %2991 = vmatpush.bf16.msra.mxu0 %v2459
          %2992 = vmatpush.bf16.msra.mxu0 %v2443
          %2993 = vmatpush.bf16.msra.mxu0 %v2427
          %2994 = vmatpush.bf16.msra.mxu0 %v2411
          %2995 = vmatpush.bf16.msra.mxu0 %v2395
          %2996 = vmatpush.bf16.msra.mxu0 %v2379
          %2997 = vmatpush.bf16.msra.mxu0 %v2363
          %2998 = vmatpush.bf16.msra.mxu0 %v2347
          %2999 = vmatmul.bf16.gmra.mxu0 %v2595
          %v3000 = vpop.f32.mrf.mxu0
          %v3001 = vadd.f32 0.0, %v3000
          %v3002 = vpop.f32.mrf.mxu0
          %v3003 = vadd.f32 0.0, %v3002
          %3004 = vdwg.mxu0
          %3005 = vmatpush.bf16.msra.mxu0 %v2587
          %3006 = vmatpush.bf16.msra.mxu0 %v2571
          %3007 = vmatpush.bf16.msra.mxu0 %v2555
          %3008 = vmatpush.bf16.msra.mxu0 %v2539
          %3009 = vmatpush.bf16.msra.mxu0 %v2523
          %3010 = vmatpush.bf16.msra.mxu0 %v2507
          %3011 = vmatpush.bf16.msra.mxu0 %v2491
          %3012 = vmatpush.bf16.msra.mxu0 %v2475
          %3013 = vmatmul.bf16.gmra.mxu0 %v2596
          %v3014 = vpop.f32.mrf.mxu0
          %v3015 = vadd.f32 %v3001, %v3014
          %v3016 = vpop.f32.mrf.mxu0
          %v3017 = vadd.f32 %v3003, %v3016
          %3018 = vdwg.mxu0
          %3019 = vmatpush.bf16.msra.mxu0 %v2460
          %3020 = vmatpush.bf16.msra.mxu0 %v2444
          %3021 = vmatpush.bf16.msra.mxu0 %v2428
          %3022 = vmatpush.bf16.msra.mxu0 %v2412
          %3023 = vmatpush.bf16.msra.mxu0 %v2396
          %3024 = vmatpush.bf16.msra.mxu0 %v2380
          %3025 = vmatpush.bf16.msra.mxu0 %v2364
          %3026 = vmatpush.bf16.msra.mxu0 %v2348
          %3027 = vmatmul.bf16.gmra.mxu0 %v2595
          %v3028 = vpop.f32.mrf.mxu0
          %v3029 = vadd.f32 0.0, %v3028
          %v3030 = vpop.f32.mrf.mxu0
          %v3031 = vadd.f32 0.0, %v3030
          %3032 = vdwg.mxu0
          %3033 = vmatpush.bf16.msra.mxu0 %v2588
          %3034 = vmatpush.bf16.msra.mxu0 %v2572
          %3035 = vmatpush.bf16.msra.mxu0 %v2556
          %3036 = vmatpush.bf16.msra.mxu0 %v2540
          %3037 = vmatpush.bf16.msra.mxu0 %v2524
          %3038 = vmatpush.bf16.msra.mxu0 %v2508
          %3039 = vmatpush.bf16.msra.mxu0 %v2492
          %3040 = vmatpush.bf16.msra.mxu0 %v2476
          %3041 = vmatmul.bf16.gmra.mxu0 %v2596
          %v3042 = vpop.f32.mrf.mxu0
          %v3043 = vadd.f32 %v3029, %v3042
          %v3044 = vpop.f32.mrf.mxu0
          %v3045 = vadd.f32 %v3031, %v3044
          %3046 = vdwg.mxu0
          %v3047 = vperm.slane %v320, 1
          %v3048 = vperm.slane %v321, 1
          %v3049 = vperm.slane %v380, 1
          %v3050 = vperm.slane %v381, 1
          %v3051 = vperm.slane %v440, 1
          %v3052 = vperm.slane %v441, 1
          %v3053 = vperm.slane %v500, 1
          %v3054 = vperm.slane %v501, 1
          %v3055 = vperm.slane %v560, 1
          %v3056 = vperm.slane %v561, 1
          %v3057 = vperm.slane %v620, 1
          %v3058 = vperm.slane %v621, 1
          %v3059 = vperm.slane %v680, 1
          %v3060 = vperm.slane %v681, 1
          %v3061 = vperm.slane %v740, 1
          %v3062 = vperm.slane %v741, 1
          %vm3063 = vcmp.eq.s32.totalorder %v749, %v3047
          %vm3064 = vcmp.eq.s32.totalorder %v749, %v3048
          %vm3065 = vcmp.eq.s32.totalorder %v749, %v3049
          %vm3066 = vcmp.eq.s32.totalorder %v749, %v3050
          %vm3067 = vcmp.eq.s32.totalorder %v749, %v3051
          %vm3068 = vcmp.eq.s32.totalorder %v749, %v3052
          %vm3069 = vcmp.eq.s32.totalorder %v749, %v3053
          %vm3070 = vcmp.eq.s32.totalorder %v749, %v3054
          %vm3071 = vcmp.eq.s32.totalorder %v749, %v3055
          %vm3072 = vcmp.eq.s32.totalorder %v749, %v3056
          %vm3073 = vcmp.eq.s32.totalorder %v749, %v3057
          %vm3074 = vcmp.eq.s32.totalorder %v749, %v3058
          %vm3075 = vcmp.eq.s32.totalorder %v749, %v3059
          %vm3076 = vcmp.eq.s32.totalorder %v749, %v3060
          %vm3077 = vcmp.eq.s32.totalorder %v749, %v3061
          %vm3078 = vcmp.eq.s32.totalorder %v749, %v3062
          %vm3079 = vcmp.eq.s32.totalorder %v750, %v3047
          %vm3080 = vcmp.eq.s32.totalorder %v750, %v3048
          %vm3081 = vcmp.eq.s32.totalorder %v750, %v3049
          %vm3082 = vcmp.eq.s32.totalorder %v750, %v3050
          %vm3083 = vcmp.eq.s32.totalorder %v750, %v3051
          %vm3084 = vcmp.eq.s32.totalorder %v750, %v3052
          %vm3085 = vcmp.eq.s32.totalorder %v750, %v3053
          %vm3086 = vcmp.eq.s32.totalorder %v750, %v3054
          %vm3087 = vcmp.eq.s32.totalorder %v750, %v3055
          %vm3088 = vcmp.eq.s32.totalorder %v750, %v3056
          %vm3089 = vcmp.eq.s32.totalorder %v750, %v3057
          %vm3090 = vcmp.eq.s32.totalorder %v750, %v3058
          %vm3091 = vcmp.eq.s32.totalorder %v750, %v3059
          %vm3092 = vcmp.eq.s32.totalorder %v750, %v3060
          %vm3093 = vcmp.eq.s32.totalorder %v750, %v3061
          %vm3094 = vcmp.eq.s32.totalorder %v750, %v3062
          %v3095 = vsel %vm3063, 1, 0
          %v3096 = vsel %vm3064, 1, 0
          %v3097 = vsel %vm3065, 1, 0
          %v3098 = vsel %vm3066, 1, 0
          %v3099 = vsel %vm3067, 1, 0
          %v3100 = vsel %vm3068, 1, 0
          %v3101 = vsel %vm3069, 1, 0
          %v3102 = vsel %vm3070, 1, 0
          %v3103 = vsel %vm3071, 1, 0
          %v3104 = vsel %vm3072, 1, 0
          %v3105 = vsel %vm3073, 1, 0
          %v3106 = vsel %vm3074, 1, 0
          %v3107 = vsel %vm3075, 1, 0
          %v3108 = vsel %vm3076, 1, 0
          %v3109 = vsel %vm3077, 1, 0
          %v3110 = vsel %vm3078, 1, 0
          %v3111 = vsel %vm3079, 1, 0
          %v3112 = vsel %vm3080, 1, 0
          %v3113 = vsel %vm3081, 1, 0
          %v3114 = vsel %vm3082, 1, 0
          %v3115 = vsel %vm3083, 1, 0
          %v3116 = vsel %vm3084, 1, 0
          %v3117 = vsel %vm3085, 1, 0
          %v3118 = vsel %vm3086, 1, 0
          %v3119 = vsel %vm3087, 1, 0
          %v3120 = vsel %vm3088, 1, 0
          %v3121 = vsel %vm3089, 1, 0
          %v3122 = vsel %vm3090, 1, 0
          %v3123 = vsel %vm3091, 1, 0
          %v3124 = vsel %vm3092, 1, 0
          %v3125 = vsel %vm3093, 1, 0
          %v3126 = vsel %vm3094, 1, 0
          %v3127 = vcvt.s32.f32 %v3095
          %v3128 = vcvt.s32.f32 %v3096
          %v3129 = vcvt.s32.f32 %v3097
          %v3130 = vcvt.s32.f32 %v3098
          %v3131 = vcvt.s32.f32 %v3099
          %v3132 = vcvt.s32.f32 %v3100
          %v3133 = vcvt.s32.f32 %v3101
          %v3134 = vcvt.s32.f32 %v3102
          %v3135 = vcvt.s32.f32 %v3103
          %v3136 = vcvt.s32.f32 %v3104
          %v3137 = vcvt.s32.f32 %v3105
          %v3138 = vcvt.s32.f32 %v3106
          %v3139 = vcvt.s32.f32 %v3107
          %v3140 = vcvt.s32.f32 %v3108
          %v3141 = vcvt.s32.f32 %v3109
          %v3142 = vcvt.s32.f32 %v3110
          %v3143 = vcvt.s32.f32 %v3111
          %v3144 = vcvt.s32.f32 %v3112
          %v3145 = vcvt.s32.f32 %v3113
          %v3146 = vcvt.s32.f32 %v3114
          %v3147 = vcvt.s32.f32 %v3115
          %v3148 = vcvt.s32.f32 %v3116
          %v3149 = vcvt.s32.f32 %v3117
          %v3150 = vcvt.s32.f32 %v3118
          %v3151 = vcvt.s32.f32 %v3119
          %v3152 = vcvt.s32.f32 %v3120
          %v3153 = vcvt.s32.f32 %v3121
          %v3154 = vcvt.s32.f32 %v3122
          %v3155 = vcvt.s32.f32 %v3123
          %v3156 = vcvt.s32.f32 %v3124
          %v3157 = vcvt.s32.f32 %v3125
          %v3158 = vcvt.s32.f32 %v3126
          %v3159 = vmul.f32 %v2623, %v3127
          %v3160 = vmul.f32 %v2651, %v3128
          %v3161 = vmul.f32 %v2679, %v3129
          %v3162 = vmul.f32 %v2707, %v3130
          %v3163 = vmul.f32 %v2735, %v3131
          %v3164 = vmul.f32 %v2763, %v3132
          %v3165 = vmul.f32 %v2791, %v3133
          %v3166 = vmul.f32 %v2819, %v3134
          %v3167 = vmul.f32 %v2847, %v3135
          %v3168 = vmul.f32 %v2875, %v3136
          %v3169 = vmul.f32 %v2903, %v3137
          %v3170 = vmul.f32 %v2931, %v3138
          %v3171 = vmul.f32 %v2959, %v3139
          %v3172 = vmul.f32 %v2987, %v3140
          %v3173 = vmul.f32 %v3015, %v3141
          %v3174 = vmul.f32 %v3043, %v3142
          %v3175 = vmul.f32 %v2625, %v3143
          %v3176 = vmul.f32 %v2653, %v3144
          %v3177 = vmul.f32 %v2681, %v3145
          %v3178 = vmul.f32 %v2709, %v3146
          %v3179 = vmul.f32 %v2737, %v3147
          %v3180 = vmul.f32 %v2765, %v3148
          %v3181 = vmul.f32 %v2793, %v3149
          %v3182 = vmul.f32 %v2821, %v3150
          %v3183 = vmul.f32 %v2849, %v3151
          %v3184 = vmul.f32 %v2877, %v3152
          %v3185 = vmul.f32 %v2905, %v3153
          %v3186 = vmul.f32 %v2933, %v3154
          %v3187 = vmul.f32 %v2961, %v3155
          %v3188 = vmul.f32 %v2989, %v3156
          %v3189 = vmul.f32 %v3017, %v3157
          %v3190 = vmul.f32 %v3045, %v3158
          %v3191 = vadd.f32 %v3159, %v3175
          %v3192 = vrot.slane %v3191, 4
          %v3193 = vadd.f32 %v3191, %v3192
          %v3194 = vrot.slane %v3193, 2
          %v3195 = vadd.f32 %v3193, %v3194
          %v3196 = vrot.slane %v3195, 1
          %v3197 = vadd.f32 %v3195, %v3196
          %v3198 = vadd.f32 %v3160, %v3176
          %v3199 = vrot.slane %v3198, 4
          %v3200 = vadd.f32 %v3198, %v3199
          %v3201 = vrot.slane %v3200, 2
          %v3202 = vadd.f32 %v3200, %v3201
          %v3203 = vrot.slane %v3202, 1
          %v3204 = vadd.f32 %v3202, %v3203
          %v3205 = vadd.f32 %v3161, %v3177
          %v3206 = vrot.slane %v3205, 4
          %v3207 = vadd.f32 %v3205, %v3206
          %v3208 = vrot.slane %v3207, 2
          %v3209 = vadd.f32 %v3207, %v3208
          %v3210 = vrot.slane %v3209, 1
          %v3211 = vadd.f32 %v3209, %v3210
          %v3212 = vadd.f32 %v3162, %v3178
          %v3213 = vrot.slane %v3212, 4
          %v3214 = vadd.f32 %v3212, %v3213
          %v3215 = vrot.slane %v3214, 2
          %v3216 = vadd.f32 %v3214, %v3215
          %v3217 = vrot.slane %v3216, 1
          %v3218 = vadd.f32 %v3216, %v3217
          %v3219 = vadd.f32 %v3163, %v3179
          %v3220 = vrot.slane %v3219, 4
          %v3221 = vadd.f32 %v3219, %v3220
          %v3222 = vrot.slane %v3221, 2
          %v3223 = vadd.f32 %v3221, %v3222
          %v3224 = vrot.slane %v3223, 1
          %v3225 = vadd.f32 %v3223, %v3224
          %v3226 = vadd.f32 %v3164, %v3180
          %v3227 = vrot.slane %v3226, 4
          %v3228 = vadd.f32 %v3226, %v3227
          %v3229 = vrot.slane %v3228, 2
          %v3230 = vadd.f32 %v3228, %v3229
          %v3231 = vrot.slane %v3230, 1
          %v3232 = vadd.f32 %v3230, %v3231
          %v3233 = vadd.f32 %v3165, %v3181
          %v3234 = vrot.slane %v3233, 4
          %v3235 = vadd.f32 %v3233, %v3234
          %v3236 = vrot.slane %v3235, 2
          %v3237 = vadd.f32 %v3235, %v3236
          %v3238 = vrot.slane %v3237, 1
          %v3239 = vadd.f32 %v3237, %v3238
          %v3240 = vadd.f32 %v3166, %v3182
          %v3241 = vrot.slane %v3240, 4
          %v3242 = vadd.f32 %v3240, %v3241
          %v3243 = vrot.slane %v3242, 2
          %v3244 = vadd.f32 %v3242, %v3243
          %v3245 = vrot.slane %v3244, 1
          %v3246 = vadd.f32 %v3244, %v3245
          %v3247 = vadd.f32 %v3167, %v3183
          %v3248 = vrot.slane %v3247, 4
          %v3249 = vadd.f32 %v3247, %v3248
          %v3250 = vrot.slane %v3249, 2
          %v3251 = vadd.f32 %v3249, %v3250
          %v3252 = vrot.slane %v3251, 1
          %v3253 = vadd.f32 %v3251, %v3252
          %v3254 = vadd.f32 %v3168, %v3184
          %v3255 = vrot.slane %v3254, 4
          %v3256 = vadd.f32 %v3254, %v3255
          %v3257 = vrot.slane %v3256, 2
          %v3258 = vadd.f32 %v3256, %v3257
          %v3259 = vrot.slane %v3258, 1
          %v3260 = vadd.f32 %v3258, %v3259
          %v3261 = vadd.f32 %v3169, %v3185
          %v3262 = vrot.slane %v3261, 4
          %v3263 = vadd.f32 %v3261, %v3262
          %v3264 = vrot.slane %v3263, 2
          %v3265 = vadd.f32 %v3263, %v3264
          %v3266 = vrot.slane %v3265, 1
          %v3267 = vadd.f32 %v3265, %v3266
          %v3268 = vadd.f32 %v3170, %v3186
          %v3269 = vrot.slane %v3268, 4
          %v3270 = vadd.f32 %v3268, %v3269
          %v3271 = vrot.slane %v3270, 2
          %v3272 = vadd.f32 %v3270, %v3271
          %v3273 = vrot.slane %v3272, 1
          %v3274 = vadd.f32 %v3272, %v3273
          %v3275 = vadd.f32 %v3171, %v3187
          %v3276 = vrot.slane %v3275, 4
          %v3277 = vadd.f32 %v3275, %v3276
          %v3278 = vrot.slane %v3277, 2
          %v3279 = vadd.f32 %v3277, %v3278
          %v3280 = vrot.slane %v3279, 1
          %v3281 = vadd.f32 %v3279, %v3280
          %v3282 = vadd.f32 %v3172, %v3188
          %v3283 = vrot.slane %v3282, 4
          %v3284 = vadd.f32 %v3282, %v3283
          %v3285 = vrot.slane %v3284, 2
          %v3286 = vadd.f32 %v3284, %v3285
          %v3287 = vrot.slane %v3286, 1
          %v3288 = vadd.f32 %v3286, %v3287
          %v3289 = vadd.f32 %v3173, %v3189
          %v3290 = vrot.slane %v3289, 4
          %v3291 = vadd.f32 %v3289, %v3290
          %v3292 = vrot.slane %v3291, 2
          %v3293 = vadd.f32 %v3291, %v3292
          %v3294 = vrot.slane %v3293, 1
          %v3295 = vadd.f32 %v3293, %v3294
          %v3296 = vadd.f32 %v3174, %v3190
          %v3297 = vrot.slane %v3296, 4
          %v3298 = vadd.f32 %v3296, %v3297
          %v3299 = vrot.slane %v3298, 2
          %v3300 = vadd.f32 %v3298, %v3299
          %v3301 = vrot.slane %v3300, 1
          %v3302 = vadd.f32 %v3300, %v3301
          %v3303 = vadd.f32 %v3197, %v3211
          %v3304 = vadd.f32 %v3204, %v3218
          %v3305 = vadd.f32 %v3303, %v3225
          %v3306 = vadd.f32 %v3304, %v3232
          %v3307 = vadd.f32 %v3305, %v3239
          %v3308 = vadd.f32 %v3306, %v3246
          %v3309 = vadd.f32 %v3307, %v3253
          %v3310 = vadd.f32 %v3308, %v3260
          %v3311 = vadd.f32 %v3309, %v3267
          %v3312 = vadd.f32 %v3310, %v3274
          %v3313 = vadd.f32 %v3311, %v3281
          %v3314 = vadd.f32 %v3312, %v3288
          %v3315 = vadd.f32 %v3313, %v3295
          %v3316 = vadd.f32 %v3314, %v3302
          %v3317 = vadd.f32 %v264, %v3315
          %v3318 = vadd.f32 %v265, %v3316
        $region41: #{tpu_custom_call.1} parent=27 // loop_footer
          %s261 = sadd.s32 %s259, 1
        $region42: #{tpu_custom_call.1} parent=27 // loop_footer_branch
          %258 = sbr.rel target = $region38
        $region43: #{tpu_custom_call.1} parent=27 // loop_exit
          _
        %v3319 = vmul.f32 %v264, 0.05
        %v3320 = vmul.f32 %v265, 0.05
        %v3323 = vrot.slane %v3320, 7
        %vm3324 = vcmask 1040384
        %v3325 = vsel %vm3324, %v3319, %v3323
        %v3327 = vlaneseq
        %vm3328 = vcmp.ge.s32.totalorder %v3327, 0
        %vm3329 = vcmp.lt.s32.totalorder %v3327, 256
        %vm3330 = vmand %vm3328, %vm3329
        %3331 = vst.msk [vmem:[%s243] sm:$0x3] %vm3330, %v3325
        %s3332 = sand.u32 %s118, 1
        %s3333 = scalar_lea.sflag [#allocation6], %s3332
        %s3334 = sand.u32 %s118, 1
        %s3335 = smul.addr %s3334, 2
        %s3336 = scalar_lea.vmem [#allocation9], %s3335
        // Predicated region
        $region44: #{tpu_custom_call.1} parent=27 // pred_check
          %p3337 = pneg %p128
        $region45: #{tpu_custom_call.1} parent=27 // pred_check_branch
          %3339 = sbr.rel (%p3337) target = $region47
        $region46: #{tpu_custom_call.1} parent=27 // pred_region
          %s3340 = smul.u32 2, %s38
          %3342 = vsyncadd %s3333, 0
          %s3343 = smul.addr %s37, 2
          %s3344 = sadd.s32 %s3340, %s3343
          %s3345 = smul.addr %s36, 4
          %s3346 = sadd.s32 %s3344, %s3345
          %s3347 = scalar_lea.hbm %s3, %s3346
          %s3349 = sshll.u32 %s3336, 4
          %s3350 = int_to_ptr.vmem [resolvable:$true] %s3349
          %s3351 = sshll.u32 %s3347, 4
          %s3352 = int_to_ptr.hbm [resolvable:$true] %s3351
          %3354 = dma.vmem_to_hbm [thread:$0]  %s3350, 32, %s3352, %s3333
        $region47: #{tpu_custom_call.1} parent=27 // pred_fallthru
          _
      $region28: #{tpu_custom_call.1} parent=5 // pred_fallthru
        _
      %p3355 = scmp.le.s32.totalorder 2, %s26
      // Predicated region
      $region48: #{tpu_custom_call.1} parent=5 // pred_check
        %p3356 = pneg %p3355
      $region49: #{tpu_custom_call.1} parent=5 // pred_check_branch
        %3358 = sbr.rel (%p3356) target = $region51
      $region50: #{tpu_custom_call.1} parent=5 // pred_region
        %s3359 = ssub.s32 %s26, 2
        // Predicated region
        $region52: #{tpu_custom_call.1} parent=50 // pred_check
          %p3360 = pneg %p134
        $region53: #{tpu_custom_call.1} parent=50 // pred_check_branch
          %3362 = sbr.rel (%p3360) target = $region55
        $region54: #{tpu_custom_call.1} parent=50 // pred_region
          %s3363 = sand.u32 %s119, 1
          %s3364 = scalar_lea.sflag [#allocation6], %s3363
          %s3365 = sand.u32 %s119, 1
          %s3366 = smul.addr %s3365, 2
          %s3367 = scalar_lea.vmem [#allocation9], %s3366
          %3369 = dma.done %s3364, 32
        $region55: #{tpu_custom_call.1} parent=50 // pred_fallthru
          _
      $region51: #{tpu_custom_call.1} parent=5 // pred_fallthru
        _
    $region6: #{tpu_custom_call.1} parent=1 // loop_footer
      %s30 = sadd.s32 1, %s26
    $region7: #{tpu_custom_call.1} parent=1 // loop_footer_branch
      %25 = sbr.rel target = $region3
    $region8: #{tpu_custom_call.1} parent=1 // loop_exit
      _
    %3370 = vsyncpa [#allocation5], 1
    %s3371 = scalar_lea.sflag [#allocation5], 1
    %3372 = vsyncpa %s3371, 1
    %3373 = vsyncpa [#allocation8], 1
    %s3374 = scalar_lea.sflag [#allocation8], 1
    %3375 = vsyncpa %s3374, 1
    %3376 = vsyncpa [#allocation6], 1
    %s3377 = scalar_lea.sflag [#allocation6], 1
    %3378 = vsyncpa %s3377, 1

</llo_original>
